<compile_context>
chip_gen: v5e
topology: v5e:2x2
jax: 0.10.0
libtpu: 0.0.40
codegen_flags: <defaults>
</compile_context>

<pallas_src>
import jax
import jax.numpy as jnp
from jax import lax
from jax.experimental import pallas as pl
from jax.experimental.pallas import tpu as pltpu

# ---- model dims (small, consistent with max_seq_length=32 from the tokenizer) ----
B = 2            # batch
S = 32           # max_seq_length (from BertTokenizerOp config)
H = 64           # hidden size
NUM_HEADS = 4
HEAD_DIM = H // NUM_HEADS
FFN = 128        # intermediate size
VOCAB = 128
TYPE_VOCAB = 2
NUM_LAYERS = 2
NUM_LABELS = 2
LN_EPS = 1e-12
ATTN_SCALE = 1.0 / (HEAD_DIM ** 0.5)
N_LAYER_PARAMS = 16


# ----------------------------- kernel helpers -----------------------------
def _layernorm(x, gamma, beta):
    mu = jnp.mean(x, axis=-1, keepdims=True)
    var = jnp.mean(jnp.square(x - mu), axis=-1, keepdims=True)
    return (x - mu) * lax.rsqrt(var + LN_EPS) * gamma + beta


def _encoder_layer(x, mask_bias, p):
    (wq, bq, wk, bk, wv, bv, wo, bo,
     g1, be1, w1, b1, w2, b2, g2, be2) = [r[...] for r in p]

    xb = x.astype(jnp.bfloat16)
    # 1/sqrt(HEAD_DIM) folded into q: one (B*S, H) multiply instead of per-head
    # (S, S) score scaling.
    q = (jnp.dot(xb, wq, preferred_element_type=jnp.float32) + bq) * ATTN_SCALE
    k = jnp.dot(xb, wk, preferred_element_type=jnp.float32) + bk
    v = jnp.dot(xb, wv, preferred_element_type=jnp.float32) + bv

    ctx_rows = []
    for b in range(B):                       # static unroll over batch rows
        rows = slice(b * S, (b + 1) * S)
        bias_b = mask_bias[b:b + 1, :]       # (1, S) additive key bias
        heads = []
        for h in range(NUM_HEADS):           # static unroll over heads
            cols = slice(h * HEAD_DIM, (h + 1) * HEAD_DIM)
            qh = q[rows, cols].astype(jnp.bfloat16)   # (S, Dh)
            kh = k[rows, cols].astype(jnp.bfloat16)   # (S, Dh)
            vh = v[rows, cols].astype(jnp.bfloat16)   # (S, Dh)
            s = lax.dot_general(qh, kh, (((1,), (1,)), ((), ())),
                                preferred_element_type=jnp.float32)   # (S, S)
            s = s + bias_b
            m = jnp.max(s, axis=-1, keepdims=True)
            e = jnp.exp(s - m)
            pattn = e * pl.reciprocal(jnp.sum(e, axis=-1, keepdims=True), approx=True)
            heads.append(jnp.dot(pattn.astype(jnp.bfloat16), vh,
                                 preferred_element_type=jnp.float32))  # (S, Dh)
        ctx_rows.append(jnp.concatenate(heads, axis=-1))               # (S, H)
    ctx = jnp.concatenate(ctx_rows, axis=0)                            # (B*S, H)

    attn_out = jnp.dot(ctx.astype(jnp.bfloat16), wo,
                       preferred_element_type=jnp.float32) + bo
    h1 = _layernorm(x + attn_out, g1, be1)

    ff = jnp.dot(h1.astype(jnp.bfloat16), w1, preferred_element_type=jnp.float32) + b1
    # TODO(synk): the TorchScript export may use exact erf GELU; tanh approximation used here.
    ff = jax.nn.gelu(ff, approximate=True)
    ff = jnp.dot(ff.astype(jnp.bfloat16), w2, preferred_element_type=jnp.float32) + b2
    return _layernorm(h1 + ff, g2, be2)


# ----------------------------- fused Pallas kernel -----------------------------
def fused_fermion_kernel(*refs):
    ids_ref, mask_ref, seg_ref = refs[0], refs[1], refs[2]
    tok_emb_ref, pos_emb_ref, seg_emb_ref, emb_g_ref, emb_b_ref = refs[3:8]
    layer_refs = refs[8:8 + NUM_LAYERS * N_LAYER_PARAMS]
    wp_ref, bp_ref, wc_ref, bc_ref = refs[8 + NUM_LAYERS * N_LAYER_PARAMS:
                                          8 + NUM_LAYERS * N_LAYER_PARAMS + 4]
    o_ref = refs[-1]

    # ---- embeddings: one-hot matmul gather (VOCAB = 128 lanes exactly) ----
    ids = ids_ref[...]                                                   # (B*S, 1) int32
    onehot = (ids == lax.broadcasted_iota(jnp.int32, (B * S, VOCAB), 1)
              ).astype(jnp.bfloat16)                                     # (B*S, VOCAB)
    tok = jnp.dot(onehot, tok_emb_ref[...],
                  preferred_element_type=jnp.float32)                    # (B*S, H)

    seg = seg_ref[...]                                                   # (B*S, 1) int32
    seg_e = jnp.where(seg == 0, seg_emb_ref[0:1, :], seg_emb_ref[1:2, :])  # (B*S, H)

    x = _layernorm(tok + pos_emb_ref[...] + seg_e, emb_g_ref[...], emb_b_ref[...])

    # ---- additive attention mask bias built on the VPU from the raw int mask ----
    mask_bias = (1.0 - mask_ref[...].astype(jnp.float32)) * -1e9          # (B, S)

    for li in range(NUM_LAYERS):                                          # static unroll
        x = _encoder_layer(x, mask_bias,
                           layer_refs[li * N_LAYER_PARAMS:(li + 1) * N_LAYER_PARAMS])

    # ---- pooler + classifier on the [CLS] row of each batch element ----
    cls_rows = jnp.concatenate([x[b * S:b * S + 1, :] for b in range(B)], axis=0)  # (B, H)
    pooled = jnp.tanh(jnp.dot(cls_rows.astype(jnp.bfloat16), wp_ref[...],
                              preferred_element_type=jnp.float32) + bp_ref[...])
    o_ref[...] = jnp.dot(pooled.astype(jnp.bfloat16), wc_ref[...],
                         preferred_element_type=jnp.float32) + bc_ref[...]


# ----------------------------- parameters -----------------------------
def init_params(key):
    def nrm(k, shape, scale=0.02):
        return (scale * jax.random.normal(k, shape)).astype(jnp.float32)

    keys = jax.random.split(key, 8 + NUM_LAYERS)
    params = {
        "tok_emb": nrm(keys[0], (VOCAB, H)),
        "pos_emb": nrm(keys[1], (S, H)),
        "seg_emb": nrm(keys[2], (TYPE_VOCAB, H)),
        "emb_ln_g": jnp.ones((H,), jnp.float32),
        "emb_ln_b": jnp.zeros((H,), jnp.float32),
        "wp": nrm(keys[3], (H, H)),
        "bp": jnp.zeros((H,), jnp.float32),
        "wc": nrm(keys[4], (H, NUM_LABELS)),
        "bc": jnp.zeros((NUM_LABELS,), jnp.float32),
        "layers": [],
    }
    for li in range(NUM_LAYERS):
        lk = jax.random.split(keys[8 + li], 6)
        layer = (
            nrm(lk[0], (H, H)), jnp.zeros((H,), jnp.float32),   # wq, bq
            nrm(lk[1], (H, H)), jnp.zeros((H,), jnp.float32),   # wk, bk
            nrm(lk[2], (H, H)), jnp.zeros((H,), jnp.float32),   # wv, bv
            nrm(lk[3], (H, H)), jnp.zeros((H,), jnp.float32),   # wo, bo
            jnp.ones((H,), jnp.float32), jnp.zeros((H,), jnp.float32),   # ln1
            nrm(lk[4], (H, FFN)), jnp.zeros((FFN,), jnp.float32),        # w1, b1
            nrm(lk[5], (FFN, H)), jnp.zeros((H,), jnp.float32),          # w2, b2
            jnp.ones((H,), jnp.float32), jnp.zeros((H,), jnp.float32),   # ln2
        )
        params["layers"].append(layer)
    return params


def _flatten_params(params):
    bf16 = jnp.bfloat16
    flat = [
        params["tok_emb"].astype(bf16),            # (VOCAB, H) bf16 (MXU gather table)
        jnp.tile(params["pos_emb"], (B, 1)),       # (B*S, H) f32
        params["seg_emb"],                         # (TYPE_VOCAB, H) f32
        params["emb_ln_g"].reshape(1, H),
        params["emb_ln_b"].reshape(1, H),
    ]
    for (wq, bq, wk, bk, wv, bv, wo, bo,
         g1, be1, w1, b1, w2, b2, g2, be2) in params["layers"]:
        flat += [
            wq.astype(bf16), bq.reshape(1, H),
            wk.astype(bf16), bk.reshape(1, H),
            wv.astype(bf16), bv.reshape(1, H),
            wo.astype(bf16), bo.reshape(1, H),
            g1.reshape(1, H), be1.reshape(1, H),
            w1.astype(bf16), b1.reshape(1, FFN),
            w2.astype(bf16), b2.reshape(1, H),
            g2.reshape(1, H), be2.reshape(1, H),
        ]
    flat += [
        params["wp"].astype(bf16), params["bp"].reshape(1, H),
        params["wc"].astype(bf16), params["bc"].reshape(1, NUM_LABELS),
    ]
    return flat


# ----------------------------- forward (mirrors FermionModel.forward) -----------------------------
def fermion_forward(params, input_ids, input_mask, segment_ids):
    flat = _flatten_params(params)
    ids2 = input_ids.reshape(B * S, 1).astype(jnp.int32)       # column layout: cheap in-kernel one-hot
    seg2 = segment_ids.reshape(B * S, 1).astype(jnp.int32)
    mask2 = input_mask.astype(jnp.int32)                       # (B, S) raw int mask
    args = (ids2, mask2, seg2, *flat)

    vmem = pl.BlockSpec(memory_space=pltpu.MemorySpace.VMEM)   # whole-array blocks, no grid
    logits = pl.pallas_call(
        fused_fermion_kernel,
        out_shape=jax.ShapeDtypeStruct((B, NUM_LABELS), jnp.float32),
        in_specs=[vmem] * len(args),
        out_specs=vmem,
    )(*args)
    return (logits,)      # matches infer_batched: .to(torch.float32)


if __name__ == "__main__":
    key = jax.random.PRNGKey(0)
    pkey, ikey = jax.random.split(key)
    params = init_params(pkey)

    # deterministic stand-in for the tokenizer output (two "sentences" of length 20 and 12)
    lengths = jnp.array([20, 12], dtype=jnp.int32)
    pos = jnp.arange(S, dtype=jnp.int32)[None, :]
    input_mask = (pos < lengths[:, None]).astype(jnp.int32)          # (B, S)
    rand_ids = jax.random.randint(ikey, (B, S), 1, VOCAB, dtype=jnp.int32)
    input_ids = rand_ids * input_mask                                 # (B, S), 0 = pad
    segment_ids = jnp.zeros((B, S), dtype=jnp.int32)                  # (B, S)

    (out,) = jax.jit(fermion_forward)(params, input_ids, input_mask, segment_ids)
    jax.block_until_ready(out)
    assert out.shape == (B, NUM_LABELS) and out.dtype == jnp.float32
    print("KERNEL_OK")
</pallas_src>

<mosaic_0001>
module attributes {stable_mosaic.version = 11 : i64} {
  func.func @fused_fermion_kernel(%arg0: memref<64x1xi32, #tpu.memory_space<vmem>>, %arg1: memref<2x32xi32, #tpu.memory_space<vmem>>, %arg2: memref<64x1xi32, #tpu.memory_space<vmem>>, %arg3: memref<128x64xbf16, #tpu.memory_space<vmem>>, %arg4: memref<64x64xf32, #tpu.memory_space<vmem>>, %arg5: memref<2x64xf32, #tpu.memory_space<vmem>>, %arg6: memref<1x64xf32, #tpu.memory_space<vmem>>, %arg7: memref<1x64xf32, #tpu.memory_space<vmem>>, %arg8: memref<64x64xbf16, #tpu.memory_space<vmem>>, %arg9: memref<1x64xf32, #tpu.memory_space<vmem>>, %arg10: memref<64x64xbf16, #tpu.memory_space<vmem>>, %arg11: memref<1x64xf32, #tpu.memory_space<vmem>>, %arg12: memref<64x64xbf16, #tpu.memory_space<vmem>>, %arg13: memref<1x64xf32, #tpu.memory_space<vmem>>, %arg14: memref<64x64xbf16, #tpu.memory_space<vmem>>, %arg15: memref<1x64xf32, #tpu.memory_space<vmem>>, %arg16: memref<1x64xf32, #tpu.memory_space<vmem>>, %arg17: memref<1x64xf32, #tpu.memory_space<vmem>>, %arg18: memref<64x128xbf16, #tpu.memory_space<vmem>>, %arg19: memref<1x128xf32, #tpu.memory_space<vmem>>, %arg20: memref<128x64xbf16, #tpu.memory_space<vmem>>, %arg21: memref<1x64xf32, #tpu.memory_space<vmem>>, %arg22: memref<1x64xf32, #tpu.memory_space<vmem>>, %arg23: memref<1x64xf32, #tpu.memory_space<vmem>>, %arg24: memref<64x64xbf16, #tpu.memory_space<vmem>>, %arg25: memref<1x64xf32, #tpu.memory_space<vmem>>, %arg26: memref<64x64xbf16, #tpu.memory_space<vmem>>, %arg27: memref<1x64xf32, #tpu.memory_space<vmem>>, %arg28: memref<64x64xbf16, #tpu.memory_space<vmem>>, %arg29: memref<1x64xf32, #tpu.memory_space<vmem>>, %arg30: memref<64x64xbf16, #tpu.memory_space<vmem>>, %arg31: memref<1x64xf32, #tpu.memory_space<vmem>>, %arg32: memref<1x64xf32, #tpu.memory_space<vmem>>, %arg33: memref<1x64xf32, #tpu.memory_space<vmem>>, %arg34: memref<64x128xbf16, #tpu.memory_space<vmem>>, %arg35: memref<1x128xf32, #tpu.memory_space<vmem>>, %arg36: memref<128x64xbf16, #tpu.memory_space<vmem>>, %arg37: memref<1x64xf32, #tpu.memory_space<vmem>>, %arg38: memref<1x64xf32, #tpu.memory_space<vmem>>, %arg39: memref<1x64xf32, #tpu.memory_space<vmem>>, %arg40: memref<64x64xbf16, #tpu.memory_space<vmem>>, %arg41: memref<1x64xf32, #tpu.memory_space<vmem>>, %arg42: memref<64x2xbf16, #tpu.memory_space<vmem>>, %arg43: memref<1x2xf32, #tpu.memory_space<vmem>>, %arg44: memref<2x2xf32, #tpu.memory_space<vmem>>) attributes {dimension_semantics = [], scalar_prefetch = 0 : i64, scratch_operands = 0 : i64, tpu.core_type = #tpu.core_type<tc>} {
    %c0 = arith.constant 0 : index
    %c0_0 = arith.constant 0 : index
    %0 = vector.load %arg0[%c0, %c0_0] : memref<64x1xi32, #tpu.memory_space<vmem>>, vector<64x1xi32>
    %1 = tpu.iota {dimensions = array<i32: 1>} : vector<64x128xi32>
    %2 = vector.broadcast %0 : vector<64x1xi32> to vector<64x128xi32>
    %3 = arith.cmpi eq, %2, %1 : vector<64x128xi32>
    %4 = arith.extui %3 : vector<64x128xi1> to vector<64x128xi32>
    %5 = arith.sitofp %4 : vector<64x128xi32> to vector<64x128xf32>
    %6 = arith.truncf %5 : vector<64x128xf32> to vector<64x128xbf16>
    %c0_1 = arith.constant 0 : index
    %c0_2 = arith.constant 0 : index
    %7 = vector.load %arg3[%c0_1, %c0_2] : memref<128x64xbf16, #tpu.memory_space<vmem>>, vector<128x64xbf16>
    %cst = arith.constant dense<0.000000e+00> : vector<64x64xf32>
    %8 = tpu.matmul %6, %7, %cst {dimension_numbers = #tpu.dot_dimension_numbers<[1], [0], [0], [1], [0, 0, 1, 1], [], []>} : vector<64x128xbf16>, vector<128x64xbf16>, vector<64x64xf32> -> vector<64x64xf32>
    %c0_3 = arith.constant 0 : index
    %c0_4 = arith.constant 0 : index
    %9 = vector.load %arg2[%c0_3, %c0_4] : memref<64x1xi32, #tpu.memory_space<vmem>>, vector<64x1xi32>
    %c0_i32 = arith.constant 0 : i32
    %10 = vector.broadcast %c0_i32 : i32 to vector<64x1xi32>
    %11 = arith.cmpi eq, %9, %10 : vector<64x1xi32>
    %c0_5 = arith.constant 0 : index
    %c0_6 = arith.constant 0 : index
    %12 = vector.load %arg5[%c0_5, %c0_6] : memref<2x64xf32, #tpu.memory_space<vmem>>, vector<1x64xf32>
    %c1 = arith.constant 1 : index
    %c0_7 = arith.constant 0 : index
    %13 = vector.load %arg5[%c1, %c0_7] : memref<2x64xf32, #tpu.memory_space<vmem>>, vector<1x64xf32>
    %14 = vector.shape_cast %11 : vector<64x1xi1> to vector<64x1xi1>
    %15 = vector.broadcast %14 : vector<64x1xi1> to vector<64x64xi1>
    %16 = vector.shape_cast %12 : vector<1x64xf32> to vector<1x64xf32>
    %17 = vector.broadcast %16 : vector<1x64xf32> to vector<64x64xf32>
    %18 = vector.shape_cast %13 : vector<1x64xf32> to vector<1x64xf32>
    %19 = vector.broadcast %18 : vector<1x64xf32> to vector<64x64xf32>
    %20 = arith.select %15, %17, %19 : vector<64x64xi1>, vector<64x64xf32>
    %c0_8 = arith.constant 0 : index
    %c0_9 = arith.constant 0 : index
    %21 = vector.load %arg4[%c0_8, %c0_9] : memref<64x64xf32, #tpu.memory_space<vmem>>, vector<64x64xf32>
    %22 = arith.addf %8, %21 : vector<64x64xf32>
    %23 = arith.addf %22, %20 : vector<64x64xf32>
    %c0_10 = arith.constant 0 : index
    %c0_11 = arith.constant 0 : index
    %24 = vector.load %arg6[%c0_10, %c0_11] : memref<1x64xf32, #tpu.memory_space<vmem>>, vector<1x64xf32>
    %c0_12 = arith.constant 0 : index
    %c0_13 = arith.constant 0 : index
    %25 = vector.load %arg7[%c0_12, %c0_13] : memref<1x64xf32, #tpu.memory_space<vmem>>, vector<1x64xf32>
    %cst_14 = arith.constant dense<0.000000e+00> : vector<64xf32>
    %26 = vector.multi_reduction <add>, %23, %cst_14 [1] : vector<64x64xf32> to vector<64xf32>
    %27 = vector.shape_cast %26 : vector<64xf32> to vector<64x1xf32>
    %cst_15 = arith.constant 6.400000e+01 : f32
    %28 = vector.broadcast %cst_15 : f32 to vector<64x1xf32>
    %29 = arith.divf %27, %28 : vector<64x1xf32>
    %30 = vector.broadcast %29 : vector<64x1xf32> to vector<64x64xf32>
    %31 = arith.subf %23, %30 : vector<64x64xf32>
    %32 = arith.mulf %31, %31 : vector<64x64xf32>
    %cst_16 = arith.constant dense<0.000000e+00> : vector<64xf32>
    %33 = vector.multi_reduction <add>, %32, %cst_16 [1] : vector<64x64xf32> to vector<64xf32>
    %34 = vector.shape_cast %33 : vector<64xf32> to vector<64x1xf32>
    %cst_17 = arith.constant 6.400000e+01 : f32
    %35 = vector.broadcast %cst_17 : f32 to vector<64x1xf32>
    %36 = arith.divf %34, %35 : vector<64x1xf32>
    %37 = vector.broadcast %29 : vector<64x1xf32> to vector<64x64xf32>
    %38 = arith.subf %23, %37 : vector<64x64xf32>
    %cst_18 = arith.constant 9.99999996E-13 : f32
    %39 = vector.broadcast %cst_18 : f32 to vector<64x1xf32>
    %40 = arith.addf %36, %39 : vector<64x1xf32>
    %41 = math.rsqrt %40 : vector<64x1xf32>
    %42 = vector.broadcast %41 : vector<64x1xf32> to vector<64x64xf32>
    %43 = arith.mulf %38, %42 : vector<64x64xf32>
    %44 = vector.broadcast %24 : vector<1x64xf32> to vector<64x64xf32>
    %45 = arith.mulf %43, %44 : vector<64x64xf32>
    %46 = vector.broadcast %25 : vector<1x64xf32> to vector<64x64xf32>
    %47 = arith.addf %45, %46 : vector<64x64xf32>
    %c0_19 = arith.constant 0 : index
    %c0_20 = arith.constant 0 : index
    %48 = vector.load %arg1[%c0_19, %c0_20] : memref<2x32xi32, #tpu.memory_space<vmem>>, vector<2x32xi32>
    %49 = arith.sitofp %48 : vector<2x32xi32> to vector<2x32xf32>
    %cst_21 = arith.constant 1.000000e+00 : f32
    %50 = vector.broadcast %cst_21 : f32 to vector<2x32xf32>
    %51 = arith.subf %50, %49 : vector<2x32xf32>
    %cst_22 = arith.constant -1.000000e+09 : f32
    %52 = vector.broadcast %cst_22 : f32 to vector<2x32xf32>
    %53 = arith.mulf %51, %52 : vector<2x32xf32>
    %c0_23 = arith.constant 0 : index
    %c0_24 = arith.constant 0 : index
    %54 = vector.load %arg8[%c0_23, %c0_24] : memref<64x64xbf16, #tpu.memory_space<vmem>>, vector<64x64xbf16>
    %c0_25 = arith.constant 0 : index
    %c0_26 = arith.constant 0 : index
    %55 = vector.load %arg9[%c0_25, %c0_26] : memref<1x64xf32, #tpu.memory_space<vmem>>, vector<1x64xf32>
    %c0_27 = arith.constant 0 : index
    %c0_28 = arith.constant 0 : index
    %56 = vector.load %arg10[%c0_27, %c0_28] : memref<64x64xbf16, #tpu.memory_space<vmem>>, vector<64x64xbf16>
    %c0_29 = arith.constant 0 : index
    %c0_30 = arith.constant 0 : index
    %57 = vector.load %arg11[%c0_29, %c0_30] : memref<1x64xf32, #tpu.memory_space<vmem>>, vector<1x64xf32>
    %c0_31 = arith.constant 0 : index
    %c0_32 = arith.constant 0 : index
    %58 = vector.load %arg12[%c0_31, %c0_32] : memref<64x64xbf16, #tpu.memory_space<vmem>>, vector<64x64xbf16>
    %c0_33 = arith.constant 0 : index
    %c0_34 = arith.constant 0 : index
    %59 = vector.load %arg13[%c0_33, %c0_34] : memref<1x64xf32, #tpu.memory_space<vmem>>, vector<1x64xf32>
    %c0_35 = arith.constant 0 : index
    %c0_36 = arith.constant 0 : index
    %60 = vector.load %arg14[%c0_35, %c0_36] : memref<64x64xbf16, #tpu.memory_space<vmem>>, vector<64x64xbf16>
    %c0_37 = arith.constant 0 : index
    %c0_38 = arith.constant 0 : index
    %61 = vector.load %arg15[%c0_37, %c0_38] : memref<1x64xf32, #tpu.memory_space<vmem>>, vector<1x64xf32>
    %c0_39 = arith.constant 0 : index
    %c0_40 = arith.constant 0 : index
    %62 = vector.load %arg16[%c0_39, %c0_40] : memref<1x64xf32, #tpu.memory_space<vmem>>, vector<1x64xf32>
    %c0_41 = arith.constant 0 : index
    %c0_42 = arith.constant 0 : index
    %63 = vector.load %arg17[%c0_41, %c0_42] : memref<1x64xf32, #tpu.memory_space<vmem>>, vector<1x64xf32>
    %c0_43 = arith.constant 0 : index
    %c0_44 = arith.constant 0 : index
    %64 = vector.load %arg18[%c0_43, %c0_44] : memref<64x128xbf16, #tpu.memory_space<vmem>>, vector<64x128xbf16>
    %c0_45 = arith.constant 0 : index
    %c0_46 = arith.constant 0 : index
    %65 = vector.load %arg19[%c0_45, %c0_46] : memref<1x128xf32, #tpu.memory_space<vmem>>, vector<1x128xf32>
    %c0_47 = arith.constant 0 : index
    %c0_48 = arith.constant 0 : index
    %66 = vector.load %arg20[%c0_47, %c0_48] : memref<128x64xbf16, #tpu.memory_space<vmem>>, vector<128x64xbf16>
    %c0_49 = arith.constant 0 : index
    %c0_50 = arith.constant 0 : index
    %67 = vector.load %arg21[%c0_49, %c0_50] : memref<1x64xf32, #tpu.memory_space<vmem>>, vector<1x64xf32>
    %c0_51 = arith.constant 0 : index
    %c0_52 = arith.constant 0 : index
    %68 = vector.load %arg22[%c0_51, %c0_52] : memref<1x64xf32, #tpu.memory_space<vmem>>, vector<1x64xf32>
    %c0_53 = arith.constant 0 : index
    %c0_54 = arith.constant 0 : index
    %69 = vector.load %arg23[%c0_53, %c0_54] : memref<1x64xf32, #tpu.memory_space<vmem>>, vector<1x64xf32>
    %70 = arith.truncf %47 : vector<64x64xf32> to vector<64x64xbf16>
    %cst_55 = arith.constant dense<0.000000e+00> : vector<64x64xf32>
    %71 = tpu.matmul %70, %54, %cst_55 {dimension_numbers = #tpu.dot_dimension_numbers<[1], [0], [0], [1], [0, 0, 1, 1], [], []>} : vector<64x64xbf16>, vector<64x64xbf16>, vector<64x64xf32> -> vector<64x64xf32>
    %72 = vector.broadcast %55 : vector<1x64xf32> to vector<64x64xf32>
    %73 = arith.addf %71, %72 : vector<64x64xf32>
    %cst_56 = arith.constant 2.500000e-01 : f32
    %74 = vector.broadcast %cst_56 : f32 to vector<64x64xf32>
    %75 = arith.mulf %73, %74 : vector<64x64xf32>
    %cst_57 = arith.constant dense<0.000000e+00> : vector<64x64xf32>
    %76 = tpu.matmul %70, %56, %cst_57 {dimension_numbers = #tpu.dot_dimension_numbers<[1], [0], [0], [1], [0, 0, 1, 1], [], []>} : vector<64x64xbf16>, vector<64x64xbf16>, vector<64x64xf32> -> vector<64x64xf32>
    %77 = vector.broadcast %57 : vector<1x64xf32> to vector<64x64xf32>
    %78 = arith.addf %76, %77 : vector<64x64xf32>
    %cst_58 = arith.constant dense<0.000000e+00> : vector<64x64xf32>
    %79 = tpu.matmul %70, %58, %cst_58 {dimension_numbers = #tpu.dot_dimension_numbers<[1], [0], [0], [1], [0, 0, 1, 1], [], []>} : vector<64x64xbf16>, vector<64x64xbf16>, vector<64x64xf32> -> vector<64x64xf32>
    %80 = vector.broadcast %59 : vector<1x64xf32> to vector<64x64xf32>
    %81 = arith.addf %79, %80 : vector<64x64xf32>
    %82 = vector.extract_strided_slice %53 {offsets = [0, 0], sizes = [1, 32], strides = [1, 1]} : vector<2x32xf32> to vector<1x32xf32>
    %83 = vector.extract_strided_slice %75 {offsets = [0, 0], sizes = [32, 16], strides = [1, 1]} : vector<64x64xf32> to vector<32x16xf32>
    %84 = arith.truncf %83 : vector<32x16xf32> to vector<32x16xbf16>
    %85 = vector.extract_strided_slice %78 {offsets = [0, 0], sizes = [32, 16], strides = [1, 1]} : vector<64x64xf32> to vector<32x16xf32>
    %86 = arith.truncf %85 : vector<32x16xf32> to vector<32x16xbf16>
    %87 = vector.extract_strided_slice %81 {offsets = [0, 0], sizes = [32, 16], strides = [1, 1]} : vector<64x64xf32> to vector<32x16xf32>
    %88 = arith.truncf %87 : vector<32x16xf32> to vector<32x16xbf16>
    %cst_59 = arith.constant dense<0.000000e+00> : vector<32x32xf32>
    %89 = tpu.matmul %84, %86, %cst_59 {dimension_numbers = #tpu.dot_dimension_numbers<[1], [1], [0], [0], [0, 0, 1, 0], [], []>} : vector<32x16xbf16>, vector<32x16xbf16>, vector<32x32xf32> -> vector<32x32xf32>
    %90 = vector.broadcast %82 : vector<1x32xf32> to vector<32x32xf32>
    %91 = arith.addf %89, %90 : vector<32x32xf32>
    %cst_60 = arith.constant dense<0xFF800000> : vector<32xf32>
    %92 = vector.multi_reduction <maximumf>, %91, %cst_60 [1] : vector<32x32xf32> to vector<32xf32>
    %93 = vector.shape_cast %92 : vector<32xf32> to vector<32x1xf32>
    %94 = vector.broadcast %93 : vector<32x1xf32> to vector<32x32xf32>
    %95 = arith.subf %91, %94 : vector<32x32xf32>
    %96 = math.exp %95 : vector<32x32xf32>
    %cst_61 = arith.constant dense<0.000000e+00> : vector<32xf32>
    %97 = vector.multi_reduction <add>, %96, %cst_61 [1] : vector<32x32xf32> to vector<32xf32>
    %98 = vector.shape_cast %97 : vector<32xf32> to vector<32x1xf32>
    %99 = tpu.reciprocal %98 {approx = true} : vector<32x1xf32> -> vector<32x1xf32>
    %100 = vector.broadcast %99 : vector<32x1xf32> to vector<32x32xf32>
    %101 = arith.mulf %96, %100 : vector<32x32xf32>
    %102 = arith.truncf %101 : vector<32x32xf32> to vector<32x32xbf16>
    %cst_62 = arith.constant dense<0.000000e+00> : vector<32x16xf32>
    %103 = tpu.matmul %102, %88, %cst_62 {dimension_numbers = #tpu.dot_dimension_numbers<[1], [0], [0], [1], [0, 0, 1, 1], [], []>} : vector<32x32xbf16>, vector<32x16xbf16>, vector<32x16xf32> -> vector<32x16xf32>
    %104 = vector.extract_strided_slice %75 {offsets = [0, 16], sizes = [32, 16], strides = [1, 1]} : vector<64x64xf32> to vector<32x16xf32>
    %105 = arith.truncf %104 : vector<32x16xf32> to vector<32x16xbf16>
    %106 = vector.extract_strided_slice %78 {offsets = [0, 16], sizes = [32, 16], strides = [1, 1]} : vector<64x64xf32> to vector<32x16xf32>
    %107 = arith.truncf %106 : vector<32x16xf32> to vector<32x16xbf16>
    %108 = vector.extract_strided_slice %81 {offsets = [0, 16], sizes = [32, 16], strides = [1, 1]} : vector<64x64xf32> to vector<32x16xf32>
    %109 = arith.truncf %108 : vector<32x16xf32> to vector<32x16xbf16>
    %cst_63 = arith.constant dense<0.000000e+00> : vector<32x32xf32>
    %110 = tpu.matmul %105, %107, %cst_63 {dimension_numbers = #tpu.dot_dimension_numbers<[1], [1], [0], [0], [0, 0, 1, 0], [], []>} : vector<32x16xbf16>, vector<32x16xbf16>, vector<32x32xf32> -> vector<32x32xf32>
    %111 = vector.broadcast %82 : vector<1x32xf32> to vector<32x32xf32>
    %112 = arith.addf %110, %111 : vector<32x32xf32>
    %cst_64 = arith.constant dense<0xFF800000> : vector<32xf32>
    %113 = vector.multi_reduction <maximumf>, %112, %cst_64 [1] : vector<32x32xf32> to vector<32xf32>
    %114 = vector.shape_cast %113 : vector<32xf32> to vector<32x1xf32>
    %115 = vector.broadcast %114 : vector<32x1xf32> to vector<32x32xf32>
    %116 = arith.subf %112, %115 : vector<32x32xf32>
    %117 = math.exp %116 : vector<32x32xf32>
    %cst_65 = arith.constant dense<0.000000e+00> : vector<32xf32>
    %118 = vector.multi_reduction <add>, %117, %cst_65 [1] : vector<32x32xf32> to vector<32xf32>
    %119 = vector.shape_cast %118 : vector<32xf32> to vector<32x1xf32>
    %120 = tpu.reciprocal %119 {approx = true} : vector<32x1xf32> -> vector<32x1xf32>
    %121 = vector.broadcast %120 : vector<32x1xf32> to vector<32x32xf32>
    %122 = arith.mulf %117, %121 : vector<32x32xf32>
    %123 = arith.truncf %122 : vector<32x32xf32> to vector<32x32xbf16>
    %cst_66 = arith.constant dense<0.000000e+00> : vector<32x16xf32>
    %124 = tpu.matmul %123, %109, %cst_66 {dimension_numbers = #tpu.dot_dimension_numbers<[1], [0], [0], [1], [0, 0, 1, 1], [], []>} : vector<32x32xbf16>, vector<32x16xbf16>, vector<32x16xf32> -> vector<32x16xf32>
    %125 = vector.extract_strided_slice %75 {offsets = [0, 32], sizes = [32, 16], strides = [1, 1]} : vector<64x64xf32> to vector<32x16xf32>
    %126 = arith.truncf %125 : vector<32x16xf32> to vector<32x16xbf16>
    %127 = vector.extract_strided_slice %78 {offsets = [0, 32], sizes = [32, 16], strides = [1, 1]} : vector<64x64xf32> to vector<32x16xf32>
    %128 = arith.truncf %127 : vector<32x16xf32> to vector<32x16xbf16>
    %129 = vector.extract_strided_slice %81 {offsets = [0, 32], sizes = [32, 16], strides = [1, 1]} : vector<64x64xf32> to vector<32x16xf32>
    %130 = arith.truncf %129 : vector<32x16xf32> to vector<32x16xbf16>
    %cst_67 = arith.constant dense<0.000000e+00> : vector<32x32xf32>
    %131 = tpu.matmul %126, %128, %cst_67 {dimension_numbers = #tpu.dot_dimension_numbers<[1], [1], [0], [0], [0, 0, 1, 0], [], []>} : vector<32x16xbf16>, vector<32x16xbf16>, vector<32x32xf32> -> vector<32x32xf32>
    %132 = vector.broadcast %82 : vector<1x32xf32> to vector<32x32xf32>
    %133 = arith.addf %131, %132 : vector<32x32xf32>
    %cst_68 = arith.constant dense<0xFF800000> : vector<32xf32>
    %134 = vector.multi_reduction <maximumf>, %133, %cst_68 [1] : vector<32x32xf32> to vector<32xf32>
    %135 = vector.shape_cast %134 : vector<32xf32> to vector<32x1xf32>
    %136 = vector.broadcast %135 : vector<32x1xf32> to vector<32x32xf32>
    %137 = arith.subf %133, %136 : vector<32x32xf32>
    %138 = math.exp %137 : vector<32x32xf32>
    %cst_69 = arith.constant dense<0.000000e+00> : vector<32xf32>
    %139 = vector.multi_reduction <add>, %138, %cst_69 [1] : vector<32x32xf32> to vector<32xf32>
    %140 = vector.shape_cast %139 : vector<32xf32> to vector<32x1xf32>
    %141 = tpu.reciprocal %140 {approx = true} : vector<32x1xf32> -> vector<32x1xf32>
    %142 = vector.broadcast %141 : vector<32x1xf32> to vector<32x32xf32>
    %143 = arith.mulf %138, %142 : vector<32x32xf32>
    %144 = arith.truncf %143 : vector<32x32xf32> to vector<32x32xbf16>
    %cst_70 = arith.constant dense<0.000000e+00> : vector<32x16xf32>
    %145 = tpu.matmul %144, %130, %cst_70 {dimension_numbers = #tpu.dot_dimension_numbers<[1], [0], [0], [1], [0, 0, 1, 1], [], []>} : vector<32x32xbf16>, vector<32x16xbf16>, vector<32x16xf32> -> vector<32x16xf32>
    %146 = vector.extract_strided_slice %75 {offsets = [0, 48], sizes = [32, 16], strides = [1, 1]} : vector<64x64xf32> to vector<32x16xf32>
    %147 = arith.truncf %146 : vector<32x16xf32> to vector<32x16xbf16>
    %148 = vector.extract_strided_slice %78 {offsets = [0, 48], sizes = [32, 16], strides = [1, 1]} : vector<64x64xf32> to vector<32x16xf32>
    %149 = arith.truncf %148 : vector<32x16xf32> to vector<32x16xbf16>
    %150 = vector.extract_strided_slice %81 {offsets = [0, 48], sizes = [32, 16], strides = [1, 1]} : vector<64x64xf32> to vector<32x16xf32>
    %151 = arith.truncf %150 : vector<32x16xf32> to vector<32x16xbf16>
    %cst_71 = arith.constant dense<0.000000e+00> : vector<32x32xf32>
    %152 = tpu.matmul %147, %149, %cst_71 {dimension_numbers = #tpu.dot_dimension_numbers<[1], [1], [0], [0], [0, 0, 1, 0], [], []>} : vector<32x16xbf16>, vector<32x16xbf16>, vector<32x32xf32> -> vector<32x32xf32>
    %153 = vector.broadcast %82 : vector<1x32xf32> to vector<32x32xf32>
    %154 = arith.addf %152, %153 : vector<32x32xf32>
    %cst_72 = arith.constant dense<0xFF800000> : vector<32xf32>
    %155 = vector.multi_reduction <maximumf>, %154, %cst_72 [1] : vector<32x32xf32> to vector<32xf32>
    %156 = vector.shape_cast %155 : vector<32xf32> to vector<32x1xf32>
    %157 = vector.broadcast %156 : vector<32x1xf32> to vector<32x32xf32>
    %158 = arith.subf %154, %157 : vector<32x32xf32>
    %159 = math.exp %158 : vector<32x32xf32>
    %cst_73 = arith.constant dense<0.000000e+00> : vector<32xf32>
    %160 = vector.multi_reduction <add>, %159, %cst_73 [1] : vector<32x32xf32> to vector<32xf32>
    %161 = vector.shape_cast %160 : vector<32xf32> to vector<32x1xf32>
    %162 = tpu.reciprocal %161 {approx = true} : vector<32x1xf32> -> vector<32x1xf32>
    %163 = vector.broadcast %162 : vector<32x1xf32> to vector<32x32xf32>
    %164 = arith.mulf %159, %163 : vector<32x32xf32>
    %165 = arith.truncf %164 : vector<32x32xf32> to vector<32x32xbf16>
    %cst_74 = arith.constant dense<0.000000e+00> : vector<32x16xf32>
    %166 = tpu.matmul %165, %151, %cst_74 {dimension_numbers = #tpu.dot_dimension_numbers<[1], [0], [0], [1], [0, 0, 1, 1], [], []>} : vector<32x32xbf16>, vector<32x16xbf16>, vector<32x16xf32> -> vector<32x16xf32>
    %167 = tpu.concatenate %103, %124, %145, %166 in 1 : vector<32x16xf32>, vector<32x16xf32>, vector<32x16xf32>, vector<32x16xf32> -> vector<32x64xf32>
    %168 = vector.extract_strided_slice %53 {offsets = [1, 0], sizes = [1, 32], strides = [1, 1]} : vector<2x32xf32> to vector<1x32xf32>
    %169 = vector.extract_strided_slice %75 {offsets = [32, 0], sizes = [32, 16], strides = [1, 1]} : vector<64x64xf32> to vector<32x16xf32>
    %170 = arith.truncf %169 : vector<32x16xf32> to vector<32x16xbf16>
    %171 = vector.extract_strided_slice %78 {offsets = [32, 0], sizes = [32, 16], strides = [1, 1]} : vector<64x64xf32> to vector<32x16xf32>
    %172 = arith.truncf %171 : vector<32x16xf32> to vector<32x16xbf16>
    %173 = vector.extract_strided_slice %81 {offsets = [32, 0], sizes = [32, 16], strides = [1, 1]} : vector<64x64xf32> to vector<32x16xf32>
    %174 = arith.truncf %173 : vector<32x16xf32> to vector<32x16xbf16>
    %cst_75 = arith.constant dense<0.000000e+00> : vector<32x32xf32>
    %175 = tpu.matmul %170, %172, %cst_75 {dimension_numbers = #tpu.dot_dimension_numbers<[1], [1], [0], [0], [0, 0, 1, 0], [], []>} : vector<32x16xbf16>, vector<32x16xbf16>, vector<32x32xf32> -> vector<32x32xf32>
    %176 = vector.broadcast %168 : vector<1x32xf32> to vector<32x32xf32>
    %177 = arith.addf %175, %176 : vector<32x32xf32>
    %cst_76 = arith.constant dense<0xFF800000> : vector<32xf32>
    %178 = vector.multi_reduction <maximumf>, %177, %cst_76 [1] : vector<32x32xf32> to vector<32xf32>
    %179 = vector.shape_cast %178 : vector<32xf32> to vector<32x1xf32>
    %180 = vector.broadcast %179 : vector<32x1xf32> to vector<32x32xf32>
    %181 = arith.subf %177, %180 : vector<32x32xf32>
    %182 = math.exp %181 : vector<32x32xf32>
    %cst_77 = arith.constant dense<0.000000e+00> : vector<32xf32>
    %183 = vector.multi_reduction <add>, %182, %cst_77 [1] : vector<32x32xf32> to vector<32xf32>
    %184 = vector.shape_cast %183 : vector<32xf32> to vector<32x1xf32>
    %185 = tpu.reciprocal %184 {approx = true} : vector<32x1xf32> -> vector<32x1xf32>
    %186 = vector.broadcast %185 : vector<32x1xf32> to vector<32x32xf32>
    %187 = arith.mulf %182, %186 : vector<32x32xf32>
    %188 = arith.truncf %187 : vector<32x32xf32> to vector<32x32xbf16>
    %cst_78 = arith.constant dense<0.000000e+00> : vector<32x16xf32>
    %189 = tpu.matmul %188, %174, %cst_78 {dimension_numbers = #tpu.dot_dimension_numbers<[1], [0], [0], [1], [0, 0, 1, 1], [], []>} : vector<32x32xbf16>, vector<32x16xbf16>, vector<32x16xf32> -> vector<32x16xf32>
    %190 = vector.extract_strided_slice %75 {offsets = [32, 16], sizes = [32, 16], strides = [1, 1]} : vector<64x64xf32> to vector<32x16xf32>
    %191 = arith.truncf %190 : vector<32x16xf32> to vector<32x16xbf16>
    %192 = vector.extract_strided_slice %78 {offsets = [32, 16], sizes = [32, 16], strides = [1, 1]} : vector<64x64xf32> to vector<32x16xf32>
    %193 = arith.truncf %192 : vector<32x16xf32> to vector<32x16xbf16>
    %194 = vector.extract_strided_slice %81 {offsets = [32, 16], sizes = [32, 16], strides = [1, 1]} : vector<64x64xf32> to vector<32x16xf32>
    %195 = arith.truncf %194 : vector<32x16xf32> to vector<32x16xbf16>
    %cst_79 = arith.constant dense<0.000000e+00> : vector<32x32xf32>
    %196 = tpu.matmul %191, %193, %cst_79 {dimension_numbers = #tpu.dot_dimension_numbers<[1], [1], [0], [0], [0, 0, 1, 0], [], []>} : vector<32x16xbf16>, vector<32x16xbf16>, vector<32x32xf32> -> vector<32x32xf32>
    %197 = vector.broadcast %168 : vector<1x32xf32> to vector<32x32xf32>
    %198 = arith.addf %196, %197 : vector<32x32xf32>
    %cst_80 = arith.constant dense<0xFF800000> : vector<32xf32>
    %199 = vector.multi_reduction <maximumf>, %198, %cst_80 [1] : vector<32x32xf32> to vector<32xf32>
    %200 = vector.shape_cast %199 : vector<32xf32> to vector<32x1xf32>
    %201 = vector.broadcast %200 : vector<32x1xf32> to vector<32x32xf32>
    %202 = arith.subf %198, %201 : vector<32x32xf32>
    %203 = math.exp %202 : vector<32x32xf32>
    %cst_81 = arith.constant dense<0.000000e+00> : vector<32xf32>
    %204 = vector.multi_reduction <add>, %203, %cst_81 [1] : vector<32x32xf32> to vector<32xf32>
    %205 = vector.shape_cast %204 : vector<32xf32> to vector<32x1xf32>
    %206 = tpu.reciprocal %205 {approx = true} : vector<32x1xf32> -> vector<32x1xf32>
    %207 = vector.broadcast %206 : vector<32x1xf32> to vector<32x32xf32>
    %208 = arith.mulf %203, %207 : vector<32x32xf32>
    %209 = arith.truncf %208 : vector<32x32xf32> to vector<32x32xbf16>
    %cst_82 = arith.constant dense<0.000000e+00> : vector<32x16xf32>
    %210 = tpu.matmul %209, %195, %cst_82 {dimension_numbers = #tpu.dot_dimension_numbers<[1], [0], [0], [1], [0, 0, 1, 1], [], []>} : vector<32x32xbf16>, vector<32x16xbf16>, vector<32x16xf32> -> vector<32x16xf32>
    %211 = vector.extract_strided_slice %75 {offsets = [32, 32], sizes = [32, 16], strides = [1, 1]} : vector<64x64xf32> to vector<32x16xf32>
    %212 = arith.truncf %211 : vector<32x16xf32> to vector<32x16xbf16>
    %213 = vector.extract_strided_slice %78 {offsets = [32, 32], sizes = [32, 16], strides = [1, 1]} : vector<64x64xf32> to vector<32x16xf32>
    %214 = arith.truncf %213 : vector<32x16xf32> to vector<32x16xbf16>
    %215 = vector.extract_strided_slice %81 {offsets = [32, 32], sizes = [32, 16], strides = [1, 1]} : vector<64x64xf32> to vector<32x16xf32>
    %216 = arith.truncf %215 : vector<32x16xf32> to vector<32x16xbf16>
    %cst_83 = arith.constant dense<0.000000e+00> : vector<32x32xf32>
    %217 = tpu.matmul %212, %214, %cst_83 {dimension_numbers = #tpu.dot_dimension_numbers<[1], [1], [0], [0], [0, 0, 1, 0], [], []>} : vector<32x16xbf16>, vector<32x16xbf16>, vector<32x32xf32> -> vector<32x32xf32>
    %218 = vector.broadcast %168 : vector<1x32xf32> to vector<32x32xf32>
    %219 = arith.addf %217, %218 : vector<32x32xf32>
    %cst_84 = arith.constant dense<0xFF800000> : vector<32xf32>
    %220 = vector.multi_reduction <maximumf>, %219, %cst_84 [1] : vector<32x32xf32> to vector<32xf32>
    %221 = vector.shape_cast %220 : vector<32xf32> to vector<32x1xf32>
    %222 = vector.broadcast %221 : vector<32x1xf32> to vector<32x32xf32>
    %223 = arith.subf %219, %222 : vector<32x32xf32>
    %224 = math.exp %223 : vector<32x32xf32>
    %cst_85 = arith.constant dense<0.000000e+00> : vector<32xf32>
    %225 = vector.multi_reduction <add>, %224, %cst_85 [1] : vector<32x32xf32> to vector<32xf32>
    %226 = vector.shape_cast %225 : vector<32xf32> to vector<32x1xf32>
    %227 = tpu.reciprocal %226 {approx = true} : vector<32x1xf32> -> vector<32x1xf32>
    %228 = vector.broadcast %227 : vector<32x1xf32> to vector<32x32xf32>
    %229 = arith.mulf %224, %228 : vector<32x32xf32>
    %230 = arith.truncf %229 : vector<32x32xf32> to vector<32x32xbf16>
    %cst_86 = arith.constant dense<0.000000e+00> : vector<32x16xf32>
    %231 = tpu.matmul %230, %216, %cst_86 {dimension_numbers = #tpu.dot_dimension_numbers<[1], [0], [0], [1], [0, 0, 1, 1], [], []>} : vector<32x32xbf16>, vector<32x16xbf16>, vector<32x16xf32> -> vector<32x16xf32>
    %232 = vector.extract_strided_slice %75 {offsets = [32, 48], sizes = [32, 16], strides = [1, 1]} : vector<64x64xf32> to vector<32x16xf32>
    %233 = arith.truncf %232 : vector<32x16xf32> to vector<32x16xbf16>
    %234 = vector.extract_strided_slice %78 {offsets = [32, 48], sizes = [32, 16], strides = [1, 1]} : vector<64x64xf32> to vector<32x16xf32>
    %235 = arith.truncf %234 : vector<32x16xf32> to vector<32x16xbf16>
    %236 = vector.extract_strided_slice %81 {offsets = [32, 48], sizes = [32, 16], strides = [1, 1]} : vector<64x64xf32> to vector<32x16xf32>
    %237 = arith.truncf %236 : vector<32x16xf32> to vector<32x16xbf16>
    %cst_87 = arith.constant dense<0.000000e+00> : vector<32x32xf32>
    %238 = tpu.matmul %233, %235, %cst_87 {dimension_numbers = #tpu.dot_dimension_numbers<[1], [1], [0], [0], [0, 0, 1, 0], [], []>} : vector<32x16xbf16>, vector<32x16xbf16>, vector<32x32xf32> -> vector<32x32xf32>
    %239 = vector.broadcast %168 : vector<1x32xf32> to vector<32x32xf32>
    %240 = arith.addf %238, %239 : vector<32x32xf32>
    %cst_88 = arith.constant dense<0xFF800000> : vector<32xf32>
    %241 = vector.multi_reduction <maximumf>, %240, %cst_88 [1] : vector<32x32xf32> to vector<32xf32>
    %242 = vector.shape_cast %241 : vector<32xf32> to vector<32x1xf32>
    %243 = vector.broadcast %242 : vector<32x1xf32> to vector<32x32xf32>
    %244 = arith.subf %240, %243 : vector<32x32xf32>
    %245 = math.exp %244 : vector<32x32xf32>
    %cst_89 = arith.constant dense<0.000000e+00> : vector<32xf32>
    %246 = vector.multi_reduction <add>, %245, %cst_89 [1] : vector<32x32xf32> to vector<32xf32>
    %247 = vector.shape_cast %246 : vector<32xf32> to vector<32x1xf32>
    %248 = tpu.reciprocal %247 {approx = true} : vector<32x1xf32> -> vector<32x1xf32>
    %249 = vector.broadcast %248 : vector<32x1xf32> to vector<32x32xf32>
    %250 = arith.mulf %245, %249 : vector<32x32xf32>
    %251 = arith.truncf %250 : vector<32x32xf32> to vector<32x32xbf16>
    %cst_90 = arith.constant dense<0.000000e+00> : vector<32x16xf32>
    %252 = tpu.matmul %251, %237, %cst_90 {dimension_numbers = #tpu.dot_dimension_numbers<[1], [0], [0], [1], [0, 0, 1, 1], [], []>} : vector<32x32xbf16>, vector<32x16xbf16>, vector<32x16xf32> -> vector<32x16xf32>
    %253 = tpu.concatenate %189, %210, %231, %252 in 1 : vector<32x16xf32>, vector<32x16xf32>, vector<32x16xf32>, vector<32x16xf32> -> vector<32x64xf32>
    %254 = tpu.concatenate %167, %253 in 0 : vector<32x64xf32>, vector<32x64xf32> -> vector<64x64xf32>
    %255 = arith.truncf %254 : vector<64x64xf32> to vector<64x64xbf16>
    %cst_91 = arith.constant dense<0.000000e+00> : vector<64x64xf32>
    %256 = tpu.matmul %255, %60, %cst_91 {dimension_numbers = #tpu.dot_dimension_numbers<[1], [0], [0], [1], [0, 0, 1, 1], [], []>} : vector<64x64xbf16>, vector<64x64xbf16>, vector<64x64xf32> -> vector<64x64xf32>
    %257 = vector.broadcast %61 : vector<1x64xf32> to vector<64x64xf32>
    %258 = arith.addf %256, %257 : vector<64x64xf32>
    %259 = arith.addf %47, %258 : vector<64x64xf32>
    %cst_92 = arith.constant dense<0.000000e+00> : vector<64xf32>
    %260 = vector.multi_reduction <add>, %259, %cst_92 [1] : vector<64x64xf32> to vector<64xf32>
    %261 = vector.shape_cast %260 : vector<64xf32> to vector<64x1xf32>
    %cst_93 = arith.constant 6.400000e+01 : f32
    %262 = vector.broadcast %cst_93 : f32 to vector<64x1xf32>
    %263 = arith.divf %261, %262 : vector<64x1xf32>
    %264 = vector.broadcast %263 : vector<64x1xf32> to vector<64x64xf32>
    %265 = arith.subf %259, %264 : vector<64x64xf32>
    %266 = arith.mulf %265, %265 : vector<64x64xf32>
    %cst_94 = arith.constant dense<0.000000e+00> : vector<64xf32>
    %267 = vector.multi_reduction <add>, %266, %cst_94 [1] : vector<64x64xf32> to vector<64xf32>
    %268 = vector.shape_cast %267 : vector<64xf32> to vector<64x1xf32>
    %cst_95 = arith.constant 6.400000e+01 : f32
    %269 = vector.broadcast %cst_95 : f32 to vector<64x1xf32>
    %270 = arith.divf %268, %269 : vector<64x1xf32>
    %271 = vector.broadcast %263 : vector<64x1xf32> to vector<64x64xf32>
    %272 = arith.subf %259, %271 : vector<64x64xf32>
    %cst_96 = arith.constant 9.99999996E-13 : f32
    %273 = vector.broadcast %cst_96 : f32 to vector<64x1xf32>
    %274 = arith.addf %270, %273 : vector<64x1xf32>
    %275 = math.rsqrt %274 : vector<64x1xf32>
    %276 = vector.broadcast %275 : vector<64x1xf32> to vector<64x64xf32>
    %277 = arith.mulf %272, %276 : vector<64x64xf32>
    %278 = vector.broadcast %62 : vector<1x64xf32> to vector<64x64xf32>
    %279 = arith.mulf %277, %278 : vector<64x64xf32>
    %280 = vector.broadcast %63 : vector<1x64xf32> to vector<64x64xf32>
    %281 = arith.addf %279, %280 : vector<64x64xf32>
    %282 = arith.truncf %281 : vector<64x64xf32> to vector<64x64xbf16>
    %cst_97 = arith.constant dense<0.000000e+00> : vector<64x128xf32>
    %283 = tpu.matmul %282, %64, %cst_97 {dimension_numbers = #tpu.dot_dimension_numbers<[1], [0], [0], [1], [0, 0, 1, 1], [], []>} : vector<64x64xbf16>, vector<64x128xbf16>, vector<64x128xf32> -> vector<64x128xf32>
    %284 = vector.broadcast %65 : vector<1x128xf32> to vector<64x128xf32>
    %285 = arith.addf %283, %284 : vector<64x128xf32>
    %286 = arith.mulf %285, %285 : vector<64x128xf32>
    %287 = arith.mulf %285, %286 : vector<64x128xf32>
    %cst_98 = arith.constant 4.471500e-02 : f32
    %288 = vector.broadcast %cst_98 : f32 to vector<64x128xf32>
    %289 = arith.mulf %288, %287 : vector<64x128xf32>
    %290 = arith.addf %285, %289 : vector<64x128xf32>
    %cst_99 = arith.constant 0.797884583 : f32
    %291 = vector.broadcast %cst_99 : f32 to vector<64x128xf32>
    %292 = arith.mulf %291, %290 : vector<64x128xf32>
    %293 = math.tanh %292 : vector<64x128xf32>
    %cst_100 = arith.constant 1.000000e+00 : f32
    %294 = vector.broadcast %cst_100 : f32 to vector<64x128xf32>
    %295 = arith.addf %294, %293 : vector<64x128xf32>
    %cst_101 = arith.constant 5.000000e-01 : f32
    %296 = vector.broadcast %cst_101 : f32 to vector<64x128xf32>
    %297 = arith.mulf %296, %295 : vector<64x128xf32>
    %298 = arith.mulf %285, %297 : vector<64x128xf32>
    %299 = arith.truncf %298 : vector<64x128xf32> to vector<64x128xbf16>
    %cst_102 = arith.constant dense<0.000000e+00> : vector<64x64xf32>
    %300 = tpu.matmul %299, %66, %cst_102 {dimension_numbers = #tpu.dot_dimension_numbers<[1], [0], [0], [1], [0, 0, 1, 1], [], []>} : vector<64x128xbf16>, vector<128x64xbf16>, vector<64x64xf32> -> vector<64x64xf32>
    %301 = vector.broadcast %67 : vector<1x64xf32> to vector<64x64xf32>
    %302 = arith.addf %300, %301 : vector<64x64xf32>
    %303 = arith.addf %281, %302 : vector<64x64xf32>
    %cst_103 = arith.constant dense<0.000000e+00> : vector<64xf32>
    %304 = vector.multi_reduction <add>, %303, %cst_103 [1] : vector<64x64xf32> to vector<64xf32>
    %305 = vector.shape_cast %304 : vector<64xf32> to vector<64x1xf32>
    %cst_104 = arith.constant 6.400000e+01 : f32
    %306 = vector.broadcast %cst_104 : f32 to vector<64x1xf32>
    %307 = arith.divf %305, %306 : vector<64x1xf32>
    %308 = vector.broadcast %307 : vector<64x1xf32> to vector<64x64xf32>
    %309 = arith.subf %303, %308 : vector<64x64xf32>
    %310 = arith.mulf %309, %309 : vector<64x64xf32>
    %cst_105 = arith.constant dense<0.000000e+00> : vector<64xf32>
    %311 = vector.multi_reduction <add>, %310, %cst_105 [1] : vector<64x64xf32> to vector<64xf32>
    %312 = vector.shape_cast %311 : vector<64xf32> to vector<64x1xf32>
    %cst_106 = arith.constant 6.400000e+01 : f32
    %313 = vector.broadcast %cst_106 : f32 to vector<64x1xf32>
    %314 = arith.divf %312, %313 : vector<64x1xf32>
    %315 = vector.broadcast %307 : vector<64x1xf32> to vector<64x64xf32>
    %316 = arith.subf %303, %315 : vector<64x64xf32>
    %cst_107 = arith.constant 9.99999996E-13 : f32
    %317 = vector.broadcast %cst_107 : f32 to vector<64x1xf32>
    %318 = arith.addf %314, %317 : vector<64x1xf32>
    %319 = math.rsqrt %318 : vector<64x1xf32>
    %320 = vector.broadcast %319 : vector<64x1xf32> to vector<64x64xf32>
    %321 = arith.mulf %316, %320 : vector<64x64xf32>
    %322 = vector.broadcast %68 : vector<1x64xf32> to vector<64x64xf32>
    %323 = arith.mulf %321, %322 : vector<64x64xf32>
    %324 = vector.broadcast %69 : vector<1x64xf32> to vector<64x64xf32>
    %325 = arith.addf %323, %324 : vector<64x64xf32>
    %c0_108 = arith.constant 0 : index
    %c0_109 = arith.constant 0 : index
    %326 = vector.load %arg24[%c0_108, %c0_109] : memref<64x64xbf16, #tpu.memory_space<vmem>>, vector<64x64xbf16>
    %c0_110 = arith.constant 0 : index
    %c0_111 = arith.constant 0 : index
    %327 = vector.load %arg25[%c0_110, %c0_111] : memref<1x64xf32, #tpu.memory_space<vmem>>, vector<1x64xf32>
    %c0_112 = arith.constant 0 : index
    %c0_113 = arith.constant 0 : index
    %328 = vector.load %arg26[%c0_112, %c0_113] : memref<64x64xbf16, #tpu.memory_space<vmem>>, vector<64x64xbf16>
    %c0_114 = arith.constant 0 : index
    %c0_115 = arith.constant 0 : index
    %329 = vector.load %arg27[%c0_114, %c0_115] : memref<1x64xf32, #tpu.memory_space<vmem>>, vector<1x64xf32>
    %c0_116 = arith.constant 0 : index
    %c0_117 = arith.constant 0 : index
    %330 = vector.load %arg28[%c0_116, %c0_117] : memref<64x64xbf16, #tpu.memory_space<vmem>>, vector<64x64xbf16>
    %c0_118 = arith.constant 0 : index
    %c0_119 = arith.constant 0 : index
    %331 = vector.load %arg29[%c0_118, %c0_119] : memref<1x64xf32, #tpu.memory_space<vmem>>, vector<1x64xf32>
    %c0_120 = arith.constant 0 : index
    %c0_121 = arith.constant 0 : index
    %332 = vector.load %arg30[%c0_120, %c0_121] : memref<64x64xbf16, #tpu.memory_space<vmem>>, vector<64x64xbf16>
    %c0_122 = arith.constant 0 : index
    %c0_123 = arith.constant 0 : index
    %333 = vector.load %arg31[%c0_122, %c0_123] : memref<1x64xf32, #tpu.memory_space<vmem>>, vector<1x64xf32>
    %c0_124 = arith.constant 0 : index
    %c0_125 = arith.constant 0 : index
    %334 = vector.load %arg32[%c0_124, %c0_125] : memref<1x64xf32, #tpu.memory_space<vmem>>, vector<1x64xf32>
    %c0_126 = arith.constant 0 : index
    %c0_127 = arith.constant 0 : index
    %335 = vector.load %arg33[%c0_126, %c0_127] : memref<1x64xf32, #tpu.memory_space<vmem>>, vector<1x64xf32>
    %c0_128 = arith.constant 0 : index
    %c0_129 = arith.constant 0 : index
    %336 = vector.load %arg34[%c0_128, %c0_129] : memref<64x128xbf16, #tpu.memory_space<vmem>>, vector<64x128xbf16>
    %c0_130 = arith.constant 0 : index
    %c0_131 = arith.constant 0 : index
    %337 = vector.load %arg35[%c0_130, %c0_131] : memref<1x128xf32, #tpu.memory_space<vmem>>, vector<1x128xf32>
    %c0_132 = arith.constant 0 : index
    %c0_133 = arith.constant 0 : index
    %338 = vector.load %arg36[%c0_132, %c0_133] : memref<128x64xbf16, #tpu.memory_space<vmem>>, vector<128x64xbf16>
    %c0_134 = arith.constant 0 : index
    %c0_135 = arith.constant 0 : index
    %339 = vector.load %arg37[%c0_134, %c0_135] : memref<1x64xf32, #tpu.memory_space<vmem>>, vector<1x64xf32>
    %c0_136 = arith.constant 0 : index
    %c0_137 = arith.constant 0 : index
    %340 = vector.load %arg38[%c0_136, %c0_137] : memref<1x64xf32, #tpu.memory_space<vmem>>, vector<1x64xf32>
    %c0_138 = arith.constant 0 : index
    %c0_139 = arith.constant 0 : index
    %341 = vector.load %arg39[%c0_138, %c0_139] : memref<1x64xf32, #tpu.memory_space<vmem>>, vector<1x64xf32>
    %342 = arith.truncf %325 : vector<64x64xf32> to vector<64x64xbf16>
    %cst_140 = arith.constant dense<0.000000e+00> : vector<64x64xf32>
    %343 = tpu.matmul %342, %326, %cst_140 {dimension_numbers = #tpu.dot_dimension_numbers<[1], [0], [0], [1], [0, 0, 1, 1], [], []>} : vector<64x64xbf16>, vector<64x64xbf16>, vector<64x64xf32> -> vector<64x64xf32>
    %344 = vector.broadcast %327 : vector<1x64xf32> to vector<64x64xf32>
    %345 = arith.addf %343, %344 : vector<64x64xf32>
    %cst_141 = arith.constant 2.500000e-01 : f32
    %346 = vector.broadcast %cst_141 : f32 to vector<64x64xf32>
    %347 = arith.mulf %345, %346 : vector<64x64xf32>
    %cst_142 = arith.constant dense<0.000000e+00> : vector<64x64xf32>
    %348 = tpu.matmul %342, %328, %cst_142 {dimension_numbers = #tpu.dot_dimension_numbers<[1], [0], [0], [1], [0, 0, 1, 1], [], []>} : vector<64x64xbf16>, vector<64x64xbf16>, vector<64x64xf32> -> vector<64x64xf32>
    %349 = vector.broadcast %329 : vector<1x64xf32> to vector<64x64xf32>
    %350 = arith.addf %348, %349 : vector<64x64xf32>
    %cst_143 = arith.constant dense<0.000000e+00> : vector<64x64xf32>
    %351 = tpu.matmul %342, %330, %cst_143 {dimension_numbers = #tpu.dot_dimension_numbers<[1], [0], [0], [1], [0, 0, 1, 1], [], []>} : vector<64x64xbf16>, vector<64x64xbf16>, vector<64x64xf32> -> vector<64x64xf32>
    %352 = vector.broadcast %331 : vector<1x64xf32> to vector<64x64xf32>
    %353 = arith.addf %351, %352 : vector<64x64xf32>
    %354 = vector.extract_strided_slice %53 {offsets = [0, 0], sizes = [1, 32], strides = [1, 1]} : vector<2x32xf32> to vector<1x32xf32>
    %355 = vector.extract_strided_slice %347 {offsets = [0, 0], sizes = [32, 16], strides = [1, 1]} : vector<64x64xf32> to vector<32x16xf32>
    %356 = arith.truncf %355 : vector<32x16xf32> to vector<32x16xbf16>
    %357 = vector.extract_strided_slice %350 {offsets = [0, 0], sizes = [32, 16], strides = [1, 1]} : vector<64x64xf32> to vector<32x16xf32>
    %358 = arith.truncf %357 : vector<32x16xf32> to vector<32x16xbf16>
    %359 = vector.extract_strided_slice %353 {offsets = [0, 0], sizes = [32, 16], strides = [1, 1]} : vector<64x64xf32> to vector<32x16xf32>
    %360 = arith.truncf %359 : vector<32x16xf32> to vector<32x16xbf16>
    %cst_144 = arith.constant dense<0.000000e+00> : vector<32x32xf32>
    %361 = tpu.matmul %356, %358, %cst_144 {dimension_numbers = #tpu.dot_dimension_numbers<[1], [1], [0], [0], [0, 0, 1, 0], [], []>} : vector<32x16xbf16>, vector<32x16xbf16>, vector<32x32xf32> -> vector<32x32xf32>
    %362 = vector.broadcast %354 : vector<1x32xf32> to vector<32x32xf32>
    %363 = arith.addf %361, %362 : vector<32x32xf32>
    %cst_145 = arith.constant dense<0xFF800000> : vector<32xf32>
    %364 = vector.multi_reduction <maximumf>, %363, %cst_145 [1] : vector<32x32xf32> to vector<32xf32>
    %365 = vector.shape_cast %364 : vector<32xf32> to vector<32x1xf32>
    %366 = vector.broadcast %365 : vector<32x1xf32> to vector<32x32xf32>
    %367 = arith.subf %363, %366 : vector<32x32xf32>
    %368 = math.exp %367 : vector<32x32xf32>
    %cst_146 = arith.constant dense<0.000000e+00> : vector<32xf32>
    %369 = vector.multi_reduction <add>, %368, %cst_146 [1] : vector<32x32xf32> to vector<32xf32>
    %370 = vector.shape_cast %369 : vector<32xf32> to vector<32x1xf32>
    %371 = tpu.reciprocal %370 {approx = true} : vector<32x1xf32> -> vector<32x1xf32>
    %372 = vector.broadcast %371 : vector<32x1xf32> to vector<32x32xf32>
    %373 = arith.mulf %368, %372 : vector<32x32xf32>
    %374 = arith.truncf %373 : vector<32x32xf32> to vector<32x32xbf16>
    %cst_147 = arith.constant dense<0.000000e+00> : vector<32x16xf32>
    %375 = tpu.matmul %374, %360, %cst_147 {dimension_numbers = #tpu.dot_dimension_numbers<[1], [0], [0], [1], [0, 0, 1, 1], [], []>} : vector<32x32xbf16>, vector<32x16xbf16>, vector<32x16xf32> -> vector<32x16xf32>
    %376 = vector.extract_strided_slice %347 {offsets = [0, 16], sizes = [32, 16], strides = [1, 1]} : vector<64x64xf32> to vector<32x16xf32>
    %377 = arith.truncf %376 : vector<32x16xf32> to vector<32x16xbf16>
    %378 = vector.extract_strided_slice %350 {offsets = [0, 16], sizes = [32, 16], strides = [1, 1]} : vector<64x64xf32> to vector<32x16xf32>
    %379 = arith.truncf %378 : vector<32x16xf32> to vector<32x16xbf16>
    %380 = vector.extract_strided_slice %353 {offsets = [0, 16], sizes = [32, 16], strides = [1, 1]} : vector<64x64xf32> to vector<32x16xf32>
    %381 = arith.truncf %380 : vector<32x16xf32> to vector<32x16xbf16>
    %cst_148 = arith.constant dense<0.000000e+00> : vector<32x32xf32>
    %382 = tpu.matmul %377, %379, %cst_148 {dimension_numbers = #tpu.dot_dimension_numbers<[1], [1], [0], [0], [0, 0, 1, 0], [], []>} : vector<32x16xbf16>, vector<32x16xbf16>, vector<32x32xf32> -> vector<32x32xf32>
    %383 = vector.broadcast %354 : vector<1x32xf32> to vector<32x32xf32>
    %384 = arith.addf %382, %383 : vector<32x32xf32>
    %cst_149 = arith.constant dense<0xFF800000> : vector<32xf32>
    %385 = vector.multi_reduction <maximumf>, %384, %cst_149 [1] : vector<32x32xf32> to vector<32xf32>
    %386 = vector.shape_cast %385 : vector<32xf32> to vector<32x1xf32>
    %387 = vector.broadcast %386 : vector<32x1xf32> to vector<32x32xf32>
    %388 = arith.subf %384, %387 : vector<32x32xf32>
    %389 = math.exp %388 : vector<32x32xf32>
    %cst_150 = arith.constant dense<0.000000e+00> : vector<32xf32>
    %390 = vector.multi_reduction <add>, %389, %cst_150 [1] : vector<32x32xf32> to vector<32xf32>
    %391 = vector.shape_cast %390 : vector<32xf32> to vector<32x1xf32>
    %392 = tpu.reciprocal %391 {approx = true} : vector<32x1xf32> -> vector<32x1xf32>
    %393 = vector.broadcast %392 : vector<32x1xf32> to vector<32x32xf32>
    %394 = arith.mulf %389, %393 : vector<32x32xf32>
    %395 = arith.truncf %394 : vector<32x32xf32> to vector<32x32xbf16>
    %cst_151 = arith.constant dense<0.000000e+00> : vector<32x16xf32>
    %396 = tpu.matmul %395, %381, %cst_151 {dimension_numbers = #tpu.dot_dimension_numbers<[1], [0], [0], [1], [0, 0, 1, 1], [], []>} : vector<32x32xbf16>, vector<32x16xbf16>, vector<32x16xf32> -> vector<32x16xf32>
    %397 = vector.extract_strided_slice %347 {offsets = [0, 32], sizes = [32, 16], strides = [1, 1]} : vector<64x64xf32> to vector<32x16xf32>
    %398 = arith.truncf %397 : vector<32x16xf32> to vector<32x16xbf16>
    %399 = vector.extract_strided_slice %350 {offsets = [0, 32], sizes = [32, 16], strides = [1, 1]} : vector<64x64xf32> to vector<32x16xf32>
    %400 = arith.truncf %399 : vector<32x16xf32> to vector<32x16xbf16>
    %401 = vector.extract_strided_slice %353 {offsets = [0, 32], sizes = [32, 16], strides = [1, 1]} : vector<64x64xf32> to vector<32x16xf32>
    %402 = arith.truncf %401 : vector<32x16xf32> to vector<32x16xbf16>
    %cst_152 = arith.constant dense<0.000000e+00> : vector<32x32xf32>
    %403 = tpu.matmul %398, %400, %cst_152 {dimension_numbers = #tpu.dot_dimension_numbers<[1], [1], [0], [0], [0, 0, 1, 0], [], []>} : vector<32x16xbf16>, vector<32x16xbf16>, vector<32x32xf32> -> vector<32x32xf32>
    %404 = vector.broadcast %354 : vector<1x32xf32> to vector<32x32xf32>
    %405 = arith.addf %403, %404 : vector<32x32xf32>
    %cst_153 = arith.constant dense<0xFF800000> : vector<32xf32>
    %406 = vector.multi_reduction <maximumf>, %405, %cst_153 [1] : vector<32x32xf32> to vector<32xf32>
    %407 = vector.shape_cast %406 : vector<32xf32> to vector<32x1xf32>
    %408 = vector.broadcast %407 : vector<32x1xf32> to vector<32x32xf32>
    %409 = arith.subf %405, %408 : vector<32x32xf32>
    %410 = math.exp %409 : vector<32x32xf32>
    %cst_154 = arith.constant dense<0.000000e+00> : vector<32xf32>
    %411 = vector.multi_reduction <add>, %410, %cst_154 [1] : vector<32x32xf32> to vector<32xf32>
    %412 = vector.shape_cast %411 : vector<32xf32> to vector<32x1xf32>
    %413 = tpu.reciprocal %412 {approx = true} : vector<32x1xf32> -> vector<32x1xf32>
    %414 = vector.broadcast %413 : vector<32x1xf32> to vector<32x32xf32>
    %415 = arith.mulf %410, %414 : vector<32x32xf32>
    %416 = arith.truncf %415 : vector<32x32xf32> to vector<32x32xbf16>
    %cst_155 = arith.constant dense<0.000000e+00> : vector<32x16xf32>
    %417 = tpu.matmul %416, %402, %cst_155 {dimension_numbers = #tpu.dot_dimension_numbers<[1], [0], [0], [1], [0, 0, 1, 1], [], []>} : vector<32x32xbf16>, vector<32x16xbf16>, vector<32x16xf32> -> vector<32x16xf32>
    %418 = vector.extract_strided_slice %347 {offsets = [0, 48], sizes = [32, 16], strides = [1, 1]} : vector<64x64xf32> to vector<32x16xf32>
    %419 = arith.truncf %418 : vector<32x16xf32> to vector<32x16xbf16>
    %420 = vector.extract_strided_slice %350 {offsets = [0, 48], sizes = [32, 16], strides = [1, 1]} : vector<64x64xf32> to vector<32x16xf32>
    %421 = arith.truncf %420 : vector<32x16xf32> to vector<32x16xbf16>
    %422 = vector.extract_strided_slice %353 {offsets = [0, 48], sizes = [32, 16], strides = [1, 1]} : vector<64x64xf32> to vector<32x16xf32>
    %423 = arith.truncf %422 : vector<32x16xf32> to vector<32x16xbf16>
    %cst_156 = arith.constant dense<0.000000e+00> : vector<32x32xf32>
    %424 = tpu.matmul %419, %421, %cst_156 {dimension_numbers = #tpu.dot_dimension_numbers<[1], [1], [0], [0], [0, 0, 1, 0], [], []>} : vector<32x16xbf16>, vector<32x16xbf16>, vector<32x32xf32> -> vector<32x32xf32>
    %425 = vector.broadcast %354 : vector<1x32xf32> to vector<32x32xf32>
    %426 = arith.addf %424, %425 : vector<32x32xf32>
    %cst_157 = arith.constant dense<0xFF800000> : vector<32xf32>
    %427 = vector.multi_reduction <maximumf>, %426, %cst_157 [1] : vector<32x32xf32> to vector<32xf32>
    %428 = vector.shape_cast %427 : vector<32xf32> to vector<32x1xf32>
    %429 = vector.broadcast %428 : vector<32x1xf32> to vector<32x32xf32>
    %430 = arith.subf %426, %429 : vector<32x32xf32>
    %431 = math.exp %430 : vector<32x32xf32>
    %cst_158 = arith.constant dense<0.000000e+00> : vector<32xf32>
    %432 = vector.multi_reduction <add>, %431, %cst_158 [1] : vector<32x32xf32> to vector<32xf32>
    %433 = vector.shape_cast %432 : vector<32xf32> to vector<32x1xf32>
    %434 = tpu.reciprocal %433 {approx = true} : vector<32x1xf32> -> vector<32x1xf32>
    %435 = vector.broadcast %434 : vector<32x1xf32> to vector<32x32xf32>
    %436 = arith.mulf %431, %435 : vector<32x32xf32>
    %437 = arith.truncf %436 : vector<32x32xf32> to vector<32x32xbf16>
    %cst_159 = arith.constant dense<0.000000e+00> : vector<32x16xf32>
    %438 = tpu.matmul %437, %423, %cst_159 {dimension_numbers = #tpu.dot_dimension_numbers<[1], [0], [0], [1], [0, 0, 1, 1], [], []>} : vector<32x32xbf16>, vector<32x16xbf16>, vector<32x16xf32> -> vector<32x16xf32>
    %439 = tpu.concatenate %375, %396, %417, %438 in 1 : vector<32x16xf32>, vector<32x16xf32>, vector<32x16xf32>, vector<32x16xf32> -> vector<32x64xf32>
    %440 = vector.extract_strided_slice %53 {offsets = [1, 0], sizes = [1, 32], strides = [1, 1]} : vector<2x32xf32> to vector<1x32xf32>
    %441 = vector.extract_strided_slice %347 {offsets = [32, 0], sizes = [32, 16], strides = [1, 1]} : vector<64x64xf32> to vector<32x16xf32>
    %442 = arith.truncf %441 : vector<32x16xf32> to vector<32x16xbf16>
    %443 = vector.extract_strided_slice %350 {offsets = [32, 0], sizes = [32, 16], strides = [1, 1]} : vector<64x64xf32> to vector<32x16xf32>
    %444 = arith.truncf %443 : vector<32x16xf32> to vector<32x16xbf16>
    %445 = vector.extract_strided_slice %353 {offsets = [32, 0], sizes = [32, 16], strides = [1, 1]} : vector<64x64xf32> to vector<32x16xf32>
    %446 = arith.truncf %445 : vector<32x16xf32> to vector<32x16xbf16>
    %cst_160 = arith.constant dense<0.000000e+00> : vector<32x32xf32>
    %447 = tpu.matmul %442, %444, %cst_160 {dimension_numbers = #tpu.dot_dimension_numbers<[1], [1], [0], [0], [0, 0, 1, 0], [], []>} : vector<32x16xbf16>, vector<32x16xbf16>, vector<32x32xf32> -> vector<32x32xf32>
    %448 = vector.broadcast %440 : vector<1x32xf32> to vector<32x32xf32>
    %449 = arith.addf %447, %448 : vector<32x32xf32>
    %cst_161 = arith.constant dense<0xFF800000> : vector<32xf32>
    %450 = vector.multi_reduction <maximumf>, %449, %cst_161 [1] : vector<32x32xf32> to vector<32xf32>
    %451 = vector.shape_cast %450 : vector<32xf32> to vector<32x1xf32>
    %452 = vector.broadcast %451 : vector<32x1xf32> to vector<32x32xf32>
    %453 = arith.subf %449, %452 : vector<32x32xf32>
    %454 = math.exp %453 : vector<32x32xf32>
    %cst_162 = arith.constant dense<0.000000e+00> : vector<32xf32>
    %455 = vector.multi_reduction <add>, %454, %cst_162 [1] : vector<32x32xf32> to vector<32xf32>
    %456 = vector.shape_cast %455 : vector<32xf32> to vector<32x1xf32>
    %457 = tpu.reciprocal %456 {approx = true} : vector<32x1xf32> -> vector<32x1xf32>
    %458 = vector.broadcast %457 : vector<32x1xf32> to vector<32x32xf32>
    %459 = arith.mulf %454, %458 : vector<32x32xf32>
    %460 = arith.truncf %459 : vector<32x32xf32> to vector<32x32xbf16>
    %cst_163 = arith.constant dense<0.000000e+00> : vector<32x16xf32>
    %461 = tpu.matmul %460, %446, %cst_163 {dimension_numbers = #tpu.dot_dimension_numbers<[1], [0], [0], [1], [0, 0, 1, 1], [], []>} : vector<32x32xbf16>, vector<32x16xbf16>, vector<32x16xf32> -> vector<32x16xf32>
    %462 = vector.extract_strided_slice %347 {offsets = [32, 16], sizes = [32, 16], strides = [1, 1]} : vector<64x64xf32> to vector<32x16xf32>
    %463 = arith.truncf %462 : vector<32x16xf32> to vector<32x16xbf16>
    %464 = vector.extract_strided_slice %350 {offsets = [32, 16], sizes = [32, 16], strides = [1, 1]} : vector<64x64xf32> to vector<32x16xf32>
    %465 = arith.truncf %464 : vector<32x16xf32> to vector<32x16xbf16>
    %466 = vector.extract_strided_slice %353 {offsets = [32, 16], sizes = [32, 16], strides = [1, 1]} : vector<64x64xf32> to vector<32x16xf32>
    %467 = arith.truncf %466 : vector<32x16xf32> to vector<32x16xbf16>
    %cst_164 = arith.constant dense<0.000000e+00> : vector<32x32xf32>
    %468 = tpu.matmul %463, %465, %cst_164 {dimension_numbers = #tpu.dot_dimension_numbers<[1], [1], [0], [0], [0, 0, 1, 0], [], []>} : vector<32x16xbf16>, vector<32x16xbf16>, vector<32x32xf32> -> vector<32x32xf32>
    %469 = vector.broadcast %440 : vector<1x32xf32> to vector<32x32xf32>
    %470 = arith.addf %468, %469 : vector<32x32xf32>
    %cst_165 = arith.constant dense<0xFF800000> : vector<32xf32>
    %471 = vector.multi_reduction <maximumf>, %470, %cst_165 [1] : vector<32x32xf32> to vector<32xf32>
    %472 = vector.shape_cast %471 : vector<32xf32> to vector<32x1xf32>
    %473 = vector.broadcast %472 : vector<32x1xf32> to vector<32x32xf32>
    %474 = arith.subf %470, %473 : vector<32x32xf32>
    %475 = math.exp %474 : vector<32x32xf32>
    %cst_166 = arith.constant dense<0.000000e+00> : vector<32xf32>
    %476 = vector.multi_reduction <add>, %475, %cst_166 [1] : vector<32x32xf32> to vector<32xf32>
    %477 = vector.shape_cast %476 : vector<32xf32> to vector<32x1xf32>
    %478 = tpu.reciprocal %477 {approx = true} : vector<32x1xf32> -> vector<32x1xf32>
    %479 = vector.broadcast %478 : vector<32x1xf32> to vector<32x32xf32>
    %480 = arith.mulf %475, %479 : vector<32x32xf32>
    %481 = arith.truncf %480 : vector<32x32xf32> to vector<32x32xbf16>
    %cst_167 = arith.constant dense<0.000000e+00> : vector<32x16xf32>
    %482 = tpu.matmul %481, %467, %cst_167 {dimension_numbers = #tpu.dot_dimension_numbers<[1], [0], [0], [1], [0, 0, 1, 1], [], []>} : vector<32x32xbf16>, vector<32x16xbf16>, vector<32x16xf32> -> vector<32x16xf32>
    %483 = vector.extract_strided_slice %347 {offsets = [32, 32], sizes = [32, 16], strides = [1, 1]} : vector<64x64xf32> to vector<32x16xf32>
    %484 = arith.truncf %483 : vector<32x16xf32> to vector<32x16xbf16>
    %485 = vector.extract_strided_slice %350 {offsets = [32, 32], sizes = [32, 16], strides = [1, 1]} : vector<64x64xf32> to vector<32x16xf32>
    %486 = arith.truncf %485 : vector<32x16xf32> to vector<32x16xbf16>
    %487 = vector.extract_strided_slice %353 {offsets = [32, 32], sizes = [32, 16], strides = [1, 1]} : vector<64x64xf32> to vector<32x16xf32>
    %488 = arith.truncf %487 : vector<32x16xf32> to vector<32x16xbf16>
    %cst_168 = arith.constant dense<0.000000e+00> : vector<32x32xf32>
    %489 = tpu.matmul %484, %486, %cst_168 {dimension_numbers = #tpu.dot_dimension_numbers<[1], [1], [0], [0], [0, 0, 1, 0], [], []>} : vector<32x16xbf16>, vector<32x16xbf16>, vector<32x32xf32> -> vector<32x32xf32>
    %490 = vector.broadcast %440 : vector<1x32xf32> to vector<32x32xf32>
    %491 = arith.addf %489, %490 : vector<32x32xf32>
    %cst_169 = arith.constant dense<0xFF800000> : vector<32xf32>
    %492 = vector.multi_reduction <maximumf>, %491, %cst_169 [1] : vector<32x32xf32> to vector<32xf32>
    %493 = vector.shape_cast %492 : vector<32xf32> to vector<32x1xf32>
    %494 = vector.broadcast %493 : vector<32x1xf32> to vector<32x32xf32>
    %495 = arith.subf %491, %494 : vector<32x32xf32>
    %496 = math.exp %495 : vector<32x32xf32>
    %cst_170 = arith.constant dense<0.000000e+00> : vector<32xf32>
    %497 = vector.multi_reduction <add>, %496, %cst_170 [1] : vector<32x32xf32> to vector<32xf32>
    %498 = vector.shape_cast %497 : vector<32xf32> to vector<32x1xf32>
    %499 = tpu.reciprocal %498 {approx = true} : vector<32x1xf32> -> vector<32x1xf32>
    %500 = vector.broadcast %499 : vector<32x1xf32> to vector<32x32xf32>
    %501 = arith.mulf %496, %500 : vector<32x32xf32>
    %502 = arith.truncf %501 : vector<32x32xf32> to vector<32x32xbf16>
    %cst_171 = arith.constant dense<0.000000e+00> : vector<32x16xf32>
    %503 = tpu.matmul %502, %488, %cst_171 {dimension_numbers = #tpu.dot_dimension_numbers<[1], [0], [0], [1], [0, 0, 1, 1], [], []>} : vector<32x32xbf16>, vector<32x16xbf16>, vector<32x16xf32> -> vector<32x16xf32>
    %504 = vector.extract_strided_slice %347 {offsets = [32, 48], sizes = [32, 16], strides = [1, 1]} : vector<64x64xf32> to vector<32x16xf32>
    %505 = arith.truncf %504 : vector<32x16xf32> to vector<32x16xbf16>
    %506 = vector.extract_strided_slice %350 {offsets = [32, 48], sizes = [32, 16], strides = [1, 1]} : vector<64x64xf32> to vector<32x16xf32>
    %507 = arith.truncf %506 : vector<32x16xf32> to vector<32x16xbf16>
    %508 = vector.extract_strided_slice %353 {offsets = [32, 48], sizes = [32, 16], strides = [1, 1]} : vector<64x64xf32> to vector<32x16xf32>
    %509 = arith.truncf %508 : vector<32x16xf32> to vector<32x16xbf16>
    %cst_172 = arith.constant dense<0.000000e+00> : vector<32x32xf32>
    %510 = tpu.matmul %505, %507, %cst_172 {dimension_numbers = #tpu.dot_dimension_numbers<[1], [1], [0], [0], [0, 0, 1, 0], [], []>} : vector<32x16xbf16>, vector<32x16xbf16>, vector<32x32xf32> -> vector<32x32xf32>
    %511 = vector.broadcast %440 : vector<1x32xf32> to vector<32x32xf32>
    %512 = arith.addf %510, %511 : vector<32x32xf32>
    %cst_173 = arith.constant dense<0xFF800000> : vector<32xf32>
    %513 = vector.multi_reduction <maximumf>, %512, %cst_173 [1] : vector<32x32xf32> to vector<32xf32>
    %514 = vector.shape_cast %513 : vector<32xf32> to vector<32x1xf32>
    %515 = vector.broadcast %514 : vector<32x1xf32> to vector<32x32xf32>
    %516 = arith.subf %512, %515 : vector<32x32xf32>
    %517 = math.exp %516 : vector<32x32xf32>
    %cst_174 = arith.constant dense<0.000000e+00> : vector<32xf32>
    %518 = vector.multi_reduction <add>, %517, %cst_174 [1] : vector<32x32xf32> to vector<32xf32>
    %519 = vector.shape_cast %518 : vector<32xf32> to vector<32x1xf32>
    %520 = tpu.reciprocal %519 {approx = true} : vector<32x1xf32> -> vector<32x1xf32>
    %521 = vector.broadcast %520 : vector<32x1xf32> to vector<32x32xf32>
    %522 = arith.mulf %517, %521 : vector<32x32xf32>
    %523 = arith.truncf %522 : vector<32x32xf32> to vector<32x32xbf16>
    %cst_175 = arith.constant dense<0.000000e+00> : vector<32x16xf32>
    %524 = tpu.matmul %523, %509, %cst_175 {dimension_numbers = #tpu.dot_dimension_numbers<[1], [0], [0], [1], [0, 0, 1, 1], [], []>} : vector<32x32xbf16>, vector<32x16xbf16>, vector<32x16xf32> -> vector<32x16xf32>
    %525 = tpu.concatenate %461, %482, %503, %524 in 1 : vector<32x16xf32>, vector<32x16xf32>, vector<32x16xf32>, vector<32x16xf32> -> vector<32x64xf32>
    %526 = tpu.concatenate %439, %525 in 0 : vector<32x64xf32>, vector<32x64xf32> -> vector<64x64xf32>
    %527 = arith.truncf %526 : vector<64x64xf32> to vector<64x64xbf16>
    %cst_176 = arith.constant dense<0.000000e+00> : vector<64x64xf32>
    %528 = tpu.matmul %527, %332, %cst_176 {dimension_numbers = #tpu.dot_dimension_numbers<[1], [0], [0], [1], [0, 0, 1, 1], [], []>} : vector<64x64xbf16>, vector<64x64xbf16>, vector<64x64xf32> -> vector<64x64xf32>
    %529 = vector.broadcast %333 : vector<1x64xf32> to vector<64x64xf32>
    %530 = arith.addf %528, %529 : vector<64x64xf32>
    %531 = arith.addf %325, %530 : vector<64x64xf32>
    %cst_177 = arith.constant dense<0.000000e+00> : vector<64xf32>
    %532 = vector.multi_reduction <add>, %531, %cst_177 [1] : vector<64x64xf32> to vector<64xf32>
    %533 = vector.shape_cast %532 : vector<64xf32> to vector<64x1xf32>
    %cst_178 = arith.constant 6.400000e+01 : f32
    %534 = vector.broadcast %cst_178 : f32 to vector<64x1xf32>
    %535 = arith.divf %533, %534 : vector<64x1xf32>
    %536 = vector.broadcast %535 : vector<64x1xf32> to vector<64x64xf32>
    %537 = arith.subf %531, %536 : vector<64x64xf32>
    %538 = arith.mulf %537, %537 : vector<64x64xf32>
    %cst_179 = arith.constant dense<0.000000e+00> : vector<64xf32>
    %539 = vector.multi_reduction <add>, %538, %cst_179 [1] : vector<64x64xf32> to vector<64xf32>
    %540 = vector.shape_cast %539 : vector<64xf32> to vector<64x1xf32>
    %cst_180 = arith.constant 6.400000e+01 : f32
    %541 = vector.broadcast %cst_180 : f32 to vector<64x1xf32>
    %542 = arith.divf %540, %541 : vector<64x1xf32>
    %543 = vector.broadcast %535 : vector<64x1xf32> to vector<64x64xf32>
    %544 = arith.subf %531, %543 : vector<64x64xf32>
    %cst_181 = arith.constant 9.99999996E-13 : f32
    %545 = vector.broadcast %cst_181 : f32 to vector<64x1xf32>
    %546 = arith.addf %542, %545 : vector<64x1xf32>
    %547 = math.rsqrt %546 : vector<64x1xf32>
    %548 = vector.broadcast %547 : vector<64x1xf32> to vector<64x64xf32>
    %549 = arith.mulf %544, %548 : vector<64x64xf32>
    %550 = vector.broadcast %334 : vector<1x64xf32> to vector<64x64xf32>
    %551 = arith.mulf %549, %550 : vector<64x64xf32>
    %552 = vector.broadcast %335 : vector<1x64xf32> to vector<64x64xf32>
    %553 = arith.addf %551, %552 : vector<64x64xf32>
    %554 = arith.truncf %553 : vector<64x64xf32> to vector<64x64xbf16>
    %cst_182 = arith.constant dense<0.000000e+00> : vector<64x128xf32>
    %555 = tpu.matmul %554, %336, %cst_182 {dimension_numbers = #tpu.dot_dimension_numbers<[1], [0], [0], [1], [0, 0, 1, 1], [], []>} : vector<64x64xbf16>, vector<64x128xbf16>, vector<64x128xf32> -> vector<64x128xf32>
    %556 = vector.broadcast %337 : vector<1x128xf32> to vector<64x128xf32>
    %557 = arith.addf %555, %556 : vector<64x128xf32>
    %558 = arith.mulf %557, %557 : vector<64x128xf32>
    %559 = arith.mulf %557, %558 : vector<64x128xf32>
    %cst_183 = arith.constant 4.471500e-02 : f32
    %560 = vector.broadcast %cst_183 : f32 to vector<64x128xf32>
    %561 = arith.mulf %560, %559 : vector<64x128xf32>
    %562 = arith.addf %557, %561 : vector<64x128xf32>
    %cst_184 = arith.constant 0.797884583 : f32
    %563 = vector.broadcast %cst_184 : f32 to vector<64x128xf32>
    %564 = arith.mulf %563, %562 : vector<64x128xf32>
    %565 = math.tanh %564 : vector<64x128xf32>
    %cst_185 = arith.constant 1.000000e+00 : f32
    %566 = vector.broadcast %cst_185 : f32 to vector<64x128xf32>
    %567 = arith.addf %566, %565 : vector<64x128xf32>
    %cst_186 = arith.constant 5.000000e-01 : f32
    %568 = vector.broadcast %cst_186 : f32 to vector<64x128xf32>
    %569 = arith.mulf %568, %567 : vector<64x128xf32>
    %570 = arith.mulf %557, %569 : vector<64x128xf32>
    %571 = arith.truncf %570 : vector<64x128xf32> to vector<64x128xbf16>
    %cst_187 = arith.constant dense<0.000000e+00> : vector<64x64xf32>
    %572 = tpu.matmul %571, %338, %cst_187 {dimension_numbers = #tpu.dot_dimension_numbers<[1], [0], [0], [1], [0, 0, 1, 1], [], []>} : vector<64x128xbf16>, vector<128x64xbf16>, vector<64x64xf32> -> vector<64x64xf32>
    %573 = vector.broadcast %339 : vector<1x64xf32> to vector<64x64xf32>
    %574 = arith.addf %572, %573 : vector<64x64xf32>
    %575 = arith.addf %553, %574 : vector<64x64xf32>
    %cst_188 = arith.constant dense<0.000000e+00> : vector<64xf32>
    %576 = vector.multi_reduction <add>, %575, %cst_188 [1] : vector<64x64xf32> to vector<64xf32>
    %577 = vector.shape_cast %576 : vector<64xf32> to vector<64x1xf32>
    %cst_189 = arith.constant 6.400000e+01 : f32
    %578 = vector.broadcast %cst_189 : f32 to vector<64x1xf32>
    %579 = arith.divf %577, %578 : vector<64x1xf32>
    %580 = vector.broadcast %579 : vector<64x1xf32> to vector<64x64xf32>
    %581 = arith.subf %575, %580 : vector<64x64xf32>
    %582 = arith.mulf %581, %581 : vector<64x64xf32>
    %cst_190 = arith.constant dense<0.000000e+00> : vector<64xf32>
    %583 = vector.multi_reduction <add>, %582, %cst_190 [1] : vector<64x64xf32> to vector<64xf32>
    %584 = vector.shape_cast %583 : vector<64xf32> to vector<64x1xf32>
    %cst_191 = arith.constant 6.400000e+01 : f32
    %585 = vector.broadcast %cst_191 : f32 to vector<64x1xf32>
    %586 = arith.divf %584, %585 : vector<64x1xf32>
    %587 = vector.broadcast %579 : vector<64x1xf32> to vector<64x64xf32>
    %588 = arith.subf %575, %587 : vector<64x64xf32>
    %cst_192 = arith.constant 9.99999996E-13 : f32
    %589 = vector.broadcast %cst_192 : f32 to vector<64x1xf32>
    %590 = arith.addf %586, %589 : vector<64x1xf32>
    %591 = math.rsqrt %590 : vector<64x1xf32>
    %592 = vector.broadcast %591 : vector<64x1xf32> to vector<64x64xf32>
    %593 = arith.mulf %588, %592 : vector<64x64xf32>
    %594 = vector.broadcast %340 : vector<1x64xf32> to vector<64x64xf32>
    %595 = arith.mulf %593, %594 : vector<64x64xf32>
    %596 = vector.broadcast %341 : vector<1x64xf32> to vector<64x64xf32>
    %597 = arith.addf %595, %596 : vector<64x64xf32>
    %598 = vector.extract_strided_slice %597 {offsets = [0, 0], sizes = [1, 64], strides = [1, 1]} : vector<64x64xf32> to vector<1x64xf32>
    %599 = vector.extract_strided_slice %597 {offsets = [32, 0], sizes = [1, 64], strides = [1, 1]} : vector<64x64xf32> to vector<1x64xf32>
    %600 = tpu.concatenate %598, %599 in 0 : vector<1x64xf32>, vector<1x64xf32> -> vector<2x64xf32>
    %601 = arith.truncf %600 : vector<2x64xf32> to vector<2x64xbf16>
    %c0_193 = arith.constant 0 : index
    %c0_194 = arith.constant 0 : index
    %602 = vector.load %arg40[%c0_193, %c0_194] : memref<64x64xbf16, #tpu.memory_space<vmem>>, vector<64x64xbf16>
    %cst_195 = arith.constant dense<0.000000e+00> : vector<2x64xf32>
    %603 = tpu.matmul %601, %602, %cst_195 {dimension_numbers = #tpu.dot_dimension_numbers<[1], [0], [0], [1], [0, 0, 1, 1], [], []>} : vector<2x64xbf16>, vector<64x64xbf16>, vector<2x64xf32> -> vector<2x64xf32>
    %c0_196 = arith.constant 0 : index
    %c0_197 = arith.constant 0 : index
    %604 = vector.load %arg41[%c0_196, %c0_197] : memref<1x64xf32, #tpu.memory_space<vmem>>, vector<1x64xf32>
    %605 = vector.broadcast %604 : vector<1x64xf32> to vector<2x64xf32>
    %606 = arith.addf %603, %605 : vector<2x64xf32>
    %607 = math.tanh %606 : vector<2x64xf32>
    %608 = arith.truncf %607 : vector<2x64xf32> to vector<2x64xbf16>
    %c0_198 = arith.constant 0 : index
    %c0_199 = arith.constant 0 : index
    %609 = vector.load %arg42[%c0_198, %c0_199] : memref<64x2xbf16, #tpu.memory_space<vmem>>, vector<64x2xbf16>
    %cst_200 = arith.constant dense<0.000000e+00> : vector<2x2xf32>
    %610 = tpu.matmul %608, %609, %cst_200 {dimension_numbers = #tpu.dot_dimension_numbers<[1], [0], [0], [1], [0, 0, 1, 1], [], []>} : vector<2x64xbf16>, vector<64x2xbf16>, vector<2x2xf32> -> vector<2x2xf32>
    %c0_201 = arith.constant 0 : index
    %c0_202 = arith.constant 0 : index
    %611 = vector.load %arg43[%c0_201, %c0_202] : memref<1x2xf32, #tpu.memory_space<vmem>>, vector<1x2xf32>
    %612 = vector.broadcast %611 : vector<1x2xf32> to vector<2x2xf32>
    %613 = arith.addf %610, %612 : vector<2x2xf32>
    %c0_203 = arith.constant 0 : index
    %c0_204 = arith.constant 0 : index
    %614 = vector.load %arg44[%c0_203, %c0_204] : memref<2x2xf32, #tpu.memory_space<vmem>>, vector<2x2xf32>
    tpu.vector_store %arg44[%c0_203, %c0_204], %613 {strides = array<i32>} : memref<2x2xf32, #tpu.memory_space<vmem>>, vector<2x2xf32>,
    return
  }
}

</mosaic_0001>

<llo_original>
// kernel: fermion_forward.1
$region0: #{fermion_forward.1}
  #allocation0 [shape = 'u32[]', space=smem, size = 0x4, offset = 0x4, fixed_abs, tag = 'smem constant byte address 0x4 - core index']
  #allocation1 [shape = 'u32[72,128]{1,0:T(1,128)}', space=vmem, size = 0x9000, scoped, tag = 'internal scratch']
  %s0 = inlined_call_operand.smem [shape: u32[45], index: -1, kind: input, shape index: {}]
  %s1 = sld [smem:[%s0]]
  %s2 = scalar_lea.smem %s0, 1
  %s3 = sld [smem:[%s2]]
  %s4 = scalar_lea.smem %s0, 2
  %s5 = sld [smem:[%s4]]
  %s6 = scalar_lea.smem %s0, 3
  %s7 = sld [smem:[%s6]]
  %s8 = scalar_lea.smem %s0, 4
  %s9 = sld [smem:[%s8]]
  %s10 = scalar_lea.smem %s0, 5
  %s11 = sld [smem:[%s10]]
  %s12 = scalar_lea.smem %s0, 6
  %s13 = sld [smem:[%s12]]
  %s14 = scalar_lea.smem %s0, 7
  %s15 = sld [smem:[%s14]]
  %s16 = scalar_lea.smem %s0, 8
  %s17 = sld [smem:[%s16]]
  %s18 = scalar_lea.smem %s0, 9
  %s19 = sld [smem:[%s18]]
  %s20 = scalar_lea.smem %s0, 10
  %s21 = sld [smem:[%s20]]
  %s22 = scalar_lea.smem %s0, 11
  %s23 = sld [smem:[%s22]]
  %s24 = scalar_lea.smem %s0, 12
  %s25 = sld [smem:[%s24]]
  %s26 = scalar_lea.smem %s0, 13
  %s27 = sld [smem:[%s26]]
  %s28 = scalar_lea.smem %s0, 14
  %s29 = sld [smem:[%s28]]
  %s30 = scalar_lea.smem %s0, 15
  %s31 = sld [smem:[%s30]]
  %s32 = scalar_lea.smem %s0, 16
  %s33 = sld [smem:[%s32]]
  %s34 = scalar_lea.smem %s0, 17
  %s35 = sld [smem:[%s34]]
  %s36 = scalar_lea.smem %s0, 18
  %s37 = sld [smem:[%s36]]
  %s38 = scalar_lea.smem %s0, 19
  %s39 = sld [smem:[%s38]]
  %s40 = scalar_lea.smem %s0, 20
  %s41 = sld [smem:[%s40]]
  %s42 = scalar_lea.smem %s0, 21
  %s43 = sld [smem:[%s42]]
  %s44 = scalar_lea.smem %s0, 22
  %s45 = sld [smem:[%s44]]
  %s46 = scalar_lea.smem %s0, 23
  %s47 = sld [smem:[%s46]]
  %s48 = scalar_lea.smem %s0, 24
  %s49 = sld [smem:[%s48]]
  %s50 = scalar_lea.smem %s0, 25
  %s51 = sld [smem:[%s50]]
  %s52 = scalar_lea.smem %s0, 26
  %s53 = sld [smem:[%s52]]
  %s54 = scalar_lea.smem %s0, 27
  %s55 = sld [smem:[%s54]]
  %s56 = scalar_lea.smem %s0, 28
  %s57 = sld [smem:[%s56]]
  %s58 = scalar_lea.smem %s0, 29
  %s59 = sld [smem:[%s58]]
  %s60 = scalar_lea.smem %s0, 30
  %s61 = sld [smem:[%s60]]
  %s62 = scalar_lea.smem %s0, 31
  %s63 = sld [smem:[%s62]]
  %s64 = scalar_lea.smem %s0, 32
  %s65 = sld [smem:[%s64]]
  %s66 = scalar_lea.smem %s0, 33
  %s67 = sld [smem:[%s66]]
  %s68 = scalar_lea.smem %s0, 34
  %s69 = sld [smem:[%s68]]
  %s70 = scalar_lea.smem %s0, 35
  %s71 = sld [smem:[%s70]]
  %s72 = scalar_lea.smem %s0, 36
  %s73 = sld [smem:[%s72]]
  %s74 = scalar_lea.smem %s0, 37
  %s75 = sld [smem:[%s74]]
  %s76 = scalar_lea.smem %s0, 38
  %s77 = sld [smem:[%s76]]
  %s78 = scalar_lea.smem %s0, 39
  %s79 = sld [smem:[%s78]]
  %s80 = scalar_lea.smem %s0, 40
  %s81 = sld [smem:[%s80]]
  %s82 = scalar_lea.smem %s0, 41
  %s83 = sld [smem:[%s82]]
  %s84 = scalar_lea.smem %s0, 42
  %s85 = sld [smem:[%s84]]
  %s86 = scalar_lea.smem %s0, 43
  %s87 = sld [smem:[%s86]]
  %s88 = scalar_lea.smem %s0, 44
  %s89 = sld [smem:[%s88]]
  %s90 = sld [smem:[#allocation0]]
  $region186: #{fermion_forward.1} parent=0
    _
  %s92 = ssub.s32 1, %s90
  %s93 = scalar_select 0, %s92, %s90
  $region1: #{fermion_forward.1} parent=0
    #allocation2 [shape = 'u8[1024]{0}', space=vmem, size = 0x400, scoped, tag = 'output window, operand 0, single buffered']
    #allocation3 [shape = 's32[1]{0}', space=sflag, size = 0x4, scoped, tag = 'scoped memory for fermion_forward.1']
    %94 = vsyncpa [#allocation3], 0
    // Predicated region
    $region2: #{fermion_forward.1} parent=1 // pred_check
      _
    $region3: #{fermion_forward.1} parent=1 // pred_check_branch
      %96 = sbr.rel (0) target = $region5
    $region4: #{fermion_forward.1} parent=1 // pred_region
      _
    $region5: #{fermion_forward.1} parent=1 // pred_fallthru
      _
    // Predicated region
    $region6: #{fermion_forward.1} parent=1 // pred_check
      _
    $region7: #{fermion_forward.1} parent=1 // pred_check_branch
      %98 = sbr.rel (0) target = $region9
    $region8: #{fermion_forward.1} parent=1 // pred_region
      _
    $region9: #{fermion_forward.1} parent=1 // pred_fallthru
      _
    // Predicated region
    $region10: #{fermion_forward.1} parent=1 // pred_check
      _
    $region11: #{fermion_forward.1} parent=1 // pred_check_branch
      %100 = sbr.rel (0) target = $region13
    $region12: #{fermion_forward.1} parent=1 // pred_region
      _
    $region13: #{fermion_forward.1} parent=1 // pred_fallthru
      _
    // Predicated region
    $region14: #{fermion_forward.1} parent=1 // pred_check
      _
    $region15: #{fermion_forward.1} parent=1 // pred_check_branch
      %102 = sbr.rel (0) target = $region17
    $region16: #{fermion_forward.1} parent=1 // pred_region
      _
    $region17: #{fermion_forward.1} parent=1 // pred_fallthru
      _
    // Predicated region
    $region18: #{fermion_forward.1} parent=1 // pred_check
      _
    $region19: #{fermion_forward.1} parent=1 // pred_check_branch
      %104 = sbr.rel (0) target = $region21
    $region20: #{fermion_forward.1} parent=1 // pred_region
      _
    $region21: #{fermion_forward.1} parent=1 // pred_fallthru
      _
    // Predicated region
    $region22: #{fermion_forward.1} parent=1 // pred_check
      _
    $region23: #{fermion_forward.1} parent=1 // pred_check_branch
      %106 = sbr.rel (0) target = $region25
    $region24: #{fermion_forward.1} parent=1 // pred_region
      _
    $region25: #{fermion_forward.1} parent=1 // pred_fallthru
      _
    // Predicated region
    $region26: #{fermion_forward.1} parent=1 // pred_check
      _
    $region27: #{fermion_forward.1} parent=1 // pred_check_branch
      %108 = sbr.rel (0) target = $region29
    $region28: #{fermion_forward.1} parent=1 // pred_region
      _
    $region29: #{fermion_forward.1} parent=1 // pred_fallthru
      _
    // Predicated region
    $region30: #{fermion_forward.1} parent=1 // pred_check
      _
    $region31: #{fermion_forward.1} parent=1 // pred_check_branch
      %110 = sbr.rel (0) target = $region33
    $region32: #{fermion_forward.1} parent=1 // pred_region
      _
    $region33: #{fermion_forward.1} parent=1 // pred_fallthru
      _
    // Predicated region
    $region34: #{fermion_forward.1} parent=1 // pred_check
      _
    $region35: #{fermion_forward.1} parent=1 // pred_check_branch
      %112 = sbr.rel (0) target = $region37
    $region36: #{fermion_forward.1} parent=1 // pred_region
      _
    $region37: #{fermion_forward.1} parent=1 // pred_fallthru
      _
    // Predicated region
    $region38: #{fermion_forward.1} parent=1 // pred_check
      _
    $region39: #{fermion_forward.1} parent=1 // pred_check_branch
      %114 = sbr.rel (0) target = $region41
    $region40: #{fermion_forward.1} parent=1 // pred_region
      _
    $region41: #{fermion_forward.1} parent=1 // pred_fallthru
      _
    // Predicated region
    $region42: #{fermion_forward.1} parent=1 // pred_check
      _
    $region43: #{fermion_forward.1} parent=1 // pred_check_branch
      %116 = sbr.rel (0) target = $region45
    $region44: #{fermion_forward.1} parent=1 // pred_region
      _
    $region45: #{fermion_forward.1} parent=1 // pred_fallthru
      _
    // Predicated region
    $region46: #{fermion_forward.1} parent=1 // pred_check
      _
    $region47: #{fermion_forward.1} parent=1 // pred_check_branch
      %118 = sbr.rel (0) target = $region49
    $region48: #{fermion_forward.1} parent=1 // pred_region
      _
    $region49: #{fermion_forward.1} parent=1 // pred_fallthru
      _
    // Predicated region
    $region50: #{fermion_forward.1} parent=1 // pred_check
      _
    $region51: #{fermion_forward.1} parent=1 // pred_check_branch
      %120 = sbr.rel (0) target = $region53
    $region52: #{fermion_forward.1} parent=1 // pred_region
      _
    $region53: #{fermion_forward.1} parent=1 // pred_fallthru
      _
    // Predicated region
    $region54: #{fermion_forward.1} parent=1 // pred_check
      _
    $region55: #{fermion_forward.1} parent=1 // pred_check_branch
      %122 = sbr.rel (0) target = $region57
    $region56: #{fermion_forward.1} parent=1 // pred_region
      _
    $region57: #{fermion_forward.1} parent=1 // pred_fallthru
      _
    // Predicated region
    $region58: #{fermion_forward.1} parent=1 // pred_check
      _
    $region59: #{fermion_forward.1} parent=1 // pred_check_branch
      %124 = sbr.rel (0) target = $region61
    $region60: #{fermion_forward.1} parent=1 // pred_region
      _
    $region61: #{fermion_forward.1} parent=1 // pred_fallthru
      _
    // Predicated region
    $region62: #{fermion_forward.1} parent=1 // pred_check
      _
    $region63: #{fermion_forward.1} parent=1 // pred_check_branch
      %126 = sbr.rel (0) target = $region65
    $region64: #{fermion_forward.1} parent=1 // pred_region
      _
    $region65: #{fermion_forward.1} parent=1 // pred_fallthru
      _
    // Predicated region
    $region66: #{fermion_forward.1} parent=1 // pred_check
      _
    $region67: #{fermion_forward.1} parent=1 // pred_check_branch
      %128 = sbr.rel (0) target = $region69
    $region68: #{fermion_forward.1} parent=1 // pred_region
      _
    $region69: #{fermion_forward.1} parent=1 // pred_fallthru
      _
    // Predicated region
    $region70: #{fermion_forward.1} parent=1 // pred_check
      _
    $region71: #{fermion_forward.1} parent=1 // pred_check_branch
      %130 = sbr.rel (0) target = $region73
    $region72: #{fermion_forward.1} parent=1 // pred_region
      _
    $region73: #{fermion_forward.1} parent=1 // pred_fallthru
      _
    // Predicated region
    $region74: #{fermion_forward.1} parent=1 // pred_check
      _
    $region75: #{fermion_forward.1} parent=1 // pred_check_branch
      %132 = sbr.rel (0) target = $region77
    $region76: #{fermion_forward.1} parent=1 // pred_region
      _
    $region77: #{fermion_forward.1} parent=1 // pred_fallthru
      _
    // Predicated region
    $region78: #{fermion_forward.1} parent=1 // pred_check
      _
    $region79: #{fermion_forward.1} parent=1 // pred_check_branch
      %134 = sbr.rel (0) target = $region81
    $region80: #{fermion_forward.1} parent=1 // pred_region
      _
    $region81: #{fermion_forward.1} parent=1 // pred_fallthru
      _
    // Predicated region
    $region82: #{fermion_forward.1} parent=1 // pred_check
      _
    $region83: #{fermion_forward.1} parent=1 // pred_check_branch
      %136 = sbr.rel (0) target = $region85
    $region84: #{fermion_forward.1} parent=1 // pred_region
      _
    $region85: #{fermion_forward.1} parent=1 // pred_fallthru
      _
    // Predicated region
    $region86: #{fermion_forward.1} parent=1 // pred_check
      _
    $region87: #{fermion_forward.1} parent=1 // pred_check_branch
      %138 = sbr.rel (0) target = $region89
    $region88: #{fermion_forward.1} parent=1 // pred_region
      _
    $region89: #{fermion_forward.1} parent=1 // pred_fallthru
      _
    // Predicated region
    $region90: #{fermion_forward.1} parent=1 // pred_check
      _
    $region91: #{fermion_forward.1} parent=1 // pred_check_branch
      %140 = sbr.rel (0) target = $region93
    $region92: #{fermion_forward.1} parent=1 // pred_region
      _
    $region93: #{fermion_forward.1} parent=1 // pred_fallthru
      _
    // Predicated region
    $region94: #{fermion_forward.1} parent=1 // pred_check
      _
    $region95: #{fermion_forward.1} parent=1 // pred_check_branch
      %142 = sbr.rel (0) target = $region97
    $region96: #{fermion_forward.1} parent=1 // pred_region
      _
    $region97: #{fermion_forward.1} parent=1 // pred_fallthru
      _
    // Predicated region
    $region98: #{fermion_forward.1} parent=1 // pred_check
      _
    $region99: #{fermion_forward.1} parent=1 // pred_check_branch
      %144 = sbr.rel (0) target = $region101
    $region100: #{fermion_forward.1} parent=1 // pred_region
      _
    $region101: #{fermion_forward.1} parent=1 // pred_fallthru
      _
    // Predicated region
    $region102: #{fermion_forward.1} parent=1 // pred_check
      _
    $region103: #{fermion_forward.1} parent=1 // pred_check_branch
      %146 = sbr.rel (0) target = $region105
    $region104: #{fermion_forward.1} parent=1 // pred_region
      _
    $region105: #{fermion_forward.1} parent=1 // pred_fallthru
      _
    // Predicated region
    $region106: #{fermion_forward.1} parent=1 // pred_check
      _
    $region107: #{fermion_forward.1} parent=1 // pred_check_branch
      %148 = sbr.rel (0) target = $region109
    $region108: #{fermion_forward.1} parent=1 // pred_region
      _
    $region109: #{fermion_forward.1} parent=1 // pred_fallthru
      _
    // Predicated region
    $region110: #{fermion_forward.1} parent=1 // pred_check
      _
    $region111: #{fermion_forward.1} parent=1 // pred_check_branch
      %150 = sbr.rel (0) target = $region113
    $region112: #{fermion_forward.1} parent=1 // pred_region
      _
    $region113: #{fermion_forward.1} parent=1 // pred_fallthru
      _
    // Predicated region
    $region114: #{fermion_forward.1} parent=1 // pred_check
      _
    $region115: #{fermion_forward.1} parent=1 // pred_check_branch
      %152 = sbr.rel (0) target = $region117
    $region116: #{fermion_forward.1} parent=1 // pred_region
      _
    $region117: #{fermion_forward.1} parent=1 // pred_fallthru
      _
    // Predicated region
    $region118: #{fermion_forward.1} parent=1 // pred_check
      _
    $region119: #{fermion_forward.1} parent=1 // pred_check_branch
      %154 = sbr.rel (0) target = $region121
    $region120: #{fermion_forward.1} parent=1 // pred_region
      _
    $region121: #{fermion_forward.1} parent=1 // pred_fallthru
      _
    // Predicated region
    $region122: #{fermion_forward.1} parent=1 // pred_check
      _
    $region123: #{fermion_forward.1} parent=1 // pred_check_branch
      %156 = sbr.rel (0) target = $region125
    $region124: #{fermion_forward.1} parent=1 // pred_region
      _
    $region125: #{fermion_forward.1} parent=1 // pred_fallthru
      _
    // Predicated region
    $region126: #{fermion_forward.1} parent=1 // pred_check
      _
    $region127: #{fermion_forward.1} parent=1 // pred_check_branch
      %158 = sbr.rel (0) target = $region129
    $region128: #{fermion_forward.1} parent=1 // pred_region
      _
    $region129: #{fermion_forward.1} parent=1 // pred_fallthru
      _
    // Predicated region
    $region130: #{fermion_forward.1} parent=1 // pred_check
      _
    $region131: #{fermion_forward.1} parent=1 // pred_check_branch
      %160 = sbr.rel (0) target = $region133
    $region132: #{fermion_forward.1} parent=1 // pred_region
      _
    $region133: #{fermion_forward.1} parent=1 // pred_fallthru
      _
    // Predicated region
    $region134: #{fermion_forward.1} parent=1 // pred_check
      _
    $region135: #{fermion_forward.1} parent=1 // pred_check_branch
      %162 = sbr.rel (0) target = $region137
    $region136: #{fermion_forward.1} parent=1 // pred_region
      _
    $region137: #{fermion_forward.1} parent=1 // pred_fallthru
      _
    // Predicated region
    $region138: #{fermion_forward.1} parent=1 // pred_check
      _
    $region139: #{fermion_forward.1} parent=1 // pred_check_branch
      %164 = sbr.rel (0) target = $region141
    $region140: #{fermion_forward.1} parent=1 // pred_region
      _
    $region141: #{fermion_forward.1} parent=1 // pred_fallthru
      _
    // Predicated region
    $region142: #{fermion_forward.1} parent=1 // pred_check
      _
    $region143: #{fermion_forward.1} parent=1 // pred_check_branch
      %166 = sbr.rel (0) target = $region145
    $region144: #{fermion_forward.1} parent=1 // pred_region
      _
    $region145: #{fermion_forward.1} parent=1 // pred_fallthru
      _
    // Predicated region
    $region146: #{fermion_forward.1} parent=1 // pred_check
      _
    $region147: #{fermion_forward.1} parent=1 // pred_check_branch
      %168 = sbr.rel (0) target = $region149
    $region148: #{fermion_forward.1} parent=1 // pred_region
      _
    $region149: #{fermion_forward.1} parent=1 // pred_fallthru
      _
    // Predicated region
    $region150: #{fermion_forward.1} parent=1 // pred_check
      _
    $region151: #{fermion_forward.1} parent=1 // pred_check_branch
      %170 = sbr.rel (0) target = $region153
    $region152: #{fermion_forward.1} parent=1 // pred_region
      _
    $region153: #{fermion_forward.1} parent=1 // pred_fallthru
      _
    // Predicated region
    $region154: #{fermion_forward.1} parent=1 // pred_check
      _
    $region155: #{fermion_forward.1} parent=1 // pred_check_branch
      %172 = sbr.rel (0) target = $region157
    $region156: #{fermion_forward.1} parent=1 // pred_region
      _
    $region157: #{fermion_forward.1} parent=1 // pred_fallthru
      _
    // Predicated region
    $region158: #{fermion_forward.1} parent=1 // pred_check
      _
    $region159: #{fermion_forward.1} parent=1 // pred_check_branch
      %174 = sbr.rel (0) target = $region161
    $region160: #{fermion_forward.1} parent=1 // pred_region
      _
    $region161: #{fermion_forward.1} parent=1 // pred_fallthru
      _
    // Predicated region
    $region162: #{fermion_forward.1} parent=1 // pred_check
      _
    $region163: #{fermion_forward.1} parent=1 // pred_check_branch
      %176 = sbr.rel (0) target = $region165
    $region164: #{fermion_forward.1} parent=1 // pred_region
      _
    $region165: #{fermion_forward.1} parent=1 // pred_fallthru
      _
    // Predicated region
    $region166: #{fermion_forward.1} parent=1 // pred_check
      _
    $region167: #{fermion_forward.1} parent=1 // pred_check_branch
      %178 = sbr.rel (0) target = $region169
    $region168: #{fermion_forward.1} parent=1 // pred_region
      _
    $region169: #{fermion_forward.1} parent=1 // pred_fallthru
      _
    // Predicated region
    $region170: #{fermion_forward.1} parent=1 // pred_check
      _
    $region171: #{fermion_forward.1} parent=1 // pred_check_branch
      %180 = sbr.rel (0) target = $region173
    $region172: #{fermion_forward.1} parent=1 // pred_region
      _
    $region173: #{fermion_forward.1} parent=1 // pred_fallthru
      _
    // Predicated region
    $region174: #{fermion_forward.1} parent=1 // pred_check
      _
    $region175: #{fermion_forward.1} parent=1 // pred_check_branch
      %182 = sbr.rel (0) target = $region177
    $region176: #{fermion_forward.1} parent=1 // pred_region
      _
    $region177: #{fermion_forward.1} parent=1 // pred_fallthru
      _
    %v184 = vld [vmem:[%s1] sm:$0xff]
    %v185 = vld [vmem:[%s1 + $0x8] sm:$0xff]
    %v186 = vld [vmem:[%s1 + $0x10] sm:$0xff]
    %v187 = vld [vmem:[%s1 + $0x18] sm:$0xff]
    %v188 = vld [vmem:[%s1 + $0x20] sm:$0xff]
    %v189 = vld [vmem:[%s1 + $0x28] sm:$0xff]
    %v190 = vld [vmem:[%s1 + $0x30] sm:$0xff]
    %v191 = vld [vmem:[%s1 + $0x38] sm:$0xff]
    %v192 = vlaneseq
    %v193 = vand.u32 %v192, 127
    %194 = vset.pattern.permute.xlu0 0
    %195 = vperm.xlu0 %194, %v184
    %v196 = vpop.permute.xlu0 %195
    %197 = vset.pattern.permute.xlu0 0
    %198 = vperm.xlu0 %197, %v185
    %v199 = vpop.permute.xlu0 %198
    %200 = vset.pattern.permute.xlu0 0
    %201 = vperm.xlu0 %200, %v186
    %v202 = vpop.permute.xlu0 %201
    %203 = vset.pattern.permute.xlu0 0
    %204 = vperm.xlu0 %203, %v187
    %v205 = vpop.permute.xlu0 %204
    %206 = vset.pattern.permute.xlu0 0
    %207 = vperm.xlu0 %206, %v188
    %v208 = vpop.permute.xlu0 %207
    %209 = vset.pattern.permute.xlu0 0
    %210 = vperm.xlu0 %209, %v189
    %v211 = vpop.permute.xlu0 %210
    %212 = vset.pattern.permute.xlu0 0
    %213 = vperm.xlu0 %212, %v190
    %v214 = vpop.permute.xlu0 %213
    %215 = vset.pattern.permute.xlu0 0
    %216 = vperm.xlu0 %215, %v191
    %v217 = vpop.permute.xlu0 %216
    %vm218 = vcmp.eq.s32.totalorder %v196, %v193
    %vm219 = vcmp.eq.s32.totalorder %v199, %v193
    %vm220 = vcmp.eq.s32.totalorder %v202, %v193
    %vm221 = vcmp.eq.s32.totalorder %v205, %v193
    %vm222 = vcmp.eq.s32.totalorder %v208, %v193
    %vm223 = vcmp.eq.s32.totalorder %v211, %v193
    %vm224 = vcmp.eq.s32.totalorder %v214, %v193
    %vm225 = vcmp.eq.s32.totalorder %v217, %v193
    %v226 = vsel %vm218, 1, 0
    %v227 = vsel %vm219, 1, 0
    %v228 = vsel %vm220, 1, 0
    %v229 = vsel %vm221, 1, 0
    %v230 = vsel %vm222, 1, 0
    %v231 = vsel %vm223, 1, 0
    %v232 = vsel %vm224, 1, 0
    %v233 = vsel %vm225, 1, 0
    %v234 = vcvt.s32.f32 %v226
    %v235 = vcvt.s32.f32 %v227
    %v236 = vcvt.s32.f32 %v228
    %v237 = vcvt.s32.f32 %v229
    %v238 = vcvt.s32.f32 %v230
    %v239 = vcvt.s32.f32 %v231
    %v240 = vcvt.s32.f32 %v232
    %v241 = vcvt.s32.f32 %v233
    %v242 = vpack.c.bf16 %v235, %v234
    %v243 = vpack.c.bf16 %v237, %v236
    %v244 = vpack.c.bf16 %v239, %v238
    %v245 = vpack.c.bf16 %v241, %v240
    %v246 = vld [vmem:[%s7] sm:$0xf]
    %v247 = vld [vmem:[%s7 + $0x4] sm:$0xf]
    %v248 = vld [vmem:[%s7 + $0x8] sm:$0xf]
    %v249 = vld [vmem:[%s7 + $0xc] sm:$0xf]
    %v250 = vld [vmem:[%s7 + $0x10] sm:$0xf]
    %v251 = vld [vmem:[%s7 + $0x14] sm:$0xf]
    %v252 = vld [vmem:[%s7 + $0x18] sm:$0xf]
    %v253 = vld [vmem:[%s7 + $0x1c] sm:$0xf]
    %v254 = vld [vmem:[%s7 + $0x20] sm:$0xf]
    %v255 = vld [vmem:[%s7 + $0x24] sm:$0xf]
    %v256 = vld [vmem:[%s7 + $0x28] sm:$0xf]
    %v257 = vld [vmem:[%s7 + $0x2c] sm:$0xf]
    %v258 = vld [vmem:[%s7 + $0x30] sm:$0xf]
    %v259 = vld [vmem:[%s7 + $0x34] sm:$0xf]
    %v260 = vld [vmem:[%s7 + $0x38] sm:$0xf]
    %v261 = vld [vmem:[%s7 + $0x3c] sm:$0xf]
    %v262 = vld [vmem:[%s5] sm:$0xff]
    %v263 = vld [vmem:[%s5 + $0x8] sm:$0xff]
    %v264 = vld [vmem:[%s5 + $0x10] sm:$0xff]
    %v265 = vld [vmem:[%s5 + $0x18] sm:$0xff]
    %v266 = vld [vmem:[%s5 + $0x20] sm:$0xff]
    %v267 = vld [vmem:[%s5 + $0x28] sm:$0xff]
    %v268 = vld [vmem:[%s5 + $0x30] sm:$0xff]
    %v269 = vld [vmem:[%s5 + $0x38] sm:$0xff]
    %vm270 = vcmp.eq.s32.totalorder %v262, 0
    %vm271 = vcmp.eq.s32.totalorder %v263, 0
    %vm272 = vcmp.eq.s32.totalorder %v264, 0
    %vm273 = vcmp.eq.s32.totalorder %v265, 0
    %vm274 = vcmp.eq.s32.totalorder %v266, 0
    %vm275 = vcmp.eq.s32.totalorder %v267, 0
    %vm276 = vcmp.eq.s32.totalorder %v268, 0
    %vm277 = vcmp.eq.s32.totalorder %v269, 0
    %v278 = vld [vmem:[%s11] sm:$0x1]
    %v279 = vld [vmem:[%s11 + $0x1] sm:$0x1]
    %v280 = vsel %vm270, 1, 0
    %v281 = vsel %vm271, 1, 0
    %v282 = vsel %vm272, 1, 0
    %v283 = vsel %vm273, 1, 0
    %v284 = vsel %vm274, 1, 0
    %v285 = vsel %vm275, 1, 0
    %v286 = vsel %vm276, 1, 0
    %v287 = vsel %vm277, 1, 0
    %288 = vset.pattern.permute.xlu0 0
    %289 = vperm.xlu0 %288, %v280
    %v290 = vpop.permute.xlu0 %289
    %291 = vset.pattern.permute.xlu0 0
    %292 = vperm.xlu0 %291, %v281
    %v293 = vpop.permute.xlu0 %292
    %294 = vset.pattern.permute.xlu0 0
    %295 = vperm.xlu0 %294, %v282
    %v296 = vpop.permute.xlu0 %295
    %297 = vset.pattern.permute.xlu0 0
    %298 = vperm.xlu0 %297, %v283
    %v299 = vpop.permute.xlu0 %298
    %300 = vset.pattern.permute.xlu0 0
    %301 = vperm.xlu0 %300, %v284
    %v302 = vpop.permute.xlu0 %301
    %303 = vset.pattern.permute.xlu0 0
    %304 = vperm.xlu0 %303, %v285
    %v305 = vpop.permute.xlu0 %304
    %306 = vset.pattern.permute.xlu0 0
    %307 = vperm.xlu0 %306, %v286
    %v308 = vpop.permute.xlu0 %307
    %309 = vset.pattern.permute.xlu0 0
    %310 = vperm.xlu0 %309, %v287
    %v311 = vpop.permute.xlu0 %310
    %vm312 = vcmp.eq.s32.totalorder %v290, 1
    %vm313 = vcmp.eq.s32.totalorder %v293, 1
    %vm314 = vcmp.eq.s32.totalorder %v296, 1
    %vm315 = vcmp.eq.s32.totalorder %v299, 1
    %vm316 = vcmp.eq.s32.totalorder %v302, 1
    %vm317 = vcmp.eq.s32.totalorder %v305, 1
    %vm318 = vcmp.eq.s32.totalorder %v308, 1
    %vm319 = vcmp.eq.s32.totalorder %v311, 1
    %v320 = vperm.slane %v278, 0
    %v321 = vperm.slane %v279, 0
    %v322 = vsel %vm312, %v320, %v321
    %v323 = vsel %vm313, %v320, %v321
    %v324 = vsel %vm314, %v320, %v321
    %v325 = vsel %vm315, %v320, %v321
    %v326 = vsel %vm316, %v320, %v321
    %v327 = vsel %vm317, %v320, %v321
    %v328 = vsel %vm318, %v320, %v321
    %v329 = vsel %vm319, %v320, %v321
    %v330 = vld [vmem:[%s9] sm:$0xff]
    %v331 = vld [vmem:[%s9 + $0x8] sm:$0xff]
    %v332 = vld [vmem:[%s9 + $0x10] sm:$0xff]
    %v333 = vld [vmem:[%s9 + $0x18] sm:$0xff]
    %v334 = vld [vmem:[%s9 + $0x20] sm:$0xff]
    %v335 = vld [vmem:[%s9 + $0x28] sm:$0xff]
    %v336 = vld [vmem:[%s9 + $0x30] sm:$0xff]
    %v337 = vld [vmem:[%s9 + $0x38] sm:$0xff]
    %v354 = vunpack.c.l.b16 %v246
    %v355 = vunpack.c.l.b16 %v247
    %v356 = vunpack.c.l.b16 %v248
    %v357 = vunpack.c.l.b16 %v249
    %v358 = vunpack.c.l.b16 %v250
    %v359 = vunpack.c.l.b16 %v251
    %v360 = vunpack.c.l.b16 %v252
    %v361 = vunpack.c.l.b16 %v253
    %v362 = vunpack.c.l.b16 %v254
    %v363 = vunpack.c.l.b16 %v255
    %v364 = vunpack.c.l.b16 %v256
    %v365 = vunpack.c.l.b16 %v257
    %v366 = vunpack.c.l.b16 %v258
    %v367 = vunpack.c.l.b16 %v259
    %v368 = vunpack.c.l.b16 %v260
    %v369 = vunpack.c.l.b16 %v261
    %v370 = vpack.c.b16 %v355, %v354
    %v371 = vpack.c.b16 %v357, %v356
    %v372 = vpack.c.b16 %v359, %v358
    %v373 = vpack.c.b16 %v361, %v360
    %v374 = vpack.c.b16 %v363, %v362
    %v375 = vpack.c.b16 %v365, %v364
    %v376 = vpack.c.b16 %v367, %v366
    %v377 = vpack.c.b16 %v369, %v368
    %386 = vmatpush.bf16.msra.mxu0 %v377
    %387 = vmatpush.bf16.msra.mxu0 %v376
    %388 = vmatpush.bf16.msra.mxu0 %v375
    %389 = vmatpush.bf16.msra.mxu0 %v374
    %390 = vmatpush.bf16.msra.mxu0 %v373
    %391 = vmatpush.bf16.msra.mxu0 %v372
    %392 = vmatpush.bf16.msra.mxu0 %v371
    %393 = vmatpush.bf16.msra.mxu0 %v370
    %394 = vmatmul.bf16.gmra.mxu0 %v242
    %v395 = vpop.f32.mrf.mxu0
    %v396 = vadd.f32 %v330, %v395
    %v397 = vpop.f32.mrf.mxu0
    %v398 = vadd.f32 %v331, %v397
    %399 = vmatmul.bf16.gmra.mxu0 %v243
    %v400 = vpop.f32.mrf.mxu0
    %v401 = vadd.f32 %v332, %v400
    %v402 = vpop.f32.mrf.mxu0
    %v403 = vadd.f32 %v333, %v402
    %404 = vmatmul.bf16.gmra.mxu0 %v244
    %v405 = vpop.f32.mrf.mxu0
    %v406 = vadd.f32 %v334, %v405
    %v407 = vpop.f32.mrf.mxu0
    %v408 = vadd.f32 %v335, %v407
    %409 = vmatmul.bf16.gmra.mxu0 %v245
    %v410 = vpop.f32.mrf.mxu0
    %v411 = vadd.f32 %v336, %v410
    %v412 = vpop.f32.mrf.mxu0
    %v413 = vadd.f32 %v337, %v412
    %414 = vdwg.mxu0
    %v415 = vadd.f32 %v396, %v322
    %v416 = vadd.f32 %v398, %v323
    %v417 = vadd.f32 %v401, %v324
    %v418 = vadd.f32 %v403, %v325
    %v419 = vadd.f32 %v406, %v326
    %v420 = vadd.f32 %v408, %v327
    %v421 = vadd.f32 %v411, %v328
    %v422 = vadd.f32 %v413, %v329
    %v423 = vld [vmem:[%s13] sm:$0x1]
    %v424 = vld [vmem:[%s15] sm:$0x1]
    %vm425 = vcmask 523264
    %v426 = vsel %vm425, %v415, 0.0
    %427 = vadd.xlane.f32.xlu0 %v426
    %v428 = vpop.xlane.xlu0 %427
    %v429 = vsel %vm425, %v416, 0.0
    %430 = vadd.xlane.f32.xlu0 %v429
    %v431 = vpop.xlane.xlu0 %430
    %v432 = vsel %vm425, %v417, 0.0
    %433 = vadd.xlane.f32.xlu0 %v432
    %v434 = vpop.xlane.xlu0 %433
    %v435 = vsel %vm425, %v418, 0.0
    %436 = vadd.xlane.f32.xlu0 %v435
    %v437 = vpop.xlane.xlu0 %436
    %v438 = vsel %vm425, %v419, 0.0
    %439 = vadd.xlane.f32.xlu0 %v438
    %v440 = vpop.xlane.xlu0 %439
    %v441 = vsel %vm425, %v420, 0.0
    %442 = vadd.xlane.f32.xlu0 %v441
    %v443 = vpop.xlane.xlu0 %442
    %v444 = vsel %vm425, %v421, 0.0
    %445 = vadd.xlane.f32.xlu0 %v444
    %v446 = vpop.xlane.xlu0 %445
    %v447 = vsel %vm425, %v422, 0.0
    %448 = vadd.xlane.f32.xlu0 %v447
    %v449 = vpop.xlane.xlu0 %448
    %v450 = vrcp.pop 64.0
    %v451 = vmul.f32 64.0, %v450
    %v452 = vsub.f32 1.0, %v451
    %v453 = vmul.f32 %v450, %v452
    %v454 = vadd.f32 %v450, %v453
    %vm455 = vweird.f32 %v450
    %v456 = vsel %vm455, %v450, %v454
    %v457 = vmul.f32 %v428, %v456
    %v458 = vmul.f32 %v431, %v456
    %v459 = vmul.f32 %v434, %v456
    %v460 = vmul.f32 %v437, %v456
    %v461 = vmul.f32 %v440, %v456
    %v462 = vmul.f32 %v443, %v456
    %v463 = vmul.f32 %v446, %v456
    %v464 = vmul.f32 %v449, %v456
    %v465 = vsub.f32 %v415, %v457
    %v466 = vsub.f32 %v416, %v458
    %v467 = vsub.f32 %v417, %v459
    %v468 = vsub.f32 %v418, %v460
    %v469 = vsub.f32 %v419, %v461
    %v470 = vsub.f32 %v420, %v462
    %v471 = vsub.f32 %v421, %v463
    %v472 = vsub.f32 %v422, %v464
    %v473 = vmul.f32 %v465, %v465
    %v474 = vmul.f32 %v466, %v466
    %v475 = vmul.f32 %v467, %v467
    %v476 = vmul.f32 %v468, %v468
    %v477 = vmul.f32 %v469, %v469
    %v478 = vmul.f32 %v470, %v470
    %v479 = vmul.f32 %v471, %v471
    %v480 = vmul.f32 %v472, %v472
    %v481 = vsel %vm425, %v473, 0.0
    %482 = vadd.xlane.f32.xlu0 %v481
    %v483 = vpop.xlane.xlu0 %482
    %v484 = vsel %vm425, %v474, 0.0
    %485 = vadd.xlane.f32.xlu0 %v484
    %v486 = vpop.xlane.xlu0 %485
    %v487 = vsel %vm425, %v475, 0.0
    %488 = vadd.xlane.f32.xlu0 %v487
    %v489 = vpop.xlane.xlu0 %488
    %v490 = vsel %vm425, %v476, 0.0
    %491 = vadd.xlane.f32.xlu0 %v490
    %v492 = vpop.xlane.xlu0 %491
    %v493 = vsel %vm425, %v477, 0.0
    %494 = vadd.xlane.f32.xlu0 %v493
    %v495 = vpop.xlane.xlu0 %494
    %v496 = vsel %vm425, %v478, 0.0
    %497 = vadd.xlane.f32.xlu0 %v496
    %v498 = vpop.xlane.xlu0 %497
    %v499 = vsel %vm425, %v479, 0.0
    %500 = vadd.xlane.f32.xlu0 %v499
    %v501 = vpop.xlane.xlu0 %500
    %v502 = vsel %vm425, %v480, 0.0
    %503 = vadd.xlane.f32.xlu0 %v502
    %v504 = vpop.xlane.xlu0 %503
    %v505 = vmul.f32 %v483, %v456
    %v506 = vmul.f32 %v486, %v456
    %v507 = vmul.f32 %v489, %v456
    %v508 = vmul.f32 %v492, %v456
    %v509 = vmul.f32 %v495, %v456
    %v510 = vmul.f32 %v498, %v456
    %v511 = vmul.f32 %v501, %v456
    %v512 = vmul.f32 %v504, %v456
    %v513 = vadd.f32 %v505, 1e-12
    %v514 = vadd.f32 %v506, 1e-12
    %v515 = vadd.f32 %v507, 1e-12
    %v516 = vadd.f32 %v508, 1e-12
    %v517 = vadd.f32 %v509, 1e-12
    %v518 = vadd.f32 %v510, 1e-12
    %v519 = vadd.f32 %v511, 1e-12
    %v520 = vadd.f32 %v512, 1e-12
    %v521 = vrsqrt.pop %v513
    %v522 = vmul.f32 %v521, %v513
    %v523 = vmul.f32 %v522, %v521
    %v524 = vmul.f32 0.5, %v523
    %v525 = vsub.f32 1.5, %v524
    %v526 = vmul.f32 %v521, %v525
    %vm527 = vweird.f32 %v513
    %vm528 = vweird.f32 %v521
    %vm529 = vmor %vm527, %vm528
    %v530 = vsel %vm529, %v521, %v526
    %v531 = vrsqrt.pop %v514
    %v532 = vmul.f32 %v531, %v514
    %v533 = vmul.f32 %v532, %v531
    %v534 = vmul.f32 0.5, %v533
    %v535 = vsub.f32 1.5, %v534
    %v536 = vmul.f32 %v531, %v535
    %vm537 = vweird.f32 %v514
    %vm538 = vweird.f32 %v531
    %vm539 = vmor %vm537, %vm538
    %v540 = vsel %vm539, %v531, %v536
    %v541 = vrsqrt.pop %v515
    %v542 = vmul.f32 %v541, %v515
    %v543 = vmul.f32 %v542, %v541
    %v544 = vmul.f32 0.5, %v543
    %v545 = vsub.f32 1.5, %v544
    %v546 = vmul.f32 %v541, %v545
    %vm547 = vweird.f32 %v515
    %vm548 = vweird.f32 %v541
    %vm549 = vmor %vm547, %vm548
    %v550 = vsel %vm549, %v541, %v546
    %v551 = vrsqrt.pop %v516
    %v552 = vmul.f32 %v551, %v516
    %v553 = vmul.f32 %v552, %v551
    %v554 = vmul.f32 0.5, %v553
    %v555 = vsub.f32 1.5, %v554
    %v556 = vmul.f32 %v551, %v555
    %vm557 = vweird.f32 %v516
    %vm558 = vweird.f32 %v551
    %vm559 = vmor %vm557, %vm558
    %v560 = vsel %vm559, %v551, %v556
    %v561 = vrsqrt.pop %v517
    %v562 = vmul.f32 %v561, %v517
    %v563 = vmul.f32 %v562, %v561
    %v564 = vmul.f32 0.5, %v563
    %v565 = vsub.f32 1.5, %v564
    %v566 = vmul.f32 %v561, %v565
    %vm567 = vweird.f32 %v517
    %vm568 = vweird.f32 %v561
    %vm569 = vmor %vm567, %vm568
    %v570 = vsel %vm569, %v561, %v566
    %v571 = vrsqrt.pop %v518
    %v572 = vmul.f32 %v571, %v518
    %v573 = vmul.f32 %v572, %v571
    %v574 = vmul.f32 0.5, %v573
    %v575 = vsub.f32 1.5, %v574
    %v576 = vmul.f32 %v571, %v575
    %vm577 = vweird.f32 %v518
    %vm578 = vweird.f32 %v571
    %vm579 = vmor %vm577, %vm578
    %v580 = vsel %vm579, %v571, %v576
    %v581 = vrsqrt.pop %v519
    %v582 = vmul.f32 %v581, %v519
    %v583 = vmul.f32 %v582, %v581
    %v584 = vmul.f32 0.5, %v583
    %v585 = vsub.f32 1.5, %v584
    %v586 = vmul.f32 %v581, %v585
    %vm587 = vweird.f32 %v519
    %vm588 = vweird.f32 %v581
    %vm589 = vmor %vm587, %vm588
    %v590 = vsel %vm589, %v581, %v586
    %v591 = vrsqrt.pop %v520
    %v592 = vmul.f32 %v591, %v520
    %v593 = vmul.f32 %v592, %v591
    %v594 = vmul.f32 0.5, %v593
    %v595 = vsub.f32 1.5, %v594
    %v596 = vmul.f32 %v591, %v595
    %vm597 = vweird.f32 %v520
    %vm598 = vweird.f32 %v591
    %vm599 = vmor %vm597, %vm598
    %v600 = vsel %vm599, %v591, %v596
    %v601 = vmul.f32 %v465, %v530
    %v602 = vmul.f32 %v466, %v540
    %v603 = vmul.f32 %v467, %v550
    %v604 = vmul.f32 %v468, %v560
    %v605 = vmul.f32 %v469, %v570
    %v606 = vmul.f32 %v470, %v580
    %v607 = vmul.f32 %v471, %v590
    %v608 = vmul.f32 %v472, %v600
    %v610 = vperm.slane %v423, 0
    %v612 = vmul.f32 %v601, %v610
    %v613 = vmul.f32 %v602, %v610
    %v614 = vmul.f32 %v603, %v610
    %v615 = vmul.f32 %v604, %v610
    %v616 = vmul.f32 %v605, %v610
    %v617 = vmul.f32 %v606, %v610
    %v618 = vmul.f32 %v607, %v610
    %v619 = vmul.f32 %v608, %v610
    %v621 = vperm.slane %v424, 0
    %v623 = vadd.f32 %v612, %v621
    %v624 = vadd.f32 %v613, %v621
    %v625 = vadd.f32 %v614, %v621
    %v626 = vadd.f32 %v615, %v621
    %v627 = vadd.f32 %v616, %v621
    %v628 = vadd.f32 %v617, %v621
    %v629 = vadd.f32 %v618, %v621
    %v630 = vadd.f32 %v619, %v621
    %v631 = vld [vmem:[%s3] sm:$0x3]
    %v632 = vcvt.s32.f32 %v631
    %v633 = vsub.f32 1.0, %v632
    %v634 = vmul.f32 %v633, -1e+09
    %v635 = vld [vmem:[%s17] sm:$0xf]
    %v636 = vld [vmem:[%s17 + $0x4] sm:$0xf]
    %v637 = vld [vmem:[%s17 + $0x8] sm:$0xf]
    %v638 = vld [vmem:[%s17 + $0xc] sm:$0xf]
    %v639 = vld [vmem:[%s17 + $0x10] sm:$0xf]
    %v640 = vld [vmem:[%s17 + $0x14] sm:$0xf]
    %v641 = vld [vmem:[%s17 + $0x18] sm:$0xf]
    %v642 = vld [vmem:[%s17 + $0x1c] sm:$0xf]
    %v643 = vld [vmem:[%s19] sm:$0x1]
    %v644 = vld [vmem:[%s21] sm:$0xf]
    %v645 = vld [vmem:[%s21 + $0x4] sm:$0xf]
    %v646 = vld [vmem:[%s21 + $0x8] sm:$0xf]
    %v647 = vld [vmem:[%s21 + $0xc] sm:$0xf]
    %v648 = vld [vmem:[%s21 + $0x10] sm:$0xf]
    %v649 = vld [vmem:[%s21 + $0x14] sm:$0xf]
    %v650 = vld [vmem:[%s21 + $0x18] sm:$0xf]
    %v651 = vld [vmem:[%s21 + $0x1c] sm:$0xf]
    %v652 = vld [vmem:[%s23] sm:$0x1]
    %v653 = vld [vmem:[%s25] sm:$0xf]
    %v654 = vld [vmem:[%s25 + $0x4] sm:$0xf]
    %v655 = vld [vmem:[%s25 + $0x8] sm:$0xf]
    %v656 = vld [vmem:[%s25 + $0xc] sm:$0xf]
    %v657 = vld [vmem:[%s25 + $0x10] sm:$0xf]
    %v658 = vld [vmem:[%s25 + $0x14] sm:$0xf]
    %v659 = vld [vmem:[%s25 + $0x18] sm:$0xf]
    %v660 = vld [vmem:[%s25 + $0x1c] sm:$0xf]
    %v661 = vld [vmem:[%s27] sm:$0x1]
    %v662 = vld [vmem:[%s29] sm:$0xf]
    %v663 = vld [vmem:[%s29 + $0x4] sm:$0xf]
    %v664 = vld [vmem:[%s29 + $0x8] sm:$0xf]
    %v665 = vld [vmem:[%s29 + $0xc] sm:$0xf]
    %v666 = vld [vmem:[%s29 + $0x10] sm:$0xf]
    %v667 = vld [vmem:[%s29 + $0x14] sm:$0xf]
    %v668 = vld [vmem:[%s29 + $0x18] sm:$0xf]
    %v669 = vld [vmem:[%s29 + $0x1c] sm:$0xf]
    %v670 = vld [vmem:[%s31] sm:$0x1]
    %v671 = vld [vmem:[%s33] sm:$0x1]
    %v672 = vld [vmem:[%s35] sm:$0x1]
    %v673 = vld [vmem:[%s37] sm:$0xf]
    %v674 = vld [vmem:[%s37 + $0x4] sm:$0xf]
    %v675 = vld [vmem:[%s37 + $0x8] sm:$0xf]
    %v676 = vld [vmem:[%s37 + $0xc] sm:$0xf]
    %v677 = vld [vmem:[%s37 + $0x10] sm:$0xf]
    %v678 = vld [vmem:[%s37 + $0x14] sm:$0xf]
    %v679 = vld [vmem:[%s37 + $0x18] sm:$0xf]
    %v680 = vld [vmem:[%s37 + $0x1c] sm:$0xf]
    %v681 = vld [vmem:[%s39] sm:$0x1]
    %v682 = vld [vmem:[%s41] sm:$0xf]
    %v683 = vld [vmem:[%s41 + $0x4] sm:$0xf]
    %v684 = vld [vmem:[%s41 + $0x8] sm:$0xf]
    %v685 = vld [vmem:[%s41 + $0xc] sm:$0xf]
    %v686 = vld [vmem:[%s41 + $0x10] sm:$0xf]
    %v687 = vld [vmem:[%s41 + $0x14] sm:$0xf]
    %v688 = vld [vmem:[%s41 + $0x18] sm:$0xf]
    %v689 = vld [vmem:[%s41 + $0x1c] sm:$0xf]
    %v690 = vld [vmem:[%s41 + $0x20] sm:$0xf]
    %v691 = vld [vmem:[%s41 + $0x24] sm:$0xf]
    %v692 = vld [vmem:[%s41 + $0x28] sm:$0xf]
    %v693 = vld [vmem:[%s41 + $0x2c] sm:$0xf]
    %v694 = vld [vmem:[%s41 + $0x30] sm:$0xf]
    %v695 = vld [vmem:[%s41 + $0x34] sm:$0xf]
    %v696 = vld [vmem:[%s41 + $0x38] sm:$0xf]
    %v697 = vld [vmem:[%s41 + $0x3c] sm:$0xf]
    %v698 = vld [vmem:[%s43] sm:$0x1]
    %v699 = vld [vmem:[%s45] sm:$0x1]
    %v700 = vld [vmem:[%s47] sm:$0x1]
    %v701 = vpack.c.bf16 %v624, %v623
    %v702 = vpack.c.bf16 %v626, %v625
    %v703 = vpack.c.bf16 %v628, %v627
    %v704 = vpack.c.bf16 %v630, %v629
    %v706 = vperm.slane %v643, 0
    %v716 = vunpack.c.l.b16 %v635
    %v717 = vunpack.c.l.b16 %v636
    %v718 = vunpack.c.l.b16 %v637
    %v719 = vunpack.c.l.b16 %v638
    %v720 = vunpack.c.l.b16 %v639
    %v721 = vunpack.c.l.b16 %v640
    %v722 = vunpack.c.l.b16 %v641
    %v723 = vunpack.c.l.b16 %v642
    %v724 = vpack.c.b16 %v717, %v716
    %v725 = vpack.c.b16 %v719, %v718
    %v726 = vpack.c.b16 %v721, %v720
    %v727 = vpack.c.b16 %v723, %v722
    %v733 = vsel %vm425, %v701, 0
    %v736 = vsel %vm425, %v702, 0
    %v739 = vsel %vm425, %v703, 0
    %v742 = vsel %vm425, %v704, 0
    %744 = vmatpush.bf16.msra.mxu0 0
    %745 = vmatpush.bf16.msra.mxu0 0
    %746 = vmatpush.bf16.msra.mxu0 0
    %747 = vmatpush.bf16.msra.mxu0 0
    %748 = vmatpush.bf16.msra.mxu0 %v727
    %749 = vmatpush.bf16.msra.mxu0 %v726
    %750 = vmatpush.bf16.msra.mxu0 %v725
    %751 = vmatpush.bf16.msra.mxu0 %v724
    %752 = vmatmul.bf16.gmra.mxu0 %v733
    %v753 = vpop.f32.mrf.mxu0
    %v754 = vadd.f32 %v706, %v753
    %v755 = vpop.f32.mrf.mxu0
    %v756 = vadd.f32 %v706, %v755
    %757 = vmatmul.bf16.gmra.mxu0 %v736
    %v758 = vpop.f32.mrf.mxu0
    %v759 = vadd.f32 %v706, %v758
    %v760 = vpop.f32.mrf.mxu0
    %v761 = vadd.f32 %v706, %v760
    %762 = vmatmul.bf16.gmra.mxu0 %v739
    %v763 = vpop.f32.mrf.mxu0
    %v764 = vadd.f32 %v706, %v763
    %v765 = vpop.f32.mrf.mxu0
    %v766 = vadd.f32 %v706, %v765
    %767 = vmatmul.bf16.gmra.mxu0 %v742
    %v768 = vpop.f32.mrf.mxu0
    %v769 = vadd.f32 %v706, %v768
    %v770 = vpop.f32.mrf.mxu0
    %v771 = vadd.f32 %v706, %v770
    %772 = vdwg.mxu0
    %v773 = vmul.f32 %v754, 0.25
    %v774 = vmul.f32 %v756, 0.25
    %v775 = vmul.f32 %v759, 0.25
    %v776 = vmul.f32 %v761, 0.25
    %v777 = vmul.f32 %v764, 0.25
    %v778 = vmul.f32 %v766, 0.25
    %v779 = vmul.f32 %v769, 0.25
    %v780 = vmul.f32 %v771, 0.25
    %v782 = vperm.slane %v652, 0
    %v792 = vunpack.c.l.b16 %v644
    %v793 = vunpack.c.l.b16 %v645
    %v794 = vunpack.c.l.b16 %v646
    %v795 = vunpack.c.l.b16 %v647
    %v796 = vunpack.c.l.b16 %v648
    %v797 = vunpack.c.l.b16 %v649
    %v798 = vunpack.c.l.b16 %v650
    %v799 = vunpack.c.l.b16 %v651
    %v800 = vpack.c.b16 %v793, %v792
    %v801 = vpack.c.b16 %v795, %v794
    %v802 = vpack.c.b16 %v797, %v796
    %v803 = vpack.c.b16 %v799, %v798
    %808 = vmatpush.bf16.msra.mxu0 0
    %809 = vmatpush.bf16.msra.mxu0 0
    %810 = vmatpush.bf16.msra.mxu0 0
    %811 = vmatpush.bf16.msra.mxu0 0
    %812 = vmatpush.bf16.msra.mxu0 %v803
    %813 = vmatpush.bf16.msra.mxu0 %v802
    %814 = vmatpush.bf16.msra.mxu0 %v801
    %815 = vmatpush.bf16.msra.mxu0 %v800
    %816 = vmatmul.bf16.gmra.mxu0 %v733
    %v817 = vpop.f32.mrf.mxu0
    %v818 = vadd.f32 %v782, %v817
    %v819 = vpop.f32.mrf.mxu0
    %v820 = vadd.f32 %v782, %v819
    %821 = vmatmul.bf16.gmra.mxu0 %v736
    %v822 = vpop.f32.mrf.mxu0
    %v823 = vadd.f32 %v782, %v822
    %v824 = vpop.f32.mrf.mxu0
    %v825 = vadd.f32 %v782, %v824
    %826 = vmatmul.bf16.gmra.mxu0 %v739
    %v827 = vpop.f32.mrf.mxu0
    %v828 = vadd.f32 %v782, %v827
    %v829 = vpop.f32.mrf.mxu0
    %v830 = vadd.f32 %v782, %v829
    %831 = vmatmul.bf16.gmra.mxu0 %v742
    %v832 = vpop.f32.mrf.mxu0
    %v833 = vadd.f32 %v782, %v832
    %v834 = vpop.f32.mrf.mxu0
    %v835 = vadd.f32 %v782, %v834
    %836 = vdwg.mxu0
    %v838 = vperm.slane %v661, 0
    %v848 = vunpack.c.l.b16 %v653
    %v849 = vunpack.c.l.b16 %v654
    %v850 = vunpack.c.l.b16 %v655
    %v851 = vunpack.c.l.b16 %v656
    %v852 = vunpack.c.l.b16 %v657
    %v853 = vunpack.c.l.b16 %v658
    %v854 = vunpack.c.l.b16 %v659
    %v855 = vunpack.c.l.b16 %v660
    %v856 = vpack.c.b16 %v849, %v848
    %v857 = vpack.c.b16 %v851, %v850
    %v858 = vpack.c.b16 %v853, %v852
    %v859 = vpack.c.b16 %v855, %v854
    %864 = vmatpush.bf16.msra.mxu0 0
    %865 = vmatpush.bf16.msra.mxu0 0
    %866 = vmatpush.bf16.msra.mxu0 0
    %867 = vmatpush.bf16.msra.mxu0 0
    %868 = vmatpush.bf16.msra.mxu0 %v859
    %869 = vmatpush.bf16.msra.mxu0 %v858
    %870 = vmatpush.bf16.msra.mxu0 %v857
    %871 = vmatpush.bf16.msra.mxu0 %v856
    %872 = vmatmul.bf16.gmra.mxu0 %v733
    %v873 = vpop.f32.mrf.mxu0
    %v874 = vadd.f32 %v838, %v873
    %v875 = vpop.f32.mrf.mxu0
    %v876 = vadd.f32 %v838, %v875
    %877 = vmatmul.bf16.gmra.mxu0 %v736
    %v878 = vpop.f32.mrf.mxu0
    %v879 = vadd.f32 %v838, %v878
    %v880 = vpop.f32.mrf.mxu0
    %v881 = vadd.f32 %v838, %v880
    %882 = vmatmul.bf16.gmra.mxu0 %v739
    %v883 = vpop.f32.mrf.mxu0
    %v884 = vadd.f32 %v838, %v883
    %v885 = vpop.f32.mrf.mxu0
    %v886 = vadd.f32 %v838, %v885
    %887 = vmatmul.bf16.gmra.mxu0 %v742
    %v888 = vpop.f32.mrf.mxu0
    %v889 = vadd.f32 %v838, %v888
    %v890 = vpop.f32.mrf.mxu0
    %v891 = vadd.f32 %v838, %v890
    %892 = vdwg.mxu0
    %v893 = vpack.c.bf16 %v774, %v773
    %v894 = vpack.c.bf16 %v776, %v775
    %v895 = vpack.c.bf16 %v820, %v818
    %v896 = vpack.c.bf16 %v825, %v823
    %v897 = vpack.c.bf16 %v876, %v874
    %v898 = vpack.c.bf16 %v881, %v879
    %v899 = vperm.slane %v634, 0
    %vm900 = vcmask 130048
    %v902 = vsel %vm900, %v893, 0
    %v905 = vsel %vm900, %v894, 0
    %v908 = vsel %vm900, %v895, 0
    %v911 = vsel %vm900, %v896, 0
    %913 = vmatpush.bf16.xpose.msra.mxu0 0
    %914 = vmatpush.bf16.xpose.msra.mxu0 0
    %915 = vmatpush.bf16.xpose.msra.mxu0 0
    %916 = vmatpush.bf16.xpose.msra.mxu0 0
    %917 = vmatpush.bf16.xpose.msra.mxu0 0
    %918 = vmatpush.bf16.xpose.msra.mxu0 0
    %919 = vmatpush.bf16.xpose.msra.mxu0 %v911
    %920 = vmatpush.bf16.xpose.msra.mxu0 %v908
    %921 = vmatmul.bf16.gmra.mxu0 %v902
    %v922 = vpop.f32.mrf.mxu0
    %v923 = vadd.f32 %v899, %v922
    %v924 = vpop.f32.mrf.mxu0
    %v925 = vadd.f32 %v899, %v924
    %926 = vmatmul.bf16.gmra.mxu0 %v905
    %v927 = vpop.f32.mrf.mxu0
    %v928 = vadd.f32 %v899, %v927
    %v929 = vpop.f32.mrf.mxu0
    %v930 = vadd.f32 %v899, %v929
    %931 = vdwg.mxu0
    %vm932 = vcmask 261120
    %v933 = vsel %vm932, %v923, -inf
    %934 = vmax.xlane.f32.xlu0 %v933
    %v935 = vpop.xlane.xlu0 %934
    %v936 = vsel %vm932, %v925, -inf
    %937 = vmax.xlane.f32.xlu0 %v936
    %v938 = vpop.xlane.xlu0 %937
    %v939 = vsel %vm932, %v928, -inf
    %940 = vmax.xlane.f32.xlu0 %v939
    %v941 = vpop.xlane.xlu0 %940
    %v942 = vsel %vm932, %v930, -inf
    %943 = vmax.xlane.f32.xlu0 %v942
    %v944 = vpop.xlane.xlu0 %943
    %v945 = vsub.f32 %v923, %v935
    %v946 = vsub.f32 %v925, %v938
    %v947 = vsub.f32 %v928, %v941
    %v948 = vsub.f32 %v930, %v944
    %v949 = vmul.f32 %v945, 1.442695
    %v950 = vpow.pop %v949
    %v951 = vmul.f32 %v946, 1.442695
    %v952 = vpow.pop %v951
    %v953 = vmul.f32 %v947, 1.442695
    %v954 = vpow.pop %v953
    %v955 = vmul.f32 %v948, 1.442695
    %v956 = vpow.pop %v955
    %v957 = vsel %vm932, %v950, 0.0
    %958 = vadd.xlane.f32.xlu0 %v957
    %v959 = vpop.xlane.xlu0 %958
    %v960 = vsel %vm932, %v952, 0.0
    %961 = vadd.xlane.f32.xlu0 %v960
    %v962 = vpop.xlane.xlu0 %961
    %v963 = vsel %vm932, %v954, 0.0
    %964 = vadd.xlane.f32.xlu0 %v963
    %v965 = vpop.xlane.xlu0 %964
    %v966 = vsel %vm932, %v956, 0.0
    %967 = vadd.xlane.f32.xlu0 %v966
    %v968 = vpop.xlane.xlu0 %967
    %v969 = vrcp.pop %v959
    %v970 = vrcp.pop %v962
    %v971 = vrcp.pop %v965
    %v972 = vrcp.pop %v968
    %v973 = vmul.f32 %v950, %v969
    %v974 = vmul.f32 %v952, %v970
    %v975 = vmul.f32 %v954, %v971
    %v976 = vmul.f32 %v956, %v972
    %v977 = vpack.c.bf16 %v974, %v973
    %v978 = vpack.c.bf16 %v976, %v975
    %v980 = vsel %vm932, %v977, 0
    %v983 = vsel %vm932, %v978, 0
    %985 = vmatpush.bf16.msra.mxu0 0
    %986 = vmatpush.bf16.msra.mxu0 0
    %987 = vmatpush.bf16.msra.mxu0 0
    %988 = vmatpush.bf16.msra.mxu0 0
    %989 = vmatpush.bf16.msra.mxu0 0
    %990 = vmatpush.bf16.msra.mxu0 0
    %991 = vmatpush.bf16.msra.mxu0 %v898
    %992 = vmatpush.bf16.msra.mxu0 %v897
    %993 = vmatmul.bf16.gmra.mxu0 %v980
    %v994 = vpop.f32.mrf.mxu0
    %v995 = vadd.f32 0.0, %v994
    %v996 = vpop.f32.mrf.mxu0
    %v997 = vadd.f32 0.0, %v996
    %998 = vmatmul.bf16.gmra.mxu0 %v983
    %v999 = vpop.f32.mrf.mxu0
    %v1000 = vadd.f32 0.0, %v999
    %v1001 = vpop.f32.mrf.mxu0
    %v1002 = vadd.f32 0.0, %v1001
    %1003 = vdwg.mxu0
    %1006 = vrot.lane.b32.xlu0 %v893, 112
    %v1007 = vpop.permute.xlu0 %1006
    %1008 = vrot.lane.b32.xlu0 %v894, 112
    %v1009 = vpop.permute.xlu0 %1008
    %1012 = vrot.lane.b32.xlu0 %v895, 112
    %v1013 = vpop.permute.xlu0 %1012
    %1014 = vrot.lane.b32.xlu0 %v896, 112
    %v1015 = vpop.permute.xlu0 %1014
    %v1017 = vsel %vm900, %v1007, 0
    %v1020 = vsel %vm900, %v1009, 0
    %v1023 = vsel %vm900, %v1013, 0
    %v1026 = vsel %vm900, %v1015, 0
    %1028 = vmatpush.bf16.xpose.msra.mxu0 0
    %1029 = vmatpush.bf16.xpose.msra.mxu0 0
    %1030 = vmatpush.bf16.xpose.msra.mxu0 0
    %1031 = vmatpush.bf16.xpose.msra.mxu0 0
    %1032 = vmatpush.bf16.xpose.msra.mxu0 0
    %1033 = vmatpush.bf16.xpose.msra.mxu0 0
    %1034 = vmatpush.bf16.xpose.msra.mxu0 %v1026
    %1035 = vmatpush.bf16.xpose.msra.mxu0 %v1023
    %1036 = vmatmul.bf16.gmra.mxu0 %v1017
    %v1037 = vpop.f32.mrf.mxu0
    %v1038 = vadd.f32 %v899, %v1037
    %v1039 = vpop.f32.mrf.mxu0
    %v1040 = vadd.f32 %v899, %v1039
    %1041 = vmatmul.bf16.gmra.mxu0 %v1020
    %v1042 = vpop.f32.mrf.mxu0
    %v1043 = vadd.f32 %v899, %v1042
    %v1044 = vpop.f32.mrf.mxu0
    %v1045 = vadd.f32 %v899, %v1044
    %1046 = vdwg.mxu0
    %v1047 = vsel %vm932, %v1038, -inf
    %1048 = vmax.xlane.f32.xlu0 %v1047
    %v1049 = vpop.xlane.xlu0 %1048
    %v1050 = vsel %vm932, %v1040, -inf
    %1051 = vmax.xlane.f32.xlu0 %v1050
    %v1052 = vpop.xlane.xlu0 %1051
    %v1053 = vsel %vm932, %v1043, -inf
    %1054 = vmax.xlane.f32.xlu0 %v1053
    %v1055 = vpop.xlane.xlu0 %1054
    %v1056 = vsel %vm932, %v1045, -inf
    %1057 = vmax.xlane.f32.xlu0 %v1056
    %v1058 = vpop.xlane.xlu0 %1057
    %v1059 = vsub.f32 %v1038, %v1049
    %v1060 = vsub.f32 %v1040, %v1052
    %v1061 = vsub.f32 %v1043, %v1055
    %v1062 = vsub.f32 %v1045, %v1058
    %v1063 = vmul.f32 %v1059, 1.442695
    %v1064 = vpow.pop %v1063
    %v1065 = vmul.f32 %v1060, 1.442695
    %v1066 = vpow.pop %v1065
    %v1067 = vmul.f32 %v1061, 1.442695
    %v1068 = vpow.pop %v1067
    %v1069 = vmul.f32 %v1062, 1.442695
    %v1070 = vpow.pop %v1069
    %v1071 = vsel %vm932, %v1064, 0.0
    %1072 = vadd.xlane.f32.xlu0 %v1071
    %v1073 = vpop.xlane.xlu0 %1072
    %v1074 = vsel %vm932, %v1066, 0.0
    %1075 = vadd.xlane.f32.xlu0 %v1074
    %v1076 = vpop.xlane.xlu0 %1075
    %v1077 = vsel %vm932, %v1068, 0.0
    %1078 = vadd.xlane.f32.xlu0 %v1077
    %v1079 = vpop.xlane.xlu0 %1078
    %v1080 = vsel %vm932, %v1070, 0.0
    %1081 = vadd.xlane.f32.xlu0 %v1080
    %v1082 = vpop.xlane.xlu0 %1081
    %v1083 = vrcp.pop %v1073
    %v1084 = vrcp.pop %v1076
    %v1085 = vrcp.pop %v1079
    %v1086 = vrcp.pop %v1082
    %v1087 = vmul.f32 %v1064, %v1083
    %v1088 = vmul.f32 %v1066, %v1084
    %v1089 = vmul.f32 %v1068, %v1085
    %v1090 = vmul.f32 %v1070, %v1086
    %v1091 = vpack.c.bf16 %v1088, %v1087
    %v1092 = vpack.c.bf16 %v1090, %v1089
    %1095 = vrot.lane.b32.xlu0 %v897, 112
    %v1096 = vpop.permute.xlu0 %1095
    %1097 = vrot.lane.b32.xlu0 %v898, 112
    %v1098 = vpop.permute.xlu0 %1097
    %v1102 = vsel %vm932, %v1091, 0
    %v1105 = vsel %vm932, %v1092, 0
    %1107 = vmatpush.bf16.msra.mxu0 0
    %1108 = vmatpush.bf16.msra.mxu0 0
    %1109 = vmatpush.bf16.msra.mxu0 0
    %1110 = vmatpush.bf16.msra.mxu0 0
    %1111 = vmatpush.bf16.msra.mxu0 0
    %1112 = vmatpush.bf16.msra.mxu0 0
    %1113 = vmatpush.bf16.msra.mxu0 %v1098
    %1114 = vmatpush.bf16.msra.mxu0 %v1096
    %1115 = vmatmul.bf16.gmra.mxu0 %v1102
    %v1116 = vpop.f32.mrf.mxu0
    %v1117 = vadd.f32 0.0, %v1116
    %v1118 = vpop.f32.mrf.mxu0
    %v1119 = vadd.f32 0.0, %v1118
    %1120 = vmatmul.bf16.gmra.mxu0 %v1105
    %v1121 = vpop.f32.mrf.mxu0
    %v1122 = vadd.f32 0.0, %v1121
    %v1123 = vpop.f32.mrf.mxu0
    %v1124 = vadd.f32 0.0, %v1123
    %1125 = vdwg.mxu0
    %1126 = vrot.lane.b32.xlu0 %v893, 96
    %v1127 = vpop.permute.xlu0 %1126
    %1128 = vrot.lane.b32.xlu0 %v894, 96
    %v1129 = vpop.permute.xlu0 %1128
    %1130 = vrot.lane.b32.xlu0 %v895, 96
    %v1131 = vpop.permute.xlu0 %1130
    %1132 = vrot.lane.b32.xlu0 %v896, 96
    %v1133 = vpop.permute.xlu0 %1132
    %v1135 = vsel %vm900, %v1127, 0
    %v1138 = vsel %vm900, %v1129, 0
    %v1141 = vsel %vm900, %v1131, 0
    %v1144 = vsel %vm900, %v1133, 0
    %1146 = vmatpush.bf16.xpose.msra.mxu0 0
    %1147 = vmatpush.bf16.xpose.msra.mxu0 0
    %1148 = vmatpush.bf16.xpose.msra.mxu0 0
    %1149 = vmatpush.bf16.xpose.msra.mxu0 0
    %1150 = vmatpush.bf16.xpose.msra.mxu0 0
    %1151 = vmatpush.bf16.xpose.msra.mxu0 0
    %1152 = vmatpush.bf16.xpose.msra.mxu0 %v1144
    %1153 = vmatpush.bf16.xpose.msra.mxu0 %v1141
    %1154 = vmatmul.bf16.gmra.mxu0 %v1135
    %v1155 = vpop.f32.mrf.mxu0
    %v1156 = vadd.f32 %v899, %v1155
    %v1157 = vpop.f32.mrf.mxu0
    %v1158 = vadd.f32 %v899, %v1157
    %1159 = vmatmul.bf16.gmra.mxu0 %v1138
    %v1160 = vpop.f32.mrf.mxu0
    %v1161 = vadd.f32 %v899, %v1160
    %v1162 = vpop.f32.mrf.mxu0
    %v1163 = vadd.f32 %v899, %v1162
    %1164 = vdwg.mxu0
    %v1165 = vsel %vm932, %v1156, -inf
    %1166 = vmax.xlane.f32.xlu0 %v1165
    %v1167 = vpop.xlane.xlu0 %1166
    %v1168 = vsel %vm932, %v1158, -inf
    %1169 = vmax.xlane.f32.xlu0 %v1168
    %v1170 = vpop.xlane.xlu0 %1169
    %v1171 = vsel %vm932, %v1161, -inf
    %1172 = vmax.xlane.f32.xlu0 %v1171
    %v1173 = vpop.xlane.xlu0 %1172
    %v1174 = vsel %vm932, %v1163, -inf
    %1175 = vmax.xlane.f32.xlu0 %v1174
    %v1176 = vpop.xlane.xlu0 %1175
    %v1177 = vsub.f32 %v1156, %v1167
    %v1178 = vsub.f32 %v1158, %v1170
    %v1179 = vsub.f32 %v1161, %v1173
    %v1180 = vsub.f32 %v1163, %v1176
    %v1181 = vmul.f32 %v1177, 1.442695
    %v1182 = vpow.pop %v1181
    %v1183 = vmul.f32 %v1178, 1.442695
    %v1184 = vpow.pop %v1183
    %v1185 = vmul.f32 %v1179, 1.442695
    %v1186 = vpow.pop %v1185
    %v1187 = vmul.f32 %v1180, 1.442695
    %v1188 = vpow.pop %v1187
    %v1189 = vsel %vm932, %v1182, 0.0
    %1190 = vadd.xlane.f32.xlu0 %v1189
    %v1191 = vpop.xlane.xlu0 %1190
    %v1192 = vsel %vm932, %v1184, 0.0
    %1193 = vadd.xlane.f32.xlu0 %v1192
    %v1194 = vpop.xlane.xlu0 %1193
    %v1195 = vsel %vm932, %v1186, 0.0
    %1196 = vadd.xlane.f32.xlu0 %v1195
    %v1197 = vpop.xlane.xlu0 %1196
    %v1198 = vsel %vm932, %v1188, 0.0
    %1199 = vadd.xlane.f32.xlu0 %v1198
    %v1200 = vpop.xlane.xlu0 %1199
    %v1201 = vrcp.pop %v1191
    %v1202 = vrcp.pop %v1194
    %v1203 = vrcp.pop %v1197
    %v1204 = vrcp.pop %v1200
    %v1205 = vmul.f32 %v1182, %v1201
    %v1206 = vmul.f32 %v1184, %v1202
    %v1207 = vmul.f32 %v1186, %v1203
    %v1208 = vmul.f32 %v1188, %v1204
    %v1209 = vpack.c.bf16 %v1206, %v1205
    %v1210 = vpack.c.bf16 %v1208, %v1207
    %1211 = vrot.lane.b32.xlu0 %v897, 96
    %v1212 = vpop.permute.xlu0 %1211
    %1213 = vrot.lane.b32.xlu0 %v898, 96
    %v1214 = vpop.permute.xlu0 %1213
    %v1218 = vsel %vm932, %v1209, 0
    %v1221 = vsel %vm932, %v1210, 0
    %1223 = vmatpush.bf16.msra.mxu0 0
    %1224 = vmatpush.bf16.msra.mxu0 0
    %1225 = vmatpush.bf16.msra.mxu0 0
    %1226 = vmatpush.bf16.msra.mxu0 0
    %1227 = vmatpush.bf16.msra.mxu0 0
    %1228 = vmatpush.bf16.msra.mxu0 0
    %1229 = vmatpush.bf16.msra.mxu0 %v1214
    %1230 = vmatpush.bf16.msra.mxu0 %v1212
    %1231 = vmatmul.bf16.gmra.mxu0 %v1218
    %v1232 = vpop.f32.mrf.mxu0
    %v1233 = vadd.f32 0.0, %v1232
    %v1234 = vpop.f32.mrf.mxu0
    %v1235 = vadd.f32 0.0, %v1234
    %1236 = vmatmul.bf16.gmra.mxu0 %v1221
    %v1237 = vpop.f32.mrf.mxu0
    %v1238 = vadd.f32 0.0, %v1237
    %v1239 = vpop.f32.mrf.mxu0
    %v1240 = vadd.f32 0.0, %v1239
    %1241 = vdwg.mxu0
    %1242 = vrot.lane.b32.xlu0 %v893, 80
    %v1243 = vpop.permute.xlu0 %1242
    %1244 = vrot.lane.b32.xlu0 %v894, 80
    %v1245 = vpop.permute.xlu0 %1244
    %1246 = vrot.lane.b32.xlu0 %v895, 80
    %v1247 = vpop.permute.xlu0 %1246
    %1248 = vrot.lane.b32.xlu0 %v896, 80
    %v1249 = vpop.permute.xlu0 %1248
    %v1251 = vsel %vm900, %v1243, 0
    %v1254 = vsel %vm900, %v1245, 0
    %v1257 = vsel %vm900, %v1247, 0
    %v1260 = vsel %vm900, %v1249, 0
    %1262 = vmatpush.bf16.xpose.msra.mxu0 0
    %1263 = vmatpush.bf16.xpose.msra.mxu0 0
    %1264 = vmatpush.bf16.xpose.msra.mxu0 0
    %1265 = vmatpush.bf16.xpose.msra.mxu0 0
    %1266 = vmatpush.bf16.xpose.msra.mxu0 0
    %1267 = vmatpush.bf16.xpose.msra.mxu0 0
    %1268 = vmatpush.bf16.xpose.msra.mxu0 %v1260
    %1269 = vmatpush.bf16.xpose.msra.mxu0 %v1257
    %1270 = vmatmul.bf16.gmra.mxu0 %v1251
    %v1271 = vpop.f32.mrf.mxu0
    %v1272 = vadd.f32 %v899, %v1271
    %v1273 = vpop.f32.mrf.mxu0
    %v1274 = vadd.f32 %v899, %v1273
    %1275 = vmatmul.bf16.gmra.mxu0 %v1254
    %v1276 = vpop.f32.mrf.mxu0
    %v1277 = vadd.f32 %v899, %v1276
    %v1278 = vpop.f32.mrf.mxu0
    %v1279 = vadd.f32 %v899, %v1278
    %1280 = vdwg.mxu0
    %v1281 = vsel %vm932, %v1272, -inf
    %1282 = vmax.xlane.f32.xlu0 %v1281
    %v1283 = vpop.xlane.xlu0 %1282
    %v1284 = vsel %vm932, %v1274, -inf
    %1285 = vmax.xlane.f32.xlu0 %v1284
    %v1286 = vpop.xlane.xlu0 %1285
    %v1287 = vsel %vm932, %v1277, -inf
    %1288 = vmax.xlane.f32.xlu0 %v1287
    %v1289 = vpop.xlane.xlu0 %1288
    %v1290 = vsel %vm932, %v1279, -inf
    %1291 = vmax.xlane.f32.xlu0 %v1290
    %v1292 = vpop.xlane.xlu0 %1291
    %v1293 = vsub.f32 %v1272, %v1283
    %v1294 = vsub.f32 %v1274, %v1286
    %v1295 = vsub.f32 %v1277, %v1289
    %v1296 = vsub.f32 %v1279, %v1292
    %v1297 = vmul.f32 %v1293, 1.442695
    %v1298 = vpow.pop %v1297
    %v1299 = vmul.f32 %v1294, 1.442695
    %v1300 = vpow.pop %v1299
    %v1301 = vmul.f32 %v1295, 1.442695
    %v1302 = vpow.pop %v1301
    %v1303 = vmul.f32 %v1296, 1.442695
    %v1304 = vpow.pop %v1303
    %v1305 = vsel %vm932, %v1298, 0.0
    %1306 = vadd.xlane.f32.xlu0 %v1305
    %v1307 = vpop.xlane.xlu0 %1306
    %v1308 = vsel %vm932, %v1300, 0.0
    %1309 = vadd.xlane.f32.xlu0 %v1308
    %v1310 = vpop.xlane.xlu0 %1309
    %v1311 = vsel %vm932, %v1302, 0.0
    %1312 = vadd.xlane.f32.xlu0 %v1311
    %v1313 = vpop.xlane.xlu0 %1312
    %v1314 = vsel %vm932, %v1304, 0.0
    %1315 = vadd.xlane.f32.xlu0 %v1314
    %v1316 = vpop.xlane.xlu0 %1315
    %v1317 = vrcp.pop %v1307
    %v1318 = vrcp.pop %v1310
    %v1319 = vrcp.pop %v1313
    %v1320 = vrcp.pop %v1316
    %v1321 = vmul.f32 %v1298, %v1317
    %v1322 = vmul.f32 %v1300, %v1318
    %v1323 = vmul.f32 %v1302, %v1319
    %v1324 = vmul.f32 %v1304, %v1320
    %v1325 = vpack.c.bf16 %v1322, %v1321
    %v1326 = vpack.c.bf16 %v1324, %v1323
    %1327 = vrot.lane.b32.xlu0 %v897, 80
    %v1328 = vpop.permute.xlu0 %1327
    %1329 = vrot.lane.b32.xlu0 %v898, 80
    %v1330 = vpop.permute.xlu0 %1329
    %v1334 = vsel %vm932, %v1325, 0
    %v1337 = vsel %vm932, %v1326, 0
    %1339 = vmatpush.bf16.msra.mxu0 0
    %1340 = vmatpush.bf16.msra.mxu0 0
    %1341 = vmatpush.bf16.msra.mxu0 0
    %1342 = vmatpush.bf16.msra.mxu0 0
    %1343 = vmatpush.bf16.msra.mxu0 0
    %1344 = vmatpush.bf16.msra.mxu0 0
    %1345 = vmatpush.bf16.msra.mxu0 %v1330
    %1346 = vmatpush.bf16.msra.mxu0 %v1328
    %1347 = vmatmul.bf16.gmra.mxu0 %v1334
    %v1348 = vpop.f32.mrf.mxu0
    %v1349 = vadd.f32 0.0, %v1348
    %v1350 = vpop.f32.mrf.mxu0
    %v1351 = vadd.f32 0.0, %v1350
    %1352 = vmatmul.bf16.gmra.mxu0 %v1337
    %v1353 = vpop.f32.mrf.mxu0
    %v1354 = vadd.f32 0.0, %v1353
    %v1355 = vpop.f32.mrf.mxu0
    %v1356 = vadd.f32 0.0, %v1355
    %1357 = vdwg.mxu0
    %1362 = vrot.lane.b32.xlu0 %v1117, 16
    %v1363 = vpop.permute.xlu0 %1362
    %1364 = vrot.lane.b32.xlu0 %v1119, 16
    %v1365 = vpop.permute.xlu0 %1364
    %1366 = vrot.lane.b32.xlu0 %v1122, 16
    %v1367 = vpop.permute.xlu0 %1366
    %1368 = vrot.lane.b32.xlu0 %v1124, 16
    %v1369 = vpop.permute.xlu0 %1368
    %1378 = vrot.lane.b32.xlu0 %v1233, 32
    %v1379 = vpop.permute.xlu0 %1378
    %1380 = vrot.lane.b32.xlu0 %v1235, 32
    %v1381 = vpop.permute.xlu0 %1380
    %1382 = vrot.lane.b32.xlu0 %v1238, 32
    %v1383 = vpop.permute.xlu0 %1382
    %1384 = vrot.lane.b32.xlu0 %v1240, 32
    %v1385 = vpop.permute.xlu0 %1384
    %1394 = vrot.lane.b32.xlu0 %v1349, 48
    %v1395 = vpop.permute.xlu0 %1394
    %1396 = vrot.lane.b32.xlu0 %v1351, 48
    %v1397 = vpop.permute.xlu0 %1396
    %1398 = vrot.lane.b32.xlu0 %v1354, 48
    %v1399 = vpop.permute.xlu0 %1398
    %1400 = vrot.lane.b32.xlu0 %v1356, 48
    %v1401 = vpop.permute.xlu0 %1400
    %v1406 = vsel %vm900, %v995, %v1363
    %v1407 = vsel %vm900, %v997, %v1365
    %v1408 = vsel %vm900, %v1000, %v1367
    %v1409 = vsel %vm900, %v1002, %v1369
    %v1410 = vsel %vm932, %v1406, %v1379
    %v1411 = vsel %vm932, %v1407, %v1381
    %v1412 = vsel %vm932, %v1408, %v1383
    %v1413 = vsel %vm932, %v1409, %v1385
    %vm1414 = vcmask 392192
    %v1415 = vsel %vm1414, %v1410, %v1395
    %v1416 = vsel %vm1414, %v1411, %v1397
    %v1417 = vsel %vm1414, %v1412, %v1399
    %v1418 = vsel %vm1414, %v1413, %v1401
    %v1419 = vpack.c.bf16 %v778, %v777
    %v1420 = vpack.c.bf16 %v780, %v779
    %v1421 = vpack.c.bf16 %v830, %v828
    %v1422 = vpack.c.bf16 %v835, %v833
    %v1423 = vpack.c.bf16 %v886, %v884
    %v1424 = vpack.c.bf16 %v891, %v889
    %v1425 = vperm.slane %v634, 1
    %v1427 = vsel %vm900, %v1419, 0
    %v1430 = vsel %vm900, %v1420, 0
    %v1433 = vsel %vm900, %v1421, 0
    %v1436 = vsel %vm900, %v1422, 0
    %1438 = vmatpush.bf16.xpose.msra.mxu0 0
    %1439 = vmatpush.bf16.xpose.msra.mxu0 0
    %1440 = vmatpush.bf16.xpose.msra.mxu0 0
    %1441 = vmatpush.bf16.xpose.msra.mxu0 0
    %1442 = vmatpush.bf16.xpose.msra.mxu0 0
    %1443 = vmatpush.bf16.xpose.msra.mxu0 0
    %1444 = vmatpush.bf16.xpose.msra.mxu0 %v1436
    %1445 = vmatpush.bf16.xpose.msra.mxu0 %v1433
    %1446 = vmatmul.bf16.gmra.mxu0 %v1427
    %v1447 = vpop.f32.mrf.mxu0
    %v1448 = vadd.f32 %v1425, %v1447
    %v1449 = vpop.f32.mrf.mxu0
    %v1450 = vadd.f32 %v1425, %v1449
    %1451 = vmatmul.bf16.gmra.mxu0 %v1430
    %v1452 = vpop.f32.mrf.mxu0
    %v1453 = vadd.f32 %v1425, %v1452
    %v1454 = vpop.f32.mrf.mxu0
    %v1455 = vadd.f32 %v1425, %v1454
    %1456 = vdwg.mxu0
    %v1457 = vsel %vm932, %v1448, -inf
    %1458 = vmax.xlane.f32.xlu0 %v1457
    %v1459 = vpop.xlane.xlu0 %1458
    %v1460 = vsel %vm932, %v1450, -inf
    %1461 = vmax.xlane.f32.xlu0 %v1460
    %v1462 = vpop.xlane.xlu0 %1461
    %v1463 = vsel %vm932, %v1453, -inf
    %1464 = vmax.xlane.f32.xlu0 %v1463
    %v1465 = vpop.xlane.xlu0 %1464
    %v1466 = vsel %vm932, %v1455, -inf
    %1467 = vmax.xlane.f32.xlu0 %v1466
    %v1468 = vpop.xlane.xlu0 %1467
    %v1469 = vsub.f32 %v1448, %v1459
    %v1470 = vsub.f32 %v1450, %v1462
    %v1471 = vsub.f32 %v1453, %v1465
    %v1472 = vsub.f32 %v1455, %v1468
    %v1473 = vmul.f32 %v1469, 1.442695
    %v1474 = vpow.pop %v1473
    %v1475 = vmul.f32 %v1470, 1.442695
    %v1476 = vpow.pop %v1475
    %v1477 = vmul.f32 %v1471, 1.442695
    %v1478 = vpow.pop %v1477
    %v1479 = vmul.f32 %v1472, 1.442695
    %v1480 = vpow.pop %v1479
    %v1481 = vsel %vm932, %v1474, 0.0
    %1482 = vadd.xlane.f32.xlu0 %v1481
    %v1483 = vpop.xlane.xlu0 %1482
    %v1484 = vsel %vm932, %v1476, 0.0
    %1485 = vadd.xlane.f32.xlu0 %v1484
    %v1486 = vpop.xlane.xlu0 %1485
    %v1487 = vsel %vm932, %v1478, 0.0
    %1488 = vadd.xlane.f32.xlu0 %v1487
    %v1489 = vpop.xlane.xlu0 %1488
    %v1490 = vsel %vm932, %v1480, 0.0
    %1491 = vadd.xlane.f32.xlu0 %v1490
    %v1492 = vpop.xlane.xlu0 %1491
    %v1493 = vrcp.pop %v1483
    %v1494 = vrcp.pop %v1486
    %v1495 = vrcp.pop %v1489
    %v1496 = vrcp.pop %v1492
    %v1497 = vmul.f32 %v1474, %v1493
    %v1498 = vmul.f32 %v1476, %v1494
    %v1499 = vmul.f32 %v1478, %v1495
    %v1500 = vmul.f32 %v1480, %v1496
    %v1501 = vpack.c.bf16 %v1498, %v1497
    %v1502 = vpack.c.bf16 %v1500, %v1499
    %v1504 = vsel %vm932, %v1501, 0
    %v1507 = vsel %vm932, %v1502, 0
    %1509 = vmatpush.bf16.msra.mxu0 0
    %1510 = vmatpush.bf16.msra.mxu0 0
    %1511 = vmatpush.bf16.msra.mxu0 0
    %1512 = vmatpush.bf16.msra.mxu0 0
    %1513 = vmatpush.bf16.msra.mxu0 0
    %1514 = vmatpush.bf16.msra.mxu0 0
    %1515 = vmatpush.bf16.msra.mxu0 %v1424
    %1516 = vmatpush.bf16.msra.mxu0 %v1423
    %1517 = vmatmul.bf16.gmra.mxu0 %v1504
    %v1518 = vpop.f32.mrf.mxu0
    %v1519 = vadd.f32 0.0, %v1518
    %v1520 = vpop.f32.mrf.mxu0
    %v1521 = vadd.f32 0.0, %v1520
    %1522 = vmatmul.bf16.gmra.mxu0 %v1507
    %v1523 = vpop.f32.mrf.mxu0
    %v1524 = vadd.f32 0.0, %v1523
    %v1525 = vpop.f32.mrf.mxu0
    %v1526 = vadd.f32 0.0, %v1525
    %1527 = vdwg.mxu0
    %1530 = vrot.lane.b32.xlu0 %v1419, 112
    %v1531 = vpop.permute.xlu0 %1530
    %1532 = vrot.lane.b32.xlu0 %v1420, 112
    %v1533 = vpop.permute.xlu0 %1532
    %1536 = vrot.lane.b32.xlu0 %v1421, 112
    %v1537 = vpop.permute.xlu0 %1536
    %1538 = vrot.lane.b32.xlu0 %v1422, 112
    %v1539 = vpop.permute.xlu0 %1538
    %v1541 = vsel %vm900, %v1531, 0
    %v1544 = vsel %vm900, %v1533, 0
    %v1547 = vsel %vm900, %v1537, 0
    %v1550 = vsel %vm900, %v1539, 0
    %1552 = vmatpush.bf16.xpose.msra.mxu0 0
    %1553 = vmatpush.bf16.xpose.msra.mxu0 0
    %1554 = vmatpush.bf16.xpose.msra.mxu0 0
    %1555 = vmatpush.bf16.xpose.msra.mxu0 0
    %1556 = vmatpush.bf16.xpose.msra.mxu0 0
    %1557 = vmatpush.bf16.xpose.msra.mxu0 0
    %1558 = vmatpush.bf16.xpose.msra.mxu0 %v1550
    %1559 = vmatpush.bf16.xpose.msra.mxu0 %v1547
    %1560 = vmatmul.bf16.gmra.mxu0 %v1541
    %v1561 = vpop.f32.mrf.mxu0
    %v1562 = vadd.f32 %v1425, %v1561
    %v1563 = vpop.f32.mrf.mxu0
    %v1564 = vadd.f32 %v1425, %v1563
    %1565 = vmatmul.bf16.gmra.mxu0 %v1544
    %v1566 = vpop.f32.mrf.mxu0
    %v1567 = vadd.f32 %v1425, %v1566
    %v1568 = vpop.f32.mrf.mxu0
    %v1569 = vadd.f32 %v1425, %v1568
    %1570 = vdwg.mxu0
    %v1571 = vsel %vm932, %v1562, -inf
    %1572 = vmax.xlane.f32.xlu0 %v1571
    %v1573 = vpop.xlane.xlu0 %1572
    %v1574 = vsel %vm932, %v1564, -inf
    %1575 = vmax.xlane.f32.xlu0 %v1574
    %v1576 = vpop.xlane.xlu0 %1575
    %v1577 = vsel %vm932, %v1567, -inf
    %1578 = vmax.xlane.f32.xlu0 %v1577
    %v1579 = vpop.xlane.xlu0 %1578
    %v1580 = vsel %vm932, %v1569, -inf
    %1581 = vmax.xlane.f32.xlu0 %v1580
    %v1582 = vpop.xlane.xlu0 %1581
    %v1583 = vsub.f32 %v1562, %v1573
    %v1584 = vsub.f32 %v1564, %v1576
    %v1585 = vsub.f32 %v1567, %v1579
    %v1586 = vsub.f32 %v1569, %v1582
    %v1587 = vmul.f32 %v1583, 1.442695
    %v1588 = vpow.pop %v1587
    %v1589 = vmul.f32 %v1584, 1.442695
    %v1590 = vpow.pop %v1589
    %v1591 = vmul.f32 %v1585, 1.442695
    %v1592 = vpow.pop %v1591
    %v1593 = vmul.f32 %v1586, 1.442695
    %v1594 = vpow.pop %v1593
    %v1595 = vsel %vm932, %v1588, 0.0
    %1596 = vadd.xlane.f32.xlu0 %v1595
    %v1597 = vpop.xlane.xlu0 %1596
    %v1598 = vsel %vm932, %v1590, 0.0
    %1599 = vadd.xlane.f32.xlu0 %v1598
    %v1600 = vpop.xlane.xlu0 %1599
    %v1601 = vsel %vm932, %v1592, 0.0
    %1602 = vadd.xlane.f32.xlu0 %v1601
    %v1603 = vpop.xlane.xlu0 %1602
    %v1604 = vsel %vm932, %v1594, 0.0
    %1605 = vadd.xlane.f32.xlu0 %v1604
    %v1606 = vpop.xlane.xlu0 %1605
    %v1607 = vrcp.pop %v1597
    %v1608 = vrcp.pop %v1600
    %v1609 = vrcp.pop %v1603
    %v1610 = vrcp.pop %v1606
    %v1611 = vmul.f32 %v1588, %v1607
    %v1612 = vmul.f32 %v1590, %v1608
    %v1613 = vmul.f32 %v1592, %v1609
    %v1614 = vmul.f32 %v1594, %v1610
    %v1615 = vpack.c.bf16 %v1612, %v1611
    %v1616 = vpack.c.bf16 %v1614, %v1613
    %1619 = vrot.lane.b32.xlu0 %v1423, 112
    %v1620 = vpop.permute.xlu0 %1619
    %1621 = vrot.lane.b32.xlu0 %v1424, 112
    %v1622 = vpop.permute.xlu0 %1621
    %v1626 = vsel %vm932, %v1615, 0
    %v1629 = vsel %vm932, %v1616, 0
    %1631 = vmatpush.bf16.msra.mxu0 0
    %1632 = vmatpush.bf16.msra.mxu0 0
    %1633 = vmatpush.bf16.msra.mxu0 0
    %1634 = vmatpush.bf16.msra.mxu0 0
    %1635 = vmatpush.bf16.msra.mxu0 0
    %1636 = vmatpush.bf16.msra.mxu0 0
    %1637 = vmatpush.bf16.msra.mxu0 %v1622
    %1638 = vmatpush.bf16.msra.mxu0 %v1620
    %1639 = vmatmul.bf16.gmra.mxu0 %v1626
    %v1640 = vpop.f32.mrf.mxu0
    %v1641 = vadd.f32 0.0, %v1640
    %v1642 = vpop.f32.mrf.mxu0
    %v1643 = vadd.f32 0.0, %v1642
    %1644 = vmatmul.bf16.gmra.mxu0 %v1629
    %v1645 = vpop.f32.mrf.mxu0
    %v1646 = vadd.f32 0.0, %v1645
    %v1647 = vpop.f32.mrf.mxu0
    %v1648 = vadd.f32 0.0, %v1647
    %1649 = vdwg.mxu0
    %1650 = vrot.lane.b32.xlu0 %v1419, 96
    %v1651 = vpop.permute.xlu0 %1650
    %1652 = vrot.lane.b32.xlu0 %v1420, 96
    %v1653 = vpop.permute.xlu0 %1652
    %1654 = vrot.lane.b32.xlu0 %v1421, 96
    %v1655 = vpop.permute.xlu0 %1654
    %1656 = vrot.lane.b32.xlu0 %v1422, 96
    %v1657 = vpop.permute.xlu0 %1656
    %v1659 = vsel %vm900, %v1651, 0
    %v1662 = vsel %vm900, %v1653, 0
    %v1665 = vsel %vm900, %v1655, 0
    %v1668 = vsel %vm900, %v1657, 0
    %1670 = vmatpush.bf16.xpose.msra.mxu0 0
    %1671 = vmatpush.bf16.xpose.msra.mxu0 0
    %1672 = vmatpush.bf16.xpose.msra.mxu0 0
    %1673 = vmatpush.bf16.xpose.msra.mxu0 0
    %1674 = vmatpush.bf16.xpose.msra.mxu0 0
    %1675 = vmatpush.bf16.xpose.msra.mxu0 0
    %1676 = vmatpush.bf16.xpose.msra.mxu0 %v1668
    %1677 = vmatpush.bf16.xpose.msra.mxu0 %v1665
    %1678 = vmatmul.bf16.gmra.mxu0 %v1659
    %v1679 = vpop.f32.mrf.mxu0
    %v1680 = vadd.f32 %v1425, %v1679
    %v1681 = vpop.f32.mrf.mxu0
    %v1682 = vadd.f32 %v1425, %v1681
    %1683 = vmatmul.bf16.gmra.mxu0 %v1662
    %v1684 = vpop.f32.mrf.mxu0
    %v1685 = vadd.f32 %v1425, %v1684
    %v1686 = vpop.f32.mrf.mxu0
    %v1687 = vadd.f32 %v1425, %v1686
    %1688 = vdwg.mxu0
    %v1689 = vsel %vm932, %v1680, -inf
    %1690 = vmax.xlane.f32.xlu0 %v1689
    %v1691 = vpop.xlane.xlu0 %1690
    %v1692 = vsel %vm932, %v1682, -inf
    %1693 = vmax.xlane.f32.xlu0 %v1692
    %v1694 = vpop.xlane.xlu0 %1693
    %v1695 = vsel %vm932, %v1685, -inf
    %1696 = vmax.xlane.f32.xlu0 %v1695
    %v1697 = vpop.xlane.xlu0 %1696
    %v1698 = vsel %vm932, %v1687, -inf
    %1699 = vmax.xlane.f32.xlu0 %v1698
    %v1700 = vpop.xlane.xlu0 %1699
    %v1701 = vsub.f32 %v1680, %v1691
    %v1702 = vsub.f32 %v1682, %v1694
    %v1703 = vsub.f32 %v1685, %v1697
    %v1704 = vsub.f32 %v1687, %v1700
    %v1705 = vmul.f32 %v1701, 1.442695
    %v1706 = vpow.pop %v1705
    %v1707 = vmul.f32 %v1702, 1.442695
    %v1708 = vpow.pop %v1707
    %v1709 = vmul.f32 %v1703, 1.442695
    %v1710 = vpow.pop %v1709
    %v1711 = vmul.f32 %v1704, 1.442695
    %v1712 = vpow.pop %v1711
    %v1713 = vsel %vm932, %v1706, 0.0
    %1714 = vadd.xlane.f32.xlu0 %v1713
    %v1715 = vpop.xlane.xlu0 %1714
    %v1716 = vsel %vm932, %v1708, 0.0
    %1717 = vadd.xlane.f32.xlu0 %v1716
    %v1718 = vpop.xlane.xlu0 %1717
    %v1719 = vsel %vm932, %v1710, 0.0
    %1720 = vadd.xlane.f32.xlu0 %v1719
    %v1721 = vpop.xlane.xlu0 %1720
    %v1722 = vsel %vm932, %v1712, 0.0
    %1723 = vadd.xlane.f32.xlu0 %v1722
    %v1724 = vpop.xlane.xlu0 %1723
    %v1725 = vrcp.pop %v1715
    %v1726 = vrcp.pop %v1718
    %v1727 = vrcp.pop %v1721
    %v1728 = vrcp.pop %v1724
    %v1729 = vmul.f32 %v1706, %v1725
    %v1730 = vmul.f32 %v1708, %v1726
    %v1731 = vmul.f32 %v1710, %v1727
    %v1732 = vmul.f32 %v1712, %v1728
    %v1733 = vpack.c.bf16 %v1730, %v1729
    %v1734 = vpack.c.bf16 %v1732, %v1731
    %1735 = vrot.lane.b32.xlu0 %v1423, 96
    %v1736 = vpop.permute.xlu0 %1735
    %1737 = vrot.lane.b32.xlu0 %v1424, 96
    %v1738 = vpop.permute.xlu0 %1737
    %v1742 = vsel %vm932, %v1733, 0
    %v1745 = vsel %vm932, %v1734, 0
    %1747 = vmatpush.bf16.msra.mxu0 0
    %1748 = vmatpush.bf16.msra.mxu0 0
    %1749 = vmatpush.bf16.msra.mxu0 0
    %1750 = vmatpush.bf16.msra.mxu0 0
    %1751 = vmatpush.bf16.msra.mxu0 0
    %1752 = vmatpush.bf16.msra.mxu0 0
    %1753 = vmatpush.bf16.msra.mxu0 %v1738
    %1754 = vmatpush.bf16.msra.mxu0 %v1736
    %1755 = vmatmul.bf16.gmra.mxu0 %v1742
    %v1756 = vpop.f32.mrf.mxu0
    %v1757 = vadd.f32 0.0, %v1756
    %v1758 = vpop.f32.mrf.mxu0
    %v1759 = vadd.f32 0.0, %v1758
    %1760 = vmatmul.bf16.gmra.mxu0 %v1745
    %v1761 = vpop.f32.mrf.mxu0
    %v1762 = vadd.f32 0.0, %v1761
    %v1763 = vpop.f32.mrf.mxu0
    %v1764 = vadd.f32 0.0, %v1763
    %1765 = vdwg.mxu0
    %1766 = vrot.lane.b32.xlu0 %v1419, 80
    %v1767 = vpop.permute.xlu0 %1766
    %1768 = vrot.lane.b32.xlu0 %v1420, 80
    %v1769 = vpop.permute.xlu0 %1768
    %1770 = vrot.lane.b32.xlu0 %v1421, 80
    %v1771 = vpop.permute.xlu0 %1770
    %1772 = vrot.lane.b32.xlu0 %v1422, 80
    %v1773 = vpop.permute.xlu0 %1772
    %v1775 = vsel %vm900, %v1767, 0
    %v1778 = vsel %vm900, %v1769, 0
    %v1781 = vsel %vm900, %v1771, 0
    %v1784 = vsel %vm900, %v1773, 0
    %1786 = vmatpush.bf16.xpose.msra.mxu0 0
    %1787 = vmatpush.bf16.xpose.msra.mxu0 0
    %1788 = vmatpush.bf16.xpose.msra.mxu0 0
    %1789 = vmatpush.bf16.xpose.msra.mxu0 0
    %1790 = vmatpush.bf16.xpose.msra.mxu0 0
    %1791 = vmatpush.bf16.xpose.msra.mxu0 0
    %1792 = vmatpush.bf16.xpose.msra.mxu0 %v1784
    %1793 = vmatpush.bf16.xpose.msra.mxu0 %v1781
    %1794 = vmatmul.bf16.gmra.mxu0 %v1775
    %v1795 = vpop.f32.mrf.mxu0
    %v1796 = vadd.f32 %v1425, %v1795
    %v1797 = vpop.f32.mrf.mxu0
    %v1798 = vadd.f32 %v1425, %v1797
    %1799 = vmatmul.bf16.gmra.mxu0 %v1778
    %v1800 = vpop.f32.mrf.mxu0
    %v1801 = vadd.f32 %v1425, %v1800
    %v1802 = vpop.f32.mrf.mxu0
    %v1803 = vadd.f32 %v1425, %v1802
    %1804 = vdwg.mxu0
    %v1805 = vsel %vm932, %v1796, -inf
    %1806 = vmax.xlane.f32.xlu0 %v1805
    %v1807 = vpop.xlane.xlu0 %1806
    %v1808 = vsel %vm932, %v1798, -inf
    %1809 = vmax.xlane.f32.xlu0 %v1808
    %v1810 = vpop.xlane.xlu0 %1809
    %v1811 = vsel %vm932, %v1801, -inf
    %1812 = vmax.xlane.f32.xlu0 %v1811
    %v1813 = vpop.xlane.xlu0 %1812
    %v1814 = vsel %vm932, %v1803, -inf
    %1815 = vmax.xlane.f32.xlu0 %v1814
    %v1816 = vpop.xlane.xlu0 %1815
    %v1817 = vsub.f32 %v1796, %v1807
    %v1818 = vsub.f32 %v1798, %v1810
    %v1819 = vsub.f32 %v1801, %v1813
    %v1820 = vsub.f32 %v1803, %v1816
    %v1821 = vmul.f32 %v1817, 1.442695
    %v1822 = vpow.pop %v1821
    %v1823 = vmul.f32 %v1818, 1.442695
    %v1824 = vpow.pop %v1823
    %v1825 = vmul.f32 %v1819, 1.442695
    %v1826 = vpow.pop %v1825
    %v1827 = vmul.f32 %v1820, 1.442695
    %v1828 = vpow.pop %v1827
    %v1829 = vsel %vm932, %v1822, 0.0
    %1830 = vadd.xlane.f32.xlu0 %v1829
    %v1831 = vpop.xlane.xlu0 %1830
    %v1832 = vsel %vm932, %v1824, 0.0
    %1833 = vadd.xlane.f32.xlu0 %v1832
    %v1834 = vpop.xlane.xlu0 %1833
    %v1835 = vsel %vm932, %v1826, 0.0
    %1836 = vadd.xlane.f32.xlu0 %v1835
    %v1837 = vpop.xlane.xlu0 %1836
    %v1838 = vsel %vm932, %v1828, 0.0
    %1839 = vadd.xlane.f32.xlu0 %v1838
    %v1840 = vpop.xlane.xlu0 %1839
    %v1841 = vrcp.pop %v1831
    %v1842 = vrcp.pop %v1834
    %v1843 = vrcp.pop %v1837
    %v1844 = vrcp.pop %v1840
    %v1845 = vmul.f32 %v1822, %v1841
    %v1846 = vmul.f32 %v1824, %v1842
    %v1847 = vmul.f32 %v1826, %v1843
    %v1848 = vmul.f32 %v1828, %v1844
    %v1849 = vpack.c.bf16 %v1846, %v1845
    %v1850 = vpack.c.bf16 %v1848, %v1847
    %1851 = vrot.lane.b32.xlu0 %v1423, 80
    %v1852 = vpop.permute.xlu0 %1851
    %1853 = vrot.lane.b32.xlu0 %v1424, 80
    %v1854 = vpop.permute.xlu0 %1853
    %v1858 = vsel %vm932, %v1849, 0
    %v1861 = vsel %vm932, %v1850, 0
    %1863 = vmatpush.bf16.msra.mxu0 0
    %1864 = vmatpush.bf16.msra.mxu0 0
    %1865 = vmatpush.bf16.msra.mxu0 0
    %1866 = vmatpush.bf16.msra.mxu0 0
    %1867 = vmatpush.bf16.msra.mxu0 0
    %1868 = vmatpush.bf16.msra.mxu0 0
    %1869 = vmatpush.bf16.msra.mxu0 %v1854
    %1870 = vmatpush.bf16.msra.mxu0 %v1852
    %1871 = vmatmul.bf16.gmra.mxu0 %v1858
    %v1872 = vpop.f32.mrf.mxu0
    %v1873 = vadd.f32 0.0, %v1872
    %v1874 = vpop.f32.mrf.mxu0
    %v1875 = vadd.f32 0.0, %v1874
    %1876 = vmatmul.bf16.gmra.mxu0 %v1861
    %v1877 = vpop.f32.mrf.mxu0
    %v1878 = vadd.f32 0.0, %v1877
    %v1879 = vpop.f32.mrf.mxu0
    %v1880 = vadd.f32 0.0, %v1879
    %1881 = vdwg.mxu0
    %1886 = vrot.lane.b32.xlu0 %v1641, 16
    %v1887 = vpop.permute.xlu0 %1886
    %1888 = vrot.lane.b32.xlu0 %v1643, 16
    %v1889 = vpop.permute.xlu0 %1888
    %1890 = vrot.lane.b32.xlu0 %v1646, 16
    %v1891 = vpop.permute.xlu0 %1890
    %1892 = vrot.lane.b32.xlu0 %v1648, 16
    %v1893 = vpop.permute.xlu0 %1892
    %1902 = vrot.lane.b32.xlu0 %v1757, 32
    %v1903 = vpop.permute.xlu0 %1902
    %1904 = vrot.lane.b32.xlu0 %v1759, 32
    %v1905 = vpop.permute.xlu0 %1904
    %1906 = vrot.lane.b32.xlu0 %v1762, 32
    %v1907 = vpop.permute.xlu0 %1906
    %1908 = vrot.lane.b32.xlu0 %v1764, 32
    %v1909 = vpop.permute.xlu0 %1908
    %1918 = vrot.lane.b32.xlu0 %v1873, 48
    %v1919 = vpop.permute.xlu0 %1918
    %1920 = vrot.lane.b32.xlu0 %v1875, 48
    %v1921 = vpop.permute.xlu0 %1920
    %1922 = vrot.lane.b32.xlu0 %v1878, 48
    %v1923 = vpop.permute.xlu0 %1922
    %1924 = vrot.lane.b32.xlu0 %v1880, 48
    %v1925 = vpop.permute.xlu0 %1924
    %v1930 = vsel %vm900, %v1519, %v1887
    %v1931 = vsel %vm900, %v1521, %v1889
    %v1932 = vsel %vm900, %v1524, %v1891
    %v1933 = vsel %vm900, %v1526, %v1893
    %v1934 = vsel %vm932, %v1930, %v1903
    %v1935 = vsel %vm932, %v1931, %v1905
    %v1936 = vsel %vm932, %v1932, %v1907
    %v1937 = vsel %vm932, %v1933, %v1909
    %v1938 = vsel %vm1414, %v1934, %v1919
    %v1939 = vsel %vm1414, %v1935, %v1921
    %v1940 = vsel %vm1414, %v1936, %v1923
    %v1941 = vsel %vm1414, %v1937, %v1925
    %v1942 = vpack.c.bf16 %v1416, %v1415
    %v1943 = vpack.c.bf16 %v1418, %v1417
    %v1944 = vpack.c.bf16 %v1939, %v1938
    %v1945 = vpack.c.bf16 %v1941, %v1940
    %v1947 = vperm.slane %v670, 0
    %v1957 = vunpack.c.l.b16 %v662
    %v1958 = vunpack.c.l.b16 %v663
    %v1959 = vunpack.c.l.b16 %v664
    %v1960 = vunpack.c.l.b16 %v665
    %v1961 = vunpack.c.l.b16 %v666
    %v1962 = vunpack.c.l.b16 %v667
    %v1963 = vunpack.c.l.b16 %v668
    %v1964 = vunpack.c.l.b16 %v669
    %v1965 = vpack.c.b16 %v1958, %v1957
    %v1966 = vpack.c.b16 %v1960, %v1959
    %v1967 = vpack.c.b16 %v1962, %v1961
    %v1968 = vpack.c.b16 %v1964, %v1963
    %v1974 = vsel %vm425, %v1942, 0
    %v1977 = vsel %vm425, %v1943, 0
    %v1980 = vsel %vm425, %v1944, 0
    %v1983 = vsel %vm425, %v1945, 0
    %1985 = vmatpush.bf16.msra.mxu0 0
    %1986 = vmatpush.bf16.msra.mxu0 0
    %1987 = vmatpush.bf16.msra.mxu0 0
    %1988 = vmatpush.bf16.msra.mxu0 0
    %1989 = vmatpush.bf16.msra.mxu0 %v1968
    %1990 = vmatpush.bf16.msra.mxu0 %v1967
    %1991 = vmatpush.bf16.msra.mxu0 %v1966
    %1992 = vmatpush.bf16.msra.mxu0 %v1965
    %1993 = vmatmul.bf16.gmra.mxu0 %v1974
    %v1994 = vpop.f32.mrf.mxu0
    %v1995 = vadd.f32 %v1947, %v1994
    %v1996 = vpop.f32.mrf.mxu0
    %v1997 = vadd.f32 %v1947, %v1996
    %1998 = vmatmul.bf16.gmra.mxu0 %v1977
    %v1999 = vpop.f32.mrf.mxu0
    %v2000 = vadd.f32 %v1947, %v1999
    %v2001 = vpop.f32.mrf.mxu0
    %v2002 = vadd.f32 %v1947, %v2001
    %2003 = vmatmul.bf16.gmra.mxu0 %v1980
    %v2004 = vpop.f32.mrf.mxu0
    %v2005 = vadd.f32 %v1947, %v2004
    %v2006 = vpop.f32.mrf.mxu0
    %v2007 = vadd.f32 %v1947, %v2006
    %2008 = vmatmul.bf16.gmra.mxu0 %v1983
    %v2009 = vpop.f32.mrf.mxu0
    %v2010 = vadd.f32 %v1947, %v2009
    %v2011 = vpop.f32.mrf.mxu0
    %v2012 = vadd.f32 %v1947, %v2011
    %2013 = vdwg.mxu0
    %v2014 = vadd.f32 %v623, %v1995
    %v2015 = vadd.f32 %v624, %v1997
    %v2016 = vadd.f32 %v625, %v2000
    %v2017 = vadd.f32 %v626, %v2002
    %v2018 = vadd.f32 %v627, %v2005
    %v2019 = vadd.f32 %v628, %v2007
    %v2020 = vadd.f32 %v629, %v2010
    %v2021 = vadd.f32 %v630, %v2012
    %v2022 = vsel %vm425, %v2014, 0.0
    %2023 = vadd.xlane.f32.xlu0 %v2022
    %v2024 = vpop.xlane.xlu0 %2023
    %v2025 = vsel %vm425, %v2015, 0.0
    %2026 = vadd.xlane.f32.xlu0 %v2025
    %v2027 = vpop.xlane.xlu0 %2026
    %v2028 = vsel %vm425, %v2016, 0.0
    %2029 = vadd.xlane.f32.xlu0 %v2028
    %v2030 = vpop.xlane.xlu0 %2029
    %v2031 = vsel %vm425, %v2017, 0.0
    %2032 = vadd.xlane.f32.xlu0 %v2031
    %v2033 = vpop.xlane.xlu0 %2032
    %v2034 = vsel %vm425, %v2018, 0.0
    %2035 = vadd.xlane.f32.xlu0 %v2034
    %v2036 = vpop.xlane.xlu0 %2035
    %v2037 = vsel %vm425, %v2019, 0.0
    %2038 = vadd.xlane.f32.xlu0 %v2037
    %v2039 = vpop.xlane.xlu0 %2038
    %v2040 = vsel %vm425, %v2020, 0.0
    %2041 = vadd.xlane.f32.xlu0 %v2040
    %v2042 = vpop.xlane.xlu0 %2041
    %v2043 = vsel %vm425, %v2021, 0.0
    %2044 = vadd.xlane.f32.xlu0 %v2043
    %v2045 = vpop.xlane.xlu0 %2044
    %v2046 = vmul.f32 %v2024, %v456
    %v2047 = vmul.f32 %v2027, %v456
    %v2048 = vmul.f32 %v2030, %v456
    %v2049 = vmul.f32 %v2033, %v456
    %v2050 = vmul.f32 %v2036, %v456
    %v2051 = vmul.f32 %v2039, %v456
    %v2052 = vmul.f32 %v2042, %v456
    %v2053 = vmul.f32 %v2045, %v456
    %v2054 = vsub.f32 %v2014, %v2046
    %v2055 = vsub.f32 %v2015, %v2047
    %v2056 = vsub.f32 %v2016, %v2048
    %v2057 = vsub.f32 %v2017, %v2049
    %v2058 = vsub.f32 %v2018, %v2050
    %v2059 = vsub.f32 %v2019, %v2051
    %v2060 = vsub.f32 %v2020, %v2052
    %v2061 = vsub.f32 %v2021, %v2053
    %v2062 = vmul.f32 %v2054, %v2054
    %v2063 = vmul.f32 %v2055, %v2055
    %v2064 = vmul.f32 %v2056, %v2056
    %v2065 = vmul.f32 %v2057, %v2057
    %v2066 = vmul.f32 %v2058, %v2058
    %v2067 = vmul.f32 %v2059, %v2059
    %v2068 = vmul.f32 %v2060, %v2060
    %v2069 = vmul.f32 %v2061, %v2061
    %v2070 = vsel %vm425, %v2062, 0.0
    %2071 = vadd.xlane.f32.xlu0 %v2070
    %v2072 = vpop.xlane.xlu0 %2071
    %v2073 = vsel %vm425, %v2063, 0.0
    %2074 = vadd.xlane.f32.xlu0 %v2073
    %v2075 = vpop.xlane.xlu0 %2074
    %v2076 = vsel %vm425, %v2064, 0.0
    %2077 = vadd.xlane.f32.xlu0 %v2076
    %v2078 = vpop.xlane.xlu0 %2077
    %v2079 = vsel %vm425, %v2065, 0.0
    %2080 = vadd.xlane.f32.xlu0 %v2079
    %v2081 = vpop.xlane.xlu0 %2080
    %v2082 = vsel %vm425, %v2066, 0.0
    %2083 = vadd.xlane.f32.xlu0 %v2082
    %v2084 = vpop.xlane.xlu0 %2083
    %v2085 = vsel %vm425, %v2067, 0.0
    %2086 = vadd.xlane.f32.xlu0 %v2085
    %v2087 = vpop.xlane.xlu0 %2086
    %v2088 = vsel %vm425, %v2068, 0.0
    %2089 = vadd.xlane.f32.xlu0 %v2088
    %v2090 = vpop.xlane.xlu0 %2089
    %v2091 = vsel %vm425, %v2069, 0.0
    %2092 = vadd.xlane.f32.xlu0 %v2091
    %v2093 = vpop.xlane.xlu0 %2092
    %v2094 = vmul.f32 %v2072, %v456
    %v2095 = vmul.f32 %v2075, %v456
    %v2096 = vmul.f32 %v2078, %v456
    %v2097 = vmul.f32 %v2081, %v456
    %v2098 = vmul.f32 %v2084, %v456
    %v2099 = vmul.f32 %v2087, %v456
    %v2100 = vmul.f32 %v2090, %v456
    %v2101 = vmul.f32 %v2093, %v456
    %v2102 = vadd.f32 %v2094, 1e-12
    %v2103 = vadd.f32 %v2095, 1e-12
    %v2104 = vadd.f32 %v2096, 1e-12
    %v2105 = vadd.f32 %v2097, 1e-12
    %v2106 = vadd.f32 %v2098, 1e-12
    %v2107 = vadd.f32 %v2099, 1e-12
    %v2108 = vadd.f32 %v2100, 1e-12
    %v2109 = vadd.f32 %v2101, 1e-12
    %v2110 = vrsqrt.pop %v2102
    %v2111 = vmul.f32 %v2110, %v2102
    %v2112 = vmul.f32 %v2111, %v2110
    %v2113 = vmul.f32 0.5, %v2112
    %v2114 = vsub.f32 1.5, %v2113
    %v2115 = vmul.f32 %v2110, %v2114
    %vm2116 = vweird.f32 %v2102
    %vm2117 = vweird.f32 %v2110
    %vm2118 = vmor %vm2116, %vm2117
    %v2119 = vsel %vm2118, %v2110, %v2115
    %v2120 = vrsqrt.pop %v2103
    %v2121 = vmul.f32 %v2120, %v2103
    %v2122 = vmul.f32 %v2121, %v2120
    %v2123 = vmul.f32 0.5, %v2122
    %v2124 = vsub.f32 1.5, %v2123
    %v2125 = vmul.f32 %v2120, %v2124
    %vm2126 = vweird.f32 %v2103
    %vm2127 = vweird.f32 %v2120
    %vm2128 = vmor %vm2126, %vm2127
    %v2129 = vsel %vm2128, %v2120, %v2125
    %v2130 = vrsqrt.pop %v2104
    %v2131 = vmul.f32 %v2130, %v2104
    %v2132 = vmul.f32 %v2131, %v2130
    %v2133 = vmul.f32 0.5, %v2132
    %v2134 = vsub.f32 1.5, %v2133
    %v2135 = vmul.f32 %v2130, %v2134
    %vm2136 = vweird.f32 %v2104
    %vm2137 = vweird.f32 %v2130
    %vm2138 = vmor %vm2136, %vm2137
    %v2139 = vsel %vm2138, %v2130, %v2135
    %v2140 = vrsqrt.pop %v2105
    %v2141 = vmul.f32 %v2140, %v2105
    %v2142 = vmul.f32 %v2141, %v2140
    %v2143 = vmul.f32 0.5, %v2142
    %v2144 = vsub.f32 1.5, %v2143
    %v2145 = vmul.f32 %v2140, %v2144
    %vm2146 = vweird.f32 %v2105
    %vm2147 = vweird.f32 %v2140
    %vm2148 = vmor %vm2146, %vm2147
    %v2149 = vsel %vm2148, %v2140, %v2145
    %v2150 = vrsqrt.pop %v2106
    %v2151 = vmul.f32 %v2150, %v2106
    %v2152 = vmul.f32 %v2151, %v2150
    %v2153 = vmul.f32 0.5, %v2152
    %v2154 = vsub.f32 1.5, %v2153
    %v2155 = vmul.f32 %v2150, %v2154
    %vm2156 = vweird.f32 %v2106
    %vm2157 = vweird.f32 %v2150
    %vm2158 = vmor %vm2156, %vm2157
    %v2159 = vsel %vm2158, %v2150, %v2155
    %v2160 = vrsqrt.pop %v2107
    %v2161 = vmul.f32 %v2160, %v2107
    %v2162 = vmul.f32 %v2161, %v2160
    %v2163 = vmul.f32 0.5, %v2162
    %v2164 = vsub.f32 1.5, %v2163
    %v2165 = vmul.f32 %v2160, %v2164
    %vm2166 = vweird.f32 %v2107
    %vm2167 = vweird.f32 %v2160
    %vm2168 = vmor %vm2166, %vm2167
    %v2169 = vsel %vm2168, %v2160, %v2165
    %v2170 = vrsqrt.pop %v2108
    %v2171 = vmul.f32 %v2170, %v2108
    %v2172 = vmul.f32 %v2171, %v2170
    %v2173 = vmul.f32 0.5, %v2172
    %v2174 = vsub.f32 1.5, %v2173
    %v2175 = vmul.f32 %v2170, %v2174
    %vm2176 = vweird.f32 %v2108
    %vm2177 = vweird.f32 %v2170
    %vm2178 = vmor %vm2176, %vm2177
    %v2179 = vsel %vm2178, %v2170, %v2175
    %v2180 = vrsqrt.pop %v2109
    %v2181 = vmul.f32 %v2180, %v2109
    %v2182 = vmul.f32 %v2181, %v2180
    %v2183 = vmul.f32 0.5, %v2182
    %v2184 = vsub.f32 1.5, %v2183
    %v2185 = vmul.f32 %v2180, %v2184
    %vm2186 = vweird.f32 %v2109
    %vm2187 = vweird.f32 %v2180
    %vm2188 = vmor %vm2186, %vm2187
    %v2189 = vsel %vm2188, %v2180, %v2185
    %v2190 = vmul.f32 %v2054, %v2119
    %v2191 = vmul.f32 %v2055, %v2129
    %v2192 = vmul.f32 %v2056, %v2139
    %v2193 = vmul.f32 %v2057, %v2149
    %v2194 = vmul.f32 %v2058, %v2159
    %v2195 = vmul.f32 %v2059, %v2169
    %v2196 = vmul.f32 %v2060, %v2179
    %v2197 = vmul.f32 %v2061, %v2189
    %v2199 = vperm.slane %v671, 0
    %v2201 = vmul.f32 %v2190, %v2199
    %v2202 = vmul.f32 %v2191, %v2199
    %v2203 = vmul.f32 %v2192, %v2199
    %v2204 = vmul.f32 %v2193, %v2199
    %v2205 = vmul.f32 %v2194, %v2199
    %v2206 = vmul.f32 %v2195, %v2199
    %v2207 = vmul.f32 %v2196, %v2199
    %v2208 = vmul.f32 %v2197, %v2199
    %v2210 = vperm.slane %v672, 0
    %v2212 = vadd.f32 %v2201, %v2210
    %v2213 = vadd.f32 %v2202, %v2210
    %v2214 = vadd.f32 %v2203, %v2210
    %v2215 = vadd.f32 %v2204, %v2210
    %v2216 = vadd.f32 %v2205, %v2210
    %v2217 = vadd.f32 %v2206, %v2210
    %v2218 = vadd.f32 %v2207, %v2210
    %v2219 = vadd.f32 %v2208, %v2210
    %v2220 = vpack.c.bf16 %v2213, %v2212
    %v2221 = vpack.c.bf16 %v2215, %v2214
    %v2222 = vpack.c.bf16 %v2217, %v2216
    %v2223 = vpack.c.bf16 %v2219, %v2218
    %v2225 = vperm.slane %v681, 0
    %v2235 = vunpack.c.l.b16 %v673
    %v2236 = vunpack.c.l.b16 %v674
    %v2237 = vunpack.c.l.b16 %v675
    %v2238 = vunpack.c.l.b16 %v676
    %v2239 = vunpack.c.l.b16 %v677
    %v2240 = vunpack.c.l.b16 %v678
    %v2241 = vunpack.c.l.b16 %v679
    %v2242 = vunpack.c.l.b16 %v680
    %v2243 = vpack.c.b16 %v2236, %v2235
    %v2244 = vpack.c.b16 %v2238, %v2237
    %v2245 = vpack.c.b16 %v2240, %v2239
    %v2246 = vpack.c.b16 %v2242, %v2241
    %v2252 = vsel %vm425, %v2220, 0
    %v2255 = vsel %vm425, %v2221, 0
    %v2258 = vsel %vm425, %v2222, 0
    %v2261 = vsel %vm425, %v2223, 0
    %2263 = vmatpush.bf16.msra.mxu0 0
    %2264 = vmatpush.bf16.msra.mxu0 0
    %2265 = vmatpush.bf16.msra.mxu0 0
    %2266 = vmatpush.bf16.msra.mxu0 0
    %2267 = vmatpush.bf16.msra.mxu0 %v2246
    %2268 = vmatpush.bf16.msra.mxu0 %v2245
    %2269 = vmatpush.bf16.msra.mxu0 %v2244
    %2270 = vmatpush.bf16.msra.mxu0 %v2243
    %2271 = vmatmul.bf16.gmra.mxu0 %v2252
    %v2272 = vpop.f32.mrf.mxu0
    %v2273 = vadd.f32 %v2225, %v2272
    %v2274 = vpop.f32.mrf.mxu0
    %v2275 = vadd.f32 %v2225, %v2274
    %2276 = vmatmul.bf16.gmra.mxu0 %v2255
    %v2277 = vpop.f32.mrf.mxu0
    %v2278 = vadd.f32 %v2225, %v2277
    %v2279 = vpop.f32.mrf.mxu0
    %v2280 = vadd.f32 %v2225, %v2279
    %2281 = vmatmul.bf16.gmra.mxu0 %v2258
    %v2282 = vpop.f32.mrf.mxu0
    %v2283 = vadd.f32 %v2225, %v2282
    %v2284 = vpop.f32.mrf.mxu0
    %v2285 = vadd.f32 %v2225, %v2284
    %2286 = vmatmul.bf16.gmra.mxu0 %v2261
    %v2287 = vpop.f32.mrf.mxu0
    %v2288 = vadd.f32 %v2225, %v2287
    %v2289 = vpop.f32.mrf.mxu0
    %v2290 = vadd.f32 %v2225, %v2289
    %2291 = vdwg.mxu0
    %v2292 = vmul.f32 %v2273, %v2273
    %v2293 = vmul.f32 %v2275, %v2275
    %v2294 = vmul.f32 %v2278, %v2278
    %v2295 = vmul.f32 %v2280, %v2280
    %v2296 = vmul.f32 %v2283, %v2283
    %v2297 = vmul.f32 %v2285, %v2285
    %v2298 = vmul.f32 %v2288, %v2288
    %v2299 = vmul.f32 %v2290, %v2290
    %v2300 = vmul.f32 %v2273, %v2292
    %v2301 = vmul.f32 %v2275, %v2293
    %v2302 = vmul.f32 %v2278, %v2294
    %v2303 = vmul.f32 %v2280, %v2295
    %v2304 = vmul.f32 %v2283, %v2296
    %v2305 = vmul.f32 %v2285, %v2297
    %v2306 = vmul.f32 %v2288, %v2298
    %v2307 = vmul.f32 %v2290, %v2299
    %v2308 = vmul.f32 %v2300, 0.044715
    %v2309 = vmul.f32 %v2301, 0.044715
    %v2310 = vmul.f32 %v2302, 0.044715
    %v2311 = vmul.f32 %v2303, 0.044715
    %v2312 = vmul.f32 %v2304, 0.044715
    %v2313 = vmul.f32 %v2305, 0.044715
    %v2314 = vmul.f32 %v2306, 0.044715
    %v2315 = vmul.f32 %v2307, 0.044715
    %v2316 = vadd.f32 %v2273, %v2308
    %v2317 = vadd.f32 %v2275, %v2309
    %v2318 = vadd.f32 %v2278, %v2310
    %v2319 = vadd.f32 %v2280, %v2311
    %v2320 = vadd.f32 %v2283, %v2312
    %v2321 = vadd.f32 %v2285, %v2313
    %v2322 = vadd.f32 %v2288, %v2314
    %v2323 = vadd.f32 %v2290, %v2315
    %v2324 = vmul.f32 %v2316, 0.7978846
    %v2325 = vmul.f32 %v2317, 0.7978846
    %v2326 = vmul.f32 %v2318, 0.7978846
    %v2327 = vmul.f32 %v2319, 0.7978846
    %v2328 = vmul.f32 %v2320, 0.7978846
    %v2329 = vmul.f32 %v2321, 0.7978846
    %v2330 = vmul.f32 %v2322, 0.7978846
    %v2331 = vmul.f32 %v2323, 0.7978846
    %v2332 = vtanh.pop %v2324
    %v2333 = vtanh.pop %v2325
    %v2334 = vtanh.pop %v2326
    %v2335 = vtanh.pop %v2327
    %v2336 = vtanh.pop %v2328
    %v2337 = vtanh.pop %v2329
    %v2338 = vtanh.pop %v2330
    %v2339 = vtanh.pop %v2331
    %v2340 = vadd.f32 %v2332, 1.0
    %v2341 = vadd.f32 %v2333, 1.0
    %v2342 = vadd.f32 %v2334, 1.0
    %v2343 = vadd.f32 %v2335, 1.0
    %v2344 = vadd.f32 %v2336, 1.0
    %v2345 = vadd.f32 %v2337, 1.0
    %v2346 = vadd.f32 %v2338, 1.0
    %v2347 = vadd.f32 %v2339, 1.0
    %v2348 = vmul.f32 %v2340, 0.5
    %v2349 = vmul.f32 %v2341, 0.5
    %v2350 = vmul.f32 %v2342, 0.5
    %v2351 = vmul.f32 %v2343, 0.5
    %v2352 = vmul.f32 %v2344, 0.5
    %v2353 = vmul.f32 %v2345, 0.5
    %v2354 = vmul.f32 %v2346, 0.5
    %v2355 = vmul.f32 %v2347, 0.5
    %v2356 = vmul.f32 %v2273, %v2348
    %v2357 = vmul.f32 %v2275, %v2349
    %v2358 = vmul.f32 %v2278, %v2350
    %v2359 = vmul.f32 %v2280, %v2351
    %v2360 = vmul.f32 %v2283, %v2352
    %v2361 = vmul.f32 %v2285, %v2353
    %v2362 = vmul.f32 %v2288, %v2354
    %v2363 = vmul.f32 %v2290, %v2355
    %v2364 = vpack.c.bf16 %v2357, %v2356
    %v2365 = vpack.c.bf16 %v2359, %v2358
    %v2366 = vpack.c.bf16 %v2361, %v2360
    %v2367 = vpack.c.bf16 %v2363, %v2362
    %v2369 = vperm.slane %v698, 0
    %v2387 = vunpack.c.l.b16 %v682
    %v2388 = vunpack.c.l.b16 %v683
    %v2389 = vunpack.c.l.b16 %v684
    %v2390 = vunpack.c.l.b16 %v685
    %v2391 = vunpack.c.l.b16 %v686
    %v2392 = vunpack.c.l.b16 %v687
    %v2393 = vunpack.c.l.b16 %v688
    %v2394 = vunpack.c.l.b16 %v689
    %v2395 = vunpack.c.l.b16 %v690
    %v2396 = vunpack.c.l.b16 %v691
    %v2397 = vunpack.c.l.b16 %v692
    %v2398 = vunpack.c.l.b16 %v693
    %v2399 = vunpack.c.l.b16 %v694
    %v2400 = vunpack.c.l.b16 %v695
    %v2401 = vunpack.c.l.b16 %v696
    %v2402 = vunpack.c.l.b16 %v697
    %v2403 = vpack.c.b16 %v2388, %v2387
    %v2404 = vpack.c.b16 %v2390, %v2389
    %v2405 = vpack.c.b16 %v2392, %v2391
    %v2406 = vpack.c.b16 %v2394, %v2393
    %v2407 = vpack.c.b16 %v2396, %v2395
    %v2408 = vpack.c.b16 %v2398, %v2397
    %v2409 = vpack.c.b16 %v2400, %v2399
    %v2410 = vpack.c.b16 %v2402, %v2401
    %2419 = vmatpush.bf16.msra.mxu0 %v2410
    %2420 = vmatpush.bf16.msra.mxu0 %v2409
    %2421 = vmatpush.bf16.msra.mxu0 %v2408
    %2422 = vmatpush.bf16.msra.mxu0 %v2407
    %2423 = vmatpush.bf16.msra.mxu0 %v2406
    %2424 = vmatpush.bf16.msra.mxu0 %v2405
    %2425 = vmatpush.bf16.msra.mxu0 %v2404
    %2426 = vmatpush.bf16.msra.mxu0 %v2403
    %2427 = vmatmul.bf16.gmra.mxu0 %v2364
    %v2428 = vpop.f32.mrf.mxu0
    %v2429 = vadd.f32 %v2369, %v2428
    %v2430 = vpop.f32.mrf.mxu0
    %v2431 = vadd.f32 %v2369, %v2430
    %2432 = vmatmul.bf16.gmra.mxu0 %v2365
    %v2433 = vpop.f32.mrf.mxu0
    %v2434 = vadd.f32 %v2369, %v2433
    %v2435 = vpop.f32.mrf.mxu0
    %v2436 = vadd.f32 %v2369, %v2435
    %2437 = vmatmul.bf16.gmra.mxu0 %v2366
    %v2438 = vpop.f32.mrf.mxu0
    %v2439 = vadd.f32 %v2369, %v2438
    %v2440 = vpop.f32.mrf.mxu0
    %v2441 = vadd.f32 %v2369, %v2440
    %2442 = vmatmul.bf16.gmra.mxu0 %v2367
    %v2443 = vpop.f32.mrf.mxu0
    %v2444 = vadd.f32 %v2369, %v2443
    %v2445 = vpop.f32.mrf.mxu0
    %v2446 = vadd.f32 %v2369, %v2445
    %2447 = vdwg.mxu0
    %v2448 = vadd.f32 %v2212, %v2429
    %v2449 = vadd.f32 %v2213, %v2431
    %v2450 = vadd.f32 %v2214, %v2434
    %v2451 = vadd.f32 %v2215, %v2436
    %v2452 = vadd.f32 %v2216, %v2439
    %v2453 = vadd.f32 %v2217, %v2441
    %v2454 = vadd.f32 %v2218, %v2444
    %v2455 = vadd.f32 %v2219, %v2446
    %v2456 = vsel %vm425, %v2448, 0.0
    %2457 = vadd.xlane.f32.xlu0 %v2456
    %v2458 = vpop.xlane.xlu0 %2457
    %v2459 = vsel %vm425, %v2449, 0.0
    %2460 = vadd.xlane.f32.xlu0 %v2459
    %v2461 = vpop.xlane.xlu0 %2460
    %v2462 = vsel %vm425, %v2450, 0.0
    %2463 = vadd.xlane.f32.xlu0 %v2462
    %v2464 = vpop.xlane.xlu0 %2463
    %v2465 = vsel %vm425, %v2451, 0.0
    %2466 = vadd.xlane.f32.xlu0 %v2465
    %v2467 = vpop.xlane.xlu0 %2466
    %v2468 = vsel %vm425, %v2452, 0.0
    %2469 = vadd.xlane.f32.xlu0 %v2468
    %v2470 = vpop.xlane.xlu0 %2469
    %v2471 = vsel %vm425, %v2453, 0.0
    %2472 = vadd.xlane.f32.xlu0 %v2471
    %v2473 = vpop.xlane.xlu0 %2472
    %v2474 = vsel %vm425, %v2454, 0.0
    %2475 = vadd.xlane.f32.xlu0 %v2474
    %v2476 = vpop.xlane.xlu0 %2475
    %v2477 = vsel %vm425, %v2455, 0.0
    %2478 = vadd.xlane.f32.xlu0 %v2477
    %v2479 = vpop.xlane.xlu0 %2478
    %v2480 = vmul.f32 %v2458, %v456
    %v2481 = vmul.f32 %v2461, %v456
    %v2482 = vmul.f32 %v2464, %v456
    %v2483 = vmul.f32 %v2467, %v456
    %v2484 = vmul.f32 %v2470, %v456
    %v2485 = vmul.f32 %v2473, %v456
    %v2486 = vmul.f32 %v2476, %v456
    %v2487 = vmul.f32 %v2479, %v456
    %v2488 = vsub.f32 %v2448, %v2480
    %v2489 = vsub.f32 %v2449, %v2481
    %v2490 = vsub.f32 %v2450, %v2482
    %v2491 = vsub.f32 %v2451, %v2483
    %v2492 = vsub.f32 %v2452, %v2484
    %v2493 = vsub.f32 %v2453, %v2485
    %v2494 = vsub.f32 %v2454, %v2486
    %v2495 = vsub.f32 %v2455, %v2487
    %v2496 = vmul.f32 %v2488, %v2488
    %v2497 = vmul.f32 %v2489, %v2489
    %v2498 = vmul.f32 %v2490, %v2490
    %v2499 = vmul.f32 %v2491, %v2491
    %v2500 = vmul.f32 %v2492, %v2492
    %v2501 = vmul.f32 %v2493, %v2493
    %v2502 = vmul.f32 %v2494, %v2494
    %v2503 = vmul.f32 %v2495, %v2495
    %v2504 = vsel %vm425, %v2496, 0.0
    %2505 = vadd.xlane.f32.xlu0 %v2504
    %v2506 = vpop.xlane.xlu0 %2505
    %v2507 = vsel %vm425, %v2497, 0.0
    %2508 = vadd.xlane.f32.xlu0 %v2507
    %v2509 = vpop.xlane.xlu0 %2508
    %v2510 = vsel %vm425, %v2498, 0.0
    %2511 = vadd.xlane.f32.xlu0 %v2510
    %v2512 = vpop.xlane.xlu0 %2511
    %v2513 = vsel %vm425, %v2499, 0.0
    %2514 = vadd.xlane.f32.xlu0 %v2513
    %v2515 = vpop.xlane.xlu0 %2514
    %v2516 = vsel %vm425, %v2500, 0.0
    %2517 = vadd.xlane.f32.xlu0 %v2516
    %v2518 = vpop.xlane.xlu0 %2517
    %v2519 = vsel %vm425, %v2501, 0.0
    %2520 = vadd.xlane.f32.xlu0 %v2519
    %v2521 = vpop.xlane.xlu0 %2520
    %v2522 = vsel %vm425, %v2502, 0.0
    %2523 = vadd.xlane.f32.xlu0 %v2522
    %v2524 = vpop.xlane.xlu0 %2523
    %v2525 = vsel %vm425, %v2503, 0.0
    %2526 = vadd.xlane.f32.xlu0 %v2525
    %v2527 = vpop.xlane.xlu0 %2526
    %v2528 = vmul.f32 %v2506, %v456
    %v2529 = vmul.f32 %v2509, %v456
    %v2530 = vmul.f32 %v2512, %v456
    %v2531 = vmul.f32 %v2515, %v456
    %v2532 = vmul.f32 %v2518, %v456
    %v2533 = vmul.f32 %v2521, %v456
    %v2534 = vmul.f32 %v2524, %v456
    %v2535 = vmul.f32 %v2527, %v456
    %v2536 = vadd.f32 %v2528, 1e-12
    %v2537 = vadd.f32 %v2529, 1e-12
    %v2538 = vadd.f32 %v2530, 1e-12
    %v2539 = vadd.f32 %v2531, 1e-12
    %v2540 = vadd.f32 %v2532, 1e-12
    %v2541 = vadd.f32 %v2533, 1e-12
    %v2542 = vadd.f32 %v2534, 1e-12
    %v2543 = vadd.f32 %v2535, 1e-12
    %v2544 = vrsqrt.pop %v2536
    %v2545 = vmul.f32 %v2544, %v2536
    %v2546 = vmul.f32 %v2545, %v2544
    %v2547 = vmul.f32 0.5, %v2546
    %v2548 = vsub.f32 1.5, %v2547
    %v2549 = vmul.f32 %v2544, %v2548
    %vm2550 = vweird.f32 %v2536
    %vm2551 = vweird.f32 %v2544
    %vm2552 = vmor %vm2550, %vm2551
    %v2553 = vsel %vm2552, %v2544, %v2549
    %v2554 = vrsqrt.pop %v2537
    %v2555 = vmul.f32 %v2554, %v2537
    %v2556 = vmul.f32 %v2555, %v2554
    %v2557 = vmul.f32 0.5, %v2556
    %v2558 = vsub.f32 1.5, %v2557
    %v2559 = vmul.f32 %v2554, %v2558
    %vm2560 = vweird.f32 %v2537
    %vm2561 = vweird.f32 %v2554
    %vm2562 = vmor %vm2560, %vm2561
    %v2563 = vsel %vm2562, %v2554, %v2559
    %v2564 = vrsqrt.pop %v2538
    %v2565 = vmul.f32 %v2564, %v2538
    %v2566 = vmul.f32 %v2565, %v2564
    %v2567 = vmul.f32 0.5, %v2566
    %v2568 = vsub.f32 1.5, %v2567
    %v2569 = vmul.f32 %v2564, %v2568
    %vm2570 = vweird.f32 %v2538
    %vm2571 = vweird.f32 %v2564
    %vm2572 = vmor %vm2570, %vm2571
    %v2573 = vsel %vm2572, %v2564, %v2569
    %v2574 = vrsqrt.pop %v2539
    %v2575 = vmul.f32 %v2574, %v2539
    %v2576 = vmul.f32 %v2575, %v2574
    %v2577 = vmul.f32 0.5, %v2576
    %v2578 = vsub.f32 1.5, %v2577
    %v2579 = vmul.f32 %v2574, %v2578
    %vm2580 = vweird.f32 %v2539
    %vm2581 = vweird.f32 %v2574
    %vm2582 = vmor %vm2580, %vm2581
    %v2583 = vsel %vm2582, %v2574, %v2579
    %v2584 = vrsqrt.pop %v2540
    %v2585 = vmul.f32 %v2584, %v2540
    %v2586 = vmul.f32 %v2585, %v2584
    %v2587 = vmul.f32 0.5, %v2586
    %v2588 = vsub.f32 1.5, %v2587
    %v2589 = vmul.f32 %v2584, %v2588
    %vm2590 = vweird.f32 %v2540
    %vm2591 = vweird.f32 %v2584
    %vm2592 = vmor %vm2590, %vm2591
    %v2593 = vsel %vm2592, %v2584, %v2589
    %v2594 = vrsqrt.pop %v2541
    %v2595 = vmul.f32 %v2594, %v2541
    %v2596 = vmul.f32 %v2595, %v2594
    %v2597 = vmul.f32 0.5, %v2596
    %v2598 = vsub.f32 1.5, %v2597
    %v2599 = vmul.f32 %v2594, %v2598
    %vm2600 = vweird.f32 %v2541
    %vm2601 = vweird.f32 %v2594
    %vm2602 = vmor %vm2600, %vm2601
    %v2603 = vsel %vm2602, %v2594, %v2599
    %v2604 = vrsqrt.pop %v2542
    %v2605 = vmul.f32 %v2604, %v2542
    %v2606 = vmul.f32 %v2605, %v2604
    %v2607 = vmul.f32 0.5, %v2606
    %v2608 = vsub.f32 1.5, %v2607
    %v2609 = vmul.f32 %v2604, %v2608
    %vm2610 = vweird.f32 %v2542
    %vm2611 = vweird.f32 %v2604
    %vm2612 = vmor %vm2610, %vm2611
    %v2613 = vsel %vm2612, %v2604, %v2609
    %v2614 = vrsqrt.pop %v2543
    %v2615 = vmul.f32 %v2614, %v2543
    %v2616 = vmul.f32 %v2615, %v2614
    %v2617 = vmul.f32 0.5, %v2616
    %v2618 = vsub.f32 1.5, %v2617
    %v2619 = vmul.f32 %v2614, %v2618
    %vm2620 = vweird.f32 %v2543
    %vm2621 = vweird.f32 %v2614
    %vm2622 = vmor %vm2620, %vm2621
    %v2623 = vsel %vm2622, %v2614, %v2619
    %v2624 = vmul.f32 %v2488, %v2553
    %v2625 = vmul.f32 %v2489, %v2563
    %v2626 = vmul.f32 %v2490, %v2573
    %v2627 = vmul.f32 %v2491, %v2583
    %v2628 = vmul.f32 %v2492, %v2593
    %v2629 = vmul.f32 %v2493, %v2603
    %v2630 = vmul.f32 %v2494, %v2613
    %v2631 = vmul.f32 %v2495, %v2623
    %v2633 = vperm.slane %v699, 0
    %v2635 = vmul.f32 %v2624, %v2633
    %v2636 = vmul.f32 %v2625, %v2633
    %v2637 = vmul.f32 %v2626, %v2633
    %v2638 = vmul.f32 %v2627, %v2633
    %v2639 = vmul.f32 %v2628, %v2633
    %v2640 = vmul.f32 %v2629, %v2633
    %v2641 = vmul.f32 %v2630, %v2633
    %v2642 = vmul.f32 %v2631, %v2633
    %v2644 = vperm.slane %v700, 0
    %v2646 = vadd.f32 %v2635, %v2644
    %v2647 = vadd.f32 %v2636, %v2644
    %v2648 = vadd.f32 %v2637, %v2644
    %v2649 = vadd.f32 %v2638, %v2644
    %v2650 = vadd.f32 %v2639, %v2644
    %v2651 = vadd.f32 %v2640, %v2644
    %v2652 = vadd.f32 %v2641, %v2644
    %v2653 = vadd.f32 %v2642, %v2644
    %v2654 = vld [vmem:[%s49] sm:$0xf]
    %v2655 = vld [vmem:[%s49 + $0x4] sm:$0xf]
    %v2656 = vld [vmem:[%s49 + $0x8] sm:$0xf]
    %v2657 = vld [vmem:[%s49 + $0xc] sm:$0xf]
    %v2658 = vld [vmem:[%s49 + $0x10] sm:$0xf]
    %v2659 = vld [vmem:[%s49 + $0x14] sm:$0xf]
    %v2660 = vld [vmem:[%s49 + $0x18] sm:$0xf]
    %v2661 = vld [vmem:[%s49 + $0x1c] sm:$0xf]
    %v2662 = vld [vmem:[%s51] sm:$0x1]
    %v2663 = vld [vmem:[%s53] sm:$0xf]
    %v2664 = vld [vmem:[%s53 + $0x4] sm:$0xf]
    %v2665 = vld [vmem:[%s53 + $0x8] sm:$0xf]
    %v2666 = vld [vmem:[%s53 + $0xc] sm:$0xf]
    %v2667 = vld [vmem:[%s53 + $0x10] sm:$0xf]
    %v2668 = vld [vmem:[%s53 + $0x14] sm:$0xf]
    %v2669 = vld [vmem:[%s53 + $0x18] sm:$0xf]
    %v2670 = vld [vmem:[%s53 + $0x1c] sm:$0xf]
    %v2671 = vld [vmem:[%s55] sm:$0x1]
    %v2672 = vld [vmem:[%s57] sm:$0xf]
    %v2673 = vld [vmem:[%s57 + $0x4] sm:$0xf]
    %v2674 = vld [vmem:[%s57 + $0x8] sm:$0xf]
    %v2675 = vld [vmem:[%s57 + $0xc] sm:$0xf]
    %v2676 = vld [vmem:[%s57 + $0x10] sm:$0xf]
    %v2677 = vld [vmem:[%s57 + $0x14] sm:$0xf]
    %v2678 = vld [vmem:[%s57 + $0x18] sm:$0xf]
    %v2679 = vld [vmem:[%s57 + $0x1c] sm:$0xf]
    %v2680 = vld [vmem:[%s59] sm:$0x1]
    %v2681 = vld [vmem:[%s61] sm:$0xf]
    %v2682 = vld [vmem:[%s61 + $0x4] sm:$0xf]
    %v2683 = vld [vmem:[%s61 + $0x8] sm:$0xf]
    %v2684 = vld [vmem:[%s61 + $0xc] sm:$0xf]
    %v2685 = vld [vmem:[%s61 + $0x10] sm:$0xf]
    %v2686 = vld [vmem:[%s61 + $0x14] sm:$0xf]
    %v2687 = vld [vmem:[%s61 + $0x18] sm:$0xf]
    %v2688 = vld [vmem:[%s61 + $0x1c] sm:$0xf]
    %v2689 = vld [vmem:[%s63] sm:$0x1]
    %v2690 = vld [vmem:[%s65] sm:$0x1]
    %v2691 = vld [vmem:[%s67] sm:$0x1]
    %v2692 = vld [vmem:[%s69] sm:$0xf]
    %v2693 = vld [vmem:[%s69 + $0x4] sm:$0xf]
    %v2694 = vld [vmem:[%s69 + $0x8] sm:$0xf]
    %v2695 = vld [vmem:[%s69 + $0xc] sm:$0xf]
    %v2696 = vld [vmem:[%s69 + $0x10] sm:$0xf]
    %v2697 = vld [vmem:[%s69 + $0x14] sm:$0xf]
    %v2698 = vld [vmem:[%s69 + $0x18] sm:$0xf]
    %v2699 = vld [vmem:[%s69 + $0x1c] sm:$0xf]
    %v2700 = vld [vmem:[%s71] sm:$0x1]
    %v2701 = vld [vmem:[%s73] sm:$0xf]
    %v2702 = vld [vmem:[%s73 + $0x4] sm:$0xf]
    %v2703 = vld [vmem:[%s73 + $0x8] sm:$0xf]
    %v2704 = vld [vmem:[%s73 + $0xc] sm:$0xf]
    %v2705 = vld [vmem:[%s73 + $0x10] sm:$0xf]
    %v2706 = vld [vmem:[%s73 + $0x14] sm:$0xf]
    %v2707 = vld [vmem:[%s73 + $0x18] sm:$0xf]
    %v2708 = vld [vmem:[%s73 + $0x1c] sm:$0xf]
    %v2709 = vld [vmem:[%s73 + $0x20] sm:$0xf]
    %v2710 = vld [vmem:[%s73 + $0x24] sm:$0xf]
    %v2711 = vld [vmem:[%s73 + $0x28] sm:$0xf]
    %v2712 = vld [vmem:[%s73 + $0x2c] sm:$0xf]
    %v2713 = vld [vmem:[%s73 + $0x30] sm:$0xf]
    %v2714 = vld [vmem:[%s73 + $0x34] sm:$0xf]
    %v2715 = vld [vmem:[%s73 + $0x38] sm:$0xf]
    %v2716 = vld [vmem:[%s73 + $0x3c] sm:$0xf]
    %v2717 = vld [vmem:[%s75] sm:$0x1]
    %v2718 = vld [vmem:[%s77] sm:$0x1]
    %v2719 = vld [vmem:[%s79] sm:$0x1]
    %v2720 = vpack.c.bf16 %v2647, %v2646
    %v2721 = vpack.c.bf16 %v2649, %v2648
    %v2722 = vpack.c.bf16 %v2651, %v2650
    %v2723 = vpack.c.bf16 %v2653, %v2652
    %v2725 = vperm.slane %v2662, 0
    %v2735 = vunpack.c.l.b16 %v2654
    %v2736 = vunpack.c.l.b16 %v2655
    %v2737 = vunpack.c.l.b16 %v2656
    %v2738 = vunpack.c.l.b16 %v2657
    %v2739 = vunpack.c.l.b16 %v2658
    %v2740 = vunpack.c.l.b16 %v2659
    %v2741 = vunpack.c.l.b16 %v2660
    %v2742 = vunpack.c.l.b16 %v2661
    %v2743 = vpack.c.b16 %v2736, %v2735
    %v2744 = vpack.c.b16 %v2738, %v2737
    %v2745 = vpack.c.b16 %v2740, %v2739
    %v2746 = vpack.c.b16 %v2742, %v2741
    %v2752 = vsel %vm425, %v2720, 0
    %v2755 = vsel %vm425, %v2721, 0
    %v2758 = vsel %vm425, %v2722, 0
    %v2761 = vsel %vm425, %v2723, 0
    %2763 = vmatpush.bf16.msra.mxu0 0
    %2764 = vmatpush.bf16.msra.mxu0 0
    %2765 = vmatpush.bf16.msra.mxu0 0
    %2766 = vmatpush.bf16.msra.mxu0 0
    %2767 = vmatpush.bf16.msra.mxu0 %v2746
    %2768 = vmatpush.bf16.msra.mxu0 %v2745
    %2769 = vmatpush.bf16.msra.mxu0 %v2744
    %2770 = vmatpush.bf16.msra.mxu0 %v2743
    %2771 = vmatmul.bf16.gmra.mxu0 %v2752
    %v2772 = vpop.f32.mrf.mxu0
    %v2773 = vadd.f32 %v2725, %v2772
    %v2774 = vpop.f32.mrf.mxu0
    %v2775 = vadd.f32 %v2725, %v2774
    %2776 = vmatmul.bf16.gmra.mxu0 %v2755
    %v2777 = vpop.f32.mrf.mxu0
    %v2778 = vadd.f32 %v2725, %v2777
    %v2779 = vpop.f32.mrf.mxu0
    %v2780 = vadd.f32 %v2725, %v2779
    %2781 = vmatmul.bf16.gmra.mxu0 %v2758
    %v2782 = vpop.f32.mrf.mxu0
    %v2783 = vadd.f32 %v2725, %v2782
    %v2784 = vpop.f32.mrf.mxu0
    %v2785 = vadd.f32 %v2725, %v2784
    %2786 = vmatmul.bf16.gmra.mxu0 %v2761
    %v2787 = vpop.f32.mrf.mxu0
    %v2788 = vadd.f32 %v2725, %v2787
    %v2789 = vpop.f32.mrf.mxu0
    %v2790 = vadd.f32 %v2725, %v2789
    %2791 = vdwg.mxu0
    %v2792 = vmul.f32 %v2773, 0.25
    %v2793 = vmul.f32 %v2775, 0.25
    %v2794 = vmul.f32 %v2778, 0.25
    %v2795 = vmul.f32 %v2780, 0.25
    %v2796 = vmul.f32 %v2783, 0.25
    %v2797 = vmul.f32 %v2785, 0.25
    %v2798 = vmul.f32 %v2788, 0.25
    %v2799 = vmul.f32 %v2790, 0.25
    %v2801 = vperm.slane %v2671, 0
    %v2811 = vunpack.c.l.b16 %v2663
    %v2812 = vunpack.c.l.b16 %v2664
    %v2813 = vunpack.c.l.b16 %v2665
    %v2814 = vunpack.c.l.b16 %v2666
    %v2815 = vunpack.c.l.b16 %v2667
    %v2816 = vunpack.c.l.b16 %v2668
    %v2817 = vunpack.c.l.b16 %v2669
    %v2818 = vunpack.c.l.b16 %v2670
    %v2819 = vpack.c.b16 %v2812, %v2811
    %v2820 = vpack.c.b16 %v2814, %v2813
    %v2821 = vpack.c.b16 %v2816, %v2815
    %v2822 = vpack.c.b16 %v2818, %v2817
    %2827 = vmatpush.bf16.msra.mxu0 0
    %2828 = vmatpush.bf16.msra.mxu0 0
    %2829 = vmatpush.bf16.msra.mxu0 0
    %2830 = vmatpush.bf16.msra.mxu0 0
    %2831 = vmatpush.bf16.msra.mxu0 %v2822
    %2832 = vmatpush.bf16.msra.mxu0 %v2821
    %2833 = vmatpush.bf16.msra.mxu0 %v2820
    %2834 = vmatpush.bf16.msra.mxu0 %v2819
    %2835 = vmatmul.bf16.gmra.mxu0 %v2752
    %v2836 = vpop.f32.mrf.mxu0
    %v2837 = vadd.f32 %v2801, %v2836
    %v2838 = vpop.f32.mrf.mxu0
    %v2839 = vadd.f32 %v2801, %v2838
    %2840 = vmatmul.bf16.gmra.mxu0 %v2755
    %v2841 = vpop.f32.mrf.mxu0
    %v2842 = vadd.f32 %v2801, %v2841
    %v2843 = vpop.f32.mrf.mxu0
    %v2844 = vadd.f32 %v2801, %v2843
    %2845 = vmatmul.bf16.gmra.mxu0 %v2758
    %v2846 = vpop.f32.mrf.mxu0
    %v2847 = vadd.f32 %v2801, %v2846
    %v2848 = vpop.f32.mrf.mxu0
    %v2849 = vadd.f32 %v2801, %v2848
    %2850 = vmatmul.bf16.gmra.mxu0 %v2761
    %v2851 = vpop.f32.mrf.mxu0
    %v2852 = vadd.f32 %v2801, %v2851
    %v2853 = vpop.f32.mrf.mxu0
    %v2854 = vadd.f32 %v2801, %v2853
    %2855 = vdwg.mxu0
    %v2857 = vperm.slane %v2680, 0
    %v2867 = vunpack.c.l.b16 %v2672
    %v2868 = vunpack.c.l.b16 %v2673
    %v2869 = vunpack.c.l.b16 %v2674
    %v2870 = vunpack.c.l.b16 %v2675
    %v2871 = vunpack.c.l.b16 %v2676
    %v2872 = vunpack.c.l.b16 %v2677
    %v2873 = vunpack.c.l.b16 %v2678
    %v2874 = vunpack.c.l.b16 %v2679
    %v2875 = vpack.c.b16 %v2868, %v2867
    %v2876 = vpack.c.b16 %v2870, %v2869
    %v2877 = vpack.c.b16 %v2872, %v2871
    %v2878 = vpack.c.b16 %v2874, %v2873
    %2883 = vmatpush.bf16.msra.mxu0 0
    %2884 = vmatpush.bf16.msra.mxu0 0
    %2885 = vmatpush.bf16.msra.mxu0 0
    %2886 = vmatpush.bf16.msra.mxu0 0
    %2887 = vmatpush.bf16.msra.mxu0 %v2878
    %2888 = vmatpush.bf16.msra.mxu0 %v2877
    %2889 = vmatpush.bf16.msra.mxu0 %v2876
    %2890 = vmatpush.bf16.msra.mxu0 %v2875
    %2891 = vmatmul.bf16.gmra.mxu0 %v2752
    %v2892 = vpop.f32.mrf.mxu0
    %v2893 = vadd.f32 %v2857, %v2892
    %v2894 = vpop.f32.mrf.mxu0
    %v2895 = vadd.f32 %v2857, %v2894
    %2896 = vmatmul.bf16.gmra.mxu0 %v2755
    %v2897 = vpop.f32.mrf.mxu0
    %v2898 = vadd.f32 %v2857, %v2897
    %v2899 = vpop.f32.mrf.mxu0
    %v2900 = vadd.f32 %v2857, %v2899
    %2901 = vmatmul.bf16.gmra.mxu0 %v2758
    %v2902 = vpop.f32.mrf.mxu0
    %v2903 = vadd.f32 %v2857, %v2902
    %v2904 = vpop.f32.mrf.mxu0
    %v2905 = vadd.f32 %v2857, %v2904
    %2906 = vmatmul.bf16.gmra.mxu0 %v2761
    %v2907 = vpop.f32.mrf.mxu0
    %v2908 = vadd.f32 %v2857, %v2907
    %v2909 = vpop.f32.mrf.mxu0
    %v2910 = vadd.f32 %v2857, %v2909
    %2911 = vdwg.mxu0
    %v2912 = vpack.c.bf16 %v2793, %v2792
    %v2913 = vpack.c.bf16 %v2795, %v2794
    %v2914 = vpack.c.bf16 %v2839, %v2837
    %v2915 = vpack.c.bf16 %v2844, %v2842
    %v2916 = vpack.c.bf16 %v2895, %v2893
    %v2917 = vpack.c.bf16 %v2900, %v2898
    %v2919 = vsel %vm900, %v2912, 0
    %v2922 = vsel %vm900, %v2913, 0
    %v2925 = vsel %vm900, %v2914, 0
    %v2928 = vsel %vm900, %v2915, 0
    %2930 = vmatpush.bf16.xpose.msra.mxu0 0
    %2931 = vmatpush.bf16.xpose.msra.mxu0 0
    %2932 = vmatpush.bf16.xpose.msra.mxu0 0
    %2933 = vmatpush.bf16.xpose.msra.mxu0 0
    %2934 = vmatpush.bf16.xpose.msra.mxu0 0
    %2935 = vmatpush.bf16.xpose.msra.mxu0 0
    %2936 = vmatpush.bf16.xpose.msra.mxu0 %v2928
    %2937 = vmatpush.bf16.xpose.msra.mxu0 %v2925
    %2938 = vmatmul.bf16.gmra.mxu0 %v2919
    %v2939 = vpop.f32.mrf.mxu0
    %v2940 = vadd.f32 %v899, %v2939
    %v2941 = vpop.f32.mrf.mxu0
    %v2942 = vadd.f32 %v899, %v2941
    %2943 = vmatmul.bf16.gmra.mxu0 %v2922
    %v2944 = vpop.f32.mrf.mxu0
    %v2945 = vadd.f32 %v899, %v2944
    %v2946 = vpop.f32.mrf.mxu0
    %v2947 = vadd.f32 %v899, %v2946
    %2948 = vdwg.mxu0
    %v2949 = vsel %vm932, %v2940, -inf
    %2950 = vmax.xlane.f32.xlu0 %v2949
    %v2951 = vpop.xlane.xlu0 %2950
    %v2952 = vsel %vm932, %v2942, -inf
    %2953 = vmax.xlane.f32.xlu0 %v2952
    %v2954 = vpop.xlane.xlu0 %2953
    %v2955 = vsel %vm932, %v2945, -inf
    %2956 = vmax.xlane.f32.xlu0 %v2955
    %v2957 = vpop.xlane.xlu0 %2956
    %v2958 = vsel %vm932, %v2947, -inf
    %2959 = vmax.xlane.f32.xlu0 %v2958
    %v2960 = vpop.xlane.xlu0 %2959
    %v2961 = vsub.f32 %v2940, %v2951
    %v2962 = vsub.f32 %v2942, %v2954
    %v2963 = vsub.f32 %v2945, %v2957
    %v2964 = vsub.f32 %v2947, %v2960
    %v2965 = vmul.f32 %v2961, 1.442695
    %v2966 = vpow.pop %v2965
    %v2967 = vmul.f32 %v2962, 1.442695
    %v2968 = vpow.pop %v2967
    %v2969 = vmul.f32 %v2963, 1.442695
    %v2970 = vpow.pop %v2969
    %v2971 = vmul.f32 %v2964, 1.442695
    %v2972 = vpow.pop %v2971
    %v2973 = vsel %vm932, %v2966, 0.0
    %2974 = vadd.xlane.f32.xlu0 %v2973
    %v2975 = vpop.xlane.xlu0 %2974
    %v2976 = vsel %vm932, %v2968, 0.0
    %2977 = vadd.xlane.f32.xlu0 %v2976
    %v2978 = vpop.xlane.xlu0 %2977
    %v2979 = vsel %vm932, %v2970, 0.0
    %2980 = vadd.xlane.f32.xlu0 %v2979
    %v2981 = vpop.xlane.xlu0 %2980
    %v2982 = vsel %vm932, %v2972, 0.0
    %2983 = vadd.xlane.f32.xlu0 %v2982
    %v2984 = vpop.xlane.xlu0 %2983
    %v2985 = vrcp.pop %v2975
    %v2986 = vrcp.pop %v2978
    %v2987 = vrcp.pop %v2981
    %v2988 = vrcp.pop %v2984
    %v2989 = vmul.f32 %v2966, %v2985
    %v2990 = vmul.f32 %v2968, %v2986
    %v2991 = vmul.f32 %v2970, %v2987
    %v2992 = vmul.f32 %v2972, %v2988
    %v2993 = vpack.c.bf16 %v2990, %v2989
    %v2994 = vpack.c.bf16 %v2992, %v2991
    %v2996 = vsel %vm932, %v2993, 0
    %v2999 = vsel %vm932, %v2994, 0
    %3001 = vmatpush.bf16.msra.mxu0 0
    %3002 = vmatpush.bf16.msra.mxu0 0
    %3003 = vmatpush.bf16.msra.mxu0 0
    %3004 = vmatpush.bf16.msra.mxu0 0
    %3005 = vmatpush.bf16.msra.mxu0 0
    %3006 = vmatpush.bf16.msra.mxu0 0
    %3007 = vmatpush.bf16.msra.mxu0 %v2917
    %3008 = vmatpush.bf16.msra.mxu0 %v2916
    %3009 = vmatmul.bf16.gmra.mxu0 %v2996
    %v3010 = vpop.f32.mrf.mxu0
    %v3011 = vadd.f32 0.0, %v3010
    %v3012 = vpop.f32.mrf.mxu0
    %v3013 = vadd.f32 0.0, %v3012
    %3014 = vmatmul.bf16.gmra.mxu0 %v2999
    %v3015 = vpop.f32.mrf.mxu0
    %v3016 = vadd.f32 0.0, %v3015
    %v3017 = vpop.f32.mrf.mxu0
    %v3018 = vadd.f32 0.0, %v3017
    %3019 = vdwg.mxu0
    %3022 = vrot.lane.b32.xlu0 %v2912, 112
    %v3023 = vpop.permute.xlu0 %3022
    %3024 = vrot.lane.b32.xlu0 %v2913, 112
    %v3025 = vpop.permute.xlu0 %3024
    %3028 = vrot.lane.b32.xlu0 %v2914, 112
    %v3029 = vpop.permute.xlu0 %3028
    %3030 = vrot.lane.b32.xlu0 %v2915, 112
    %v3031 = vpop.permute.xlu0 %3030
    %v3033 = vsel %vm900, %v3023, 0
    %v3036 = vsel %vm900, %v3025, 0
    %v3039 = vsel %vm900, %v3029, 0
    %v3042 = vsel %vm900, %v3031, 0
    %3044 = vmatpush.bf16.xpose.msra.mxu0 0
    %3045 = vmatpush.bf16.xpose.msra.mxu0 0
    %3046 = vmatpush.bf16.xpose.msra.mxu0 0
    %3047 = vmatpush.bf16.xpose.msra.mxu0 0
    %3048 = vmatpush.bf16.xpose.msra.mxu0 0
    %3049 = vmatpush.bf16.xpose.msra.mxu0 0
    %3050 = vmatpush.bf16.xpose.msra.mxu0 %v3042
    %3051 = vmatpush.bf16.xpose.msra.mxu0 %v3039
    %3052 = vmatmul.bf16.gmra.mxu0 %v3033
    %v3053 = vpop.f32.mrf.mxu0
    %v3054 = vadd.f32 %v899, %v3053
    %v3055 = vpop.f32.mrf.mxu0
    %v3056 = vadd.f32 %v899, %v3055
    %3057 = vmatmul.bf16.gmra.mxu0 %v3036
    %v3058 = vpop.f32.mrf.mxu0
    %v3059 = vadd.f32 %v899, %v3058
    %v3060 = vpop.f32.mrf.mxu0
    %v3061 = vadd.f32 %v899, %v3060
    %3062 = vdwg.mxu0
    %v3063 = vsel %vm932, %v3054, -inf
    %3064 = vmax.xlane.f32.xlu0 %v3063
    %v3065 = vpop.xlane.xlu0 %3064
    %v3066 = vsel %vm932, %v3056, -inf
    %3067 = vmax.xlane.f32.xlu0 %v3066
    %v3068 = vpop.xlane.xlu0 %3067
    %v3069 = vsel %vm932, %v3059, -inf
    %3070 = vmax.xlane.f32.xlu0 %v3069
    %v3071 = vpop.xlane.xlu0 %3070
    %v3072 = vsel %vm932, %v3061, -inf
    %3073 = vmax.xlane.f32.xlu0 %v3072
    %v3074 = vpop.xlane.xlu0 %3073
    %v3075 = vsub.f32 %v3054, %v3065
    %v3076 = vsub.f32 %v3056, %v3068
    %v3077 = vsub.f32 %v3059, %v3071
    %v3078 = vsub.f32 %v3061, %v3074
    %v3079 = vmul.f32 %v3075, 1.442695
    %v3080 = vpow.pop %v3079
    %v3081 = vmul.f32 %v3076, 1.442695
    %v3082 = vpow.pop %v3081
    %v3083 = vmul.f32 %v3077, 1.442695
    %v3084 = vpow.pop %v3083
    %v3085 = vmul.f32 %v3078, 1.442695
    %v3086 = vpow.pop %v3085
    %v3087 = vsel %vm932, %v3080, 0.0
    %3088 = vadd.xlane.f32.xlu0 %v3087
    %v3089 = vpop.xlane.xlu0 %3088
    %v3090 = vsel %vm932, %v3082, 0.0
    %3091 = vadd.xlane.f32.xlu0 %v3090
    %v3092 = vpop.xlane.xlu0 %3091
    %v3093 = vsel %vm932, %v3084, 0.0
    %3094 = vadd.xlane.f32.xlu0 %v3093
    %v3095 = vpop.xlane.xlu0 %3094
    %v3096 = vsel %vm932, %v3086, 0.0
    %3097 = vadd.xlane.f32.xlu0 %v3096
    %v3098 = vpop.xlane.xlu0 %3097
    %v3099 = vrcp.pop %v3089
    %v3100 = vrcp.pop %v3092
    %v3101 = vrcp.pop %v3095
    %v3102 = vrcp.pop %v3098
    %v3103 = vmul.f32 %v3080, %v3099
    %v3104 = vmul.f32 %v3082, %v3100
    %v3105 = vmul.f32 %v3084, %v3101
    %v3106 = vmul.f32 %v3086, %v3102
    %v3107 = vpack.c.bf16 %v3104, %v3103
    %v3108 = vpack.c.bf16 %v3106, %v3105
    %3111 = vrot.lane.b32.xlu0 %v2916, 112
    %v3112 = vpop.permute.xlu0 %3111
    %3113 = vrot.lane.b32.xlu0 %v2917, 112
    %v3114 = vpop.permute.xlu0 %3113
    %v3118 = vsel %vm932, %v3107, 0
    %v3121 = vsel %vm932, %v3108, 0
    %3123 = vmatpush.bf16.msra.mxu0 0
    %3124 = vmatpush.bf16.msra.mxu0 0
    %3125 = vmatpush.bf16.msra.mxu0 0
    %3126 = vmatpush.bf16.msra.mxu0 0
    %3127 = vmatpush.bf16.msra.mxu0 0
    %3128 = vmatpush.bf16.msra.mxu0 0
    %3129 = vmatpush.bf16.msra.mxu0 %v3114
    %3130 = vmatpush.bf16.msra.mxu0 %v3112
    %3131 = vmatmul.bf16.gmra.mxu0 %v3118
    %v3132 = vpop.f32.mrf.mxu0
    %v3133 = vadd.f32 0.0, %v3132
    %v3134 = vpop.f32.mrf.mxu0
    %v3135 = vadd.f32 0.0, %v3134
    %3136 = vmatmul.bf16.gmra.mxu0 %v3121
    %v3137 = vpop.f32.mrf.mxu0
    %v3138 = vadd.f32 0.0, %v3137
    %v3139 = vpop.f32.mrf.mxu0
    %v3140 = vadd.f32 0.0, %v3139
    %3141 = vdwg.mxu0
    %3142 = vrot.lane.b32.xlu0 %v2912, 96
    %v3143 = vpop.permute.xlu0 %3142
    %3144 = vrot.lane.b32.xlu0 %v2913, 96
    %v3145 = vpop.permute.xlu0 %3144
    %3146 = vrot.lane.b32.xlu0 %v2914, 96
    %v3147 = vpop.permute.xlu0 %3146
    %3148 = vrot.lane.b32.xlu0 %v2915, 96
    %v3149 = vpop.permute.xlu0 %3148
    %v3151 = vsel %vm900, %v3143, 0
    %v3154 = vsel %vm900, %v3145, 0
    %v3157 = vsel %vm900, %v3147, 0
    %v3160 = vsel %vm900, %v3149, 0
    %3162 = vmatpush.bf16.xpose.msra.mxu0 0
    %3163 = vmatpush.bf16.xpose.msra.mxu0 0
    %3164 = vmatpush.bf16.xpose.msra.mxu0 0
    %3165 = vmatpush.bf16.xpose.msra.mxu0 0
    %3166 = vmatpush.bf16.xpose.msra.mxu0 0
    %3167 = vmatpush.bf16.xpose.msra.mxu0 0
    %3168 = vmatpush.bf16.xpose.msra.mxu0 %v3160
    %3169 = vmatpush.bf16.xpose.msra.mxu0 %v3157
    %3170 = vmatmul.bf16.gmra.mxu0 %v3151
    %v3171 = vpop.f32.mrf.mxu0
    %v3172 = vadd.f32 %v899, %v3171
    %v3173 = vpop.f32.mrf.mxu0
    %v3174 = vadd.f32 %v899, %v3173
    %3175 = vmatmul.bf16.gmra.mxu0 %v3154
    %v3176 = vpop.f32.mrf.mxu0
    %v3177 = vadd.f32 %v899, %v3176
    %v3178 = vpop.f32.mrf.mxu0
    %v3179 = vadd.f32 %v899, %v3178
    %3180 = vdwg.mxu0
    %v3181 = vsel %vm932, %v3172, -inf
    %3182 = vmax.xlane.f32.xlu0 %v3181
    %v3183 = vpop.xlane.xlu0 %3182
    %v3184 = vsel %vm932, %v3174, -inf
    %3185 = vmax.xlane.f32.xlu0 %v3184
    %v3186 = vpop.xlane.xlu0 %3185
    %v3187 = vsel %vm932, %v3177, -inf
    %3188 = vmax.xlane.f32.xlu0 %v3187
    %v3189 = vpop.xlane.xlu0 %3188
    %v3190 = vsel %vm932, %v3179, -inf
    %3191 = vmax.xlane.f32.xlu0 %v3190
    %v3192 = vpop.xlane.xlu0 %3191
    %v3193 = vsub.f32 %v3172, %v3183
    %v3194 = vsub.f32 %v3174, %v3186
    %v3195 = vsub.f32 %v3177, %v3189
    %v3196 = vsub.f32 %v3179, %v3192
    %v3197 = vmul.f32 %v3193, 1.442695
    %v3198 = vpow.pop %v3197
    %v3199 = vmul.f32 %v3194, 1.442695
    %v3200 = vpow.pop %v3199
    %v3201 = vmul.f32 %v3195, 1.442695
    %v3202 = vpow.pop %v3201
    %v3203 = vmul.f32 %v3196, 1.442695
    %v3204 = vpow.pop %v3203
    %v3205 = vsel %vm932, %v3198, 0.0
    %3206 = vadd.xlane.f32.xlu0 %v3205
    %v3207 = vpop.xlane.xlu0 %3206
    %v3208 = vsel %vm932, %v3200, 0.0
    %3209 = vadd.xlane.f32.xlu0 %v3208
    %v3210 = vpop.xlane.xlu0 %3209
    %v3211 = vsel %vm932, %v3202, 0.0
    %3212 = vadd.xlane.f32.xlu0 %v3211
    %v3213 = vpop.xlane.xlu0 %3212
    %v3214 = vsel %vm932, %v3204, 0.0
    %3215 = vadd.xlane.f32.xlu0 %v3214
    %v3216 = vpop.xlane.xlu0 %3215
    %v3217 = vrcp.pop %v3207
    %v3218 = vrcp.pop %v3210
    %v3219 = vrcp.pop %v3213
    %v3220 = vrcp.pop %v3216
    %v3221 = vmul.f32 %v3198, %v3217
    %v3222 = vmul.f32 %v3200, %v3218
    %v3223 = vmul.f32 %v3202, %v3219
    %v3224 = vmul.f32 %v3204, %v3220
    %v3225 = vpack.c.bf16 %v3222, %v3221
    %v3226 = vpack.c.bf16 %v3224, %v3223
    %3227 = vrot.lane.b32.xlu0 %v2916, 96
    %v3228 = vpop.permute.xlu0 %3227
    %3229 = vrot.lane.b32.xlu0 %v2917, 96
    %v3230 = vpop.permute.xlu0 %3229
    %v3234 = vsel %vm932, %v3225, 0
    %v3237 = vsel %vm932, %v3226, 0
    %3239 = vmatpush.bf16.msra.mxu0 0
    %3240 = vmatpush.bf16.msra.mxu0 0
    %3241 = vmatpush.bf16.msra.mxu0 0
    %3242 = vmatpush.bf16.msra.mxu0 0
    %3243 = vmatpush.bf16.msra.mxu0 0
    %3244 = vmatpush.bf16.msra.mxu0 0
    %3245 = vmatpush.bf16.msra.mxu0 %v3230
    %3246 = vmatpush.bf16.msra.mxu0 %v3228
    %3247 = vmatmul.bf16.gmra.mxu0 %v3234
    %v3248 = vpop.f32.mrf.mxu0
    %v3249 = vadd.f32 0.0, %v3248
    %v3250 = vpop.f32.mrf.mxu0
    %v3251 = vadd.f32 0.0, %v3250
    %3252 = vmatmul.bf16.gmra.mxu0 %v3237
    %v3253 = vpop.f32.mrf.mxu0
    %v3254 = vadd.f32 0.0, %v3253
    %v3255 = vpop.f32.mrf.mxu0
    %v3256 = vadd.f32 0.0, %v3255
    %3257 = vdwg.mxu0
    %3258 = vrot.lane.b32.xlu0 %v2912, 80
    %v3259 = vpop.permute.xlu0 %3258
    %3260 = vrot.lane.b32.xlu0 %v2913, 80
    %v3261 = vpop.permute.xlu0 %3260
    %3262 = vrot.lane.b32.xlu0 %v2914, 80
    %v3263 = vpop.permute.xlu0 %3262
    %3264 = vrot.lane.b32.xlu0 %v2915, 80
    %v3265 = vpop.permute.xlu0 %3264
    %v3267 = vsel %vm900, %v3259, 0
    %v3270 = vsel %vm900, %v3261, 0
    %v3273 = vsel %vm900, %v3263, 0
    %v3276 = vsel %vm900, %v3265, 0
    %3278 = vmatpush.bf16.xpose.msra.mxu0 0
    %3279 = vmatpush.bf16.xpose.msra.mxu0 0
    %3280 = vmatpush.bf16.xpose.msra.mxu0 0
    %3281 = vmatpush.bf16.xpose.msra.mxu0 0
    %3282 = vmatpush.bf16.xpose.msra.mxu0 0
    %3283 = vmatpush.bf16.xpose.msra.mxu0 0
    %3284 = vmatpush.bf16.xpose.msra.mxu0 %v3276
    %3285 = vmatpush.bf16.xpose.msra.mxu0 %v3273
    %3286 = vmatmul.bf16.gmra.mxu0 %v3267
    %v3287 = vpop.f32.mrf.mxu0
    %v3288 = vadd.f32 %v899, %v3287
    %v3289 = vpop.f32.mrf.mxu0
    %v3290 = vadd.f32 %v899, %v3289
    %3291 = vmatmul.bf16.gmra.mxu0 %v3270
    %v3292 = vpop.f32.mrf.mxu0
    %v3293 = vadd.f32 %v899, %v3292
    %v3294 = vpop.f32.mrf.mxu0
    %v3295 = vadd.f32 %v899, %v3294
    %3296 = vdwg.mxu0
    %v3297 = vsel %vm932, %v3288, -inf
    %3298 = vmax.xlane.f32.xlu0 %v3297
    %v3299 = vpop.xlane.xlu0 %3298
    %v3300 = vsel %vm932, %v3290, -inf
    %3301 = vmax.xlane.f32.xlu0 %v3300
    %v3302 = vpop.xlane.xlu0 %3301
    %v3303 = vsel %vm932, %v3293, -inf
    %3304 = vmax.xlane.f32.xlu0 %v3303
    %v3305 = vpop.xlane.xlu0 %3304
    %v3306 = vsel %vm932, %v3295, -inf
    %3307 = vmax.xlane.f32.xlu0 %v3306
    %v3308 = vpop.xlane.xlu0 %3307
    %v3309 = vsub.f32 %v3288, %v3299
    %v3310 = vsub.f32 %v3290, %v3302
    %v3311 = vsub.f32 %v3293, %v3305
    %v3312 = vsub.f32 %v3295, %v3308
    %v3313 = vmul.f32 %v3309, 1.442695
    %v3314 = vpow.pop %v3313
    %v3315 = vmul.f32 %v3310, 1.442695
    %v3316 = vpow.pop %v3315
    %v3317 = vmul.f32 %v3311, 1.442695
    %v3318 = vpow.pop %v3317
    %v3319 = vmul.f32 %v3312, 1.442695
    %v3320 = vpow.pop %v3319
    %v3321 = vsel %vm932, %v3314, 0.0
    %3322 = vadd.xlane.f32.xlu0 %v3321
    %v3323 = vpop.xlane.xlu0 %3322
    %v3324 = vsel %vm932, %v3316, 0.0
    %3325 = vadd.xlane.f32.xlu0 %v3324
    %v3326 = vpop.xlane.xlu0 %3325
    %v3327 = vsel %vm932, %v3318, 0.0
    %3328 = vadd.xlane.f32.xlu0 %v3327
    %v3329 = vpop.xlane.xlu0 %3328
    %v3330 = vsel %vm932, %v3320, 0.0
    %3331 = vadd.xlane.f32.xlu0 %v3330
    %v3332 = vpop.xlane.xlu0 %3331
    %v3333 = vrcp.pop %v3323
    %v3334 = vrcp.pop %v3326
    %v3335 = vrcp.pop %v3329
    %v3336 = vrcp.pop %v3332
    %v3337 = vmul.f32 %v3314, %v3333
    %v3338 = vmul.f32 %v3316, %v3334
    %v3339 = vmul.f32 %v3318, %v3335
    %v3340 = vmul.f32 %v3320, %v3336
    %v3341 = vpack.c.bf16 %v3338, %v3337
    %v3342 = vpack.c.bf16 %v3340, %v3339
    %3343 = vrot.lane.b32.xlu0 %v2916, 80
    %v3344 = vpop.permute.xlu0 %3343
    %3345 = vrot.lane.b32.xlu0 %v2917, 80
    %v3346 = vpop.permute.xlu0 %3345
    %v3350 = vsel %vm932, %v3341, 0
    %v3353 = vsel %vm932, %v3342, 0
    %3355 = vmatpush.bf16.msra.mxu0 0
    %3356 = vmatpush.bf16.msra.mxu0 0
    %3357 = vmatpush.bf16.msra.mxu0 0
    %3358 = vmatpush.bf16.msra.mxu0 0
    %3359 = vmatpush.bf16.msra.mxu0 0
    %3360 = vmatpush.bf16.msra.mxu0 0
    %3361 = vmatpush.bf16.msra.mxu0 %v3346
    %3362 = vmatpush.bf16.msra.mxu0 %v3344
    %3363 = vmatmul.bf16.gmra.mxu0 %v3350
    %v3364 = vpop.f32.mrf.mxu0
    %v3365 = vadd.f32 0.0, %v3364
    %v3366 = vpop.f32.mrf.mxu0
    %v3367 = vadd.f32 0.0, %v3366
    %3368 = vmatmul.bf16.gmra.mxu0 %v3353
    %v3369 = vpop.f32.mrf.mxu0
    %v3370 = vadd.f32 0.0, %v3369
    %v3371 = vpop.f32.mrf.mxu0
    %v3372 = vadd.f32 0.0, %v3371
    %3373 = vdwg.mxu0
    %3378 = vrot.lane.b32.xlu0 %v3133, 16
    %v3379 = vpop.permute.xlu0 %3378
    %3380 = vrot.lane.b32.xlu0 %v3135, 16
    %v3381 = vpop.permute.xlu0 %3380
    %3382 = vrot.lane.b32.xlu0 %v3138, 16
    %v3383 = vpop.permute.xlu0 %3382
    %3384 = vrot.lane.b32.xlu0 %v3140, 16
    %v3385 = vpop.permute.xlu0 %3384
    %3394 = vrot.lane.b32.xlu0 %v3249, 32
    %v3395 = vpop.permute.xlu0 %3394
    %3396 = vrot.lane.b32.xlu0 %v3251, 32
    %v3397 = vpop.permute.xlu0 %3396
    %3398 = vrot.lane.b32.xlu0 %v3254, 32
    %v3399 = vpop.permute.xlu0 %3398
    %3400 = vrot.lane.b32.xlu0 %v3256, 32
    %v3401 = vpop.permute.xlu0 %3400
    %3410 = vrot.lane.b32.xlu0 %v3365, 48
    %v3411 = vpop.permute.xlu0 %3410
    %3412 = vrot.lane.b32.xlu0 %v3367, 48
    %v3413 = vpop.permute.xlu0 %3412
    %3414 = vrot.lane.b32.xlu0 %v3370, 48
    %v3415 = vpop.permute.xlu0 %3414
    %3416 = vrot.lane.b32.xlu0 %v3372, 48
    %v3417 = vpop.permute.xlu0 %3416
    %v3422 = vsel %vm900, %v3011, %v3379
    %v3423 = vsel %vm900, %v3013, %v3381
    %v3424 = vsel %vm900, %v3016, %v3383
    %v3425 = vsel %vm900, %v3018, %v3385
    %v3426 = vsel %vm932, %v3422, %v3395
    %v3427 = vsel %vm932, %v3423, %v3397
    %v3428 = vsel %vm932, %v3424, %v3399
    %v3429 = vsel %vm932, %v3425, %v3401
    %v3430 = vsel %vm1414, %v3426, %v3411
    %v3431 = vsel %vm1414, %v3427, %v3413
    %v3432 = vsel %vm1414, %v3428, %v3415
    %v3433 = vsel %vm1414, %v3429, %v3417
    %v3434 = vpack.c.bf16 %v2797, %v2796
    %v3435 = vpack.c.bf16 %v2799, %v2798
    %v3436 = vpack.c.bf16 %v2849, %v2847
    %v3437 = vpack.c.bf16 %v2854, %v2852
    %v3438 = vpack.c.bf16 %v2905, %v2903
    %v3439 = vpack.c.bf16 %v2910, %v2908
    %v3441 = vsel %vm900, %v3434, 0
    %v3444 = vsel %vm900, %v3435, 0
    %v3447 = vsel %vm900, %v3436, 0
    %v3450 = vsel %vm900, %v3437, 0
    %3452 = vmatpush.bf16.xpose.msra.mxu0 0
    %3453 = vmatpush.bf16.xpose.msra.mxu0 0
    %3454 = vmatpush.bf16.xpose.msra.mxu0 0
    %3455 = vmatpush.bf16.xpose.msra.mxu0 0
    %3456 = vmatpush.bf16.xpose.msra.mxu0 0
    %3457 = vmatpush.bf16.xpose.msra.mxu0 0
    %3458 = vmatpush.bf16.xpose.msra.mxu0 %v3450
    %3459 = vmatpush.bf16.xpose.msra.mxu0 %v3447
    %3460 = vmatmul.bf16.gmra.mxu0 %v3441
    %v3461 = vpop.f32.mrf.mxu0
    %v3462 = vadd.f32 %v1425, %v3461
    %v3463 = vpop.f32.mrf.mxu0
    %v3464 = vadd.f32 %v1425, %v3463
    %3465 = vmatmul.bf16.gmra.mxu0 %v3444
    %v3466 = vpop.f32.mrf.mxu0
    %v3467 = vadd.f32 %v1425, %v3466
    %v3468 = vpop.f32.mrf.mxu0
    %v3469 = vadd.f32 %v1425, %v3468
    %3470 = vdwg.mxu0
    %v3471 = vsel %vm932, %v3462, -inf
    %3472 = vmax.xlane.f32.xlu0 %v3471
    %v3473 = vpop.xlane.xlu0 %3472
    %v3474 = vsel %vm932, %v3464, -inf
    %3475 = vmax.xlane.f32.xlu0 %v3474
    %v3476 = vpop.xlane.xlu0 %3475
    %v3477 = vsel %vm932, %v3467, -inf
    %3478 = vmax.xlane.f32.xlu0 %v3477
    %v3479 = vpop.xlane.xlu0 %3478
    %v3480 = vsel %vm932, %v3469, -inf
    %3481 = vmax.xlane.f32.xlu0 %v3480
    %v3482 = vpop.xlane.xlu0 %3481
    %v3483 = vsub.f32 %v3462, %v3473
    %v3484 = vsub.f32 %v3464, %v3476
    %v3485 = vsub.f32 %v3467, %v3479
    %v3486 = vsub.f32 %v3469, %v3482
    %v3487 = vmul.f32 %v3483, 1.442695
    %v3488 = vpow.pop %v3487
    %v3489 = vmul.f32 %v3484, 1.442695
    %v3490 = vpow.pop %v3489
    %v3491 = vmul.f32 %v3485, 1.442695
    %v3492 = vpow.pop %v3491
    %v3493 = vmul.f32 %v3486, 1.442695
    %v3494 = vpow.pop %v3493
    %v3495 = vsel %vm932, %v3488, 0.0
    %3496 = vadd.xlane.f32.xlu0 %v3495
    %v3497 = vpop.xlane.xlu0 %3496
    %v3498 = vsel %vm932, %v3490, 0.0
    %3499 = vadd.xlane.f32.xlu0 %v3498
    %v3500 = vpop.xlane.xlu0 %3499
    %v3501 = vsel %vm932, %v3492, 0.0
    %3502 = vadd.xlane.f32.xlu0 %v3501
    %v3503 = vpop.xlane.xlu0 %3502
    %v3504 = vsel %vm932, %v3494, 0.0
    %3505 = vadd.xlane.f32.xlu0 %v3504
    %v3506 = vpop.xlane.xlu0 %3505
    %v3507 = vrcp.pop %v3497
    %v3508 = vrcp.pop %v3500
    %v3509 = vrcp.pop %v3503
    %v3510 = vrcp.pop %v3506
    %v3511 = vmul.f32 %v3488, %v3507
    %v3512 = vmul.f32 %v3490, %v3508
    %v3513 = vmul.f32 %v3492, %v3509
    %v3514 = vmul.f32 %v3494, %v3510
    %v3515 = vpack.c.bf16 %v3512, %v3511
    %v3516 = vpack.c.bf16 %v3514, %v3513
    %v3518 = vsel %vm932, %v3515, 0
    %v3521 = vsel %vm932, %v3516, 0
    %3523 = vmatpush.bf16.msra.mxu0 0
    %3524 = vmatpush.bf16.msra.mxu0 0
    %3525 = vmatpush.bf16.msra.mxu0 0
    %3526 = vmatpush.bf16.msra.mxu0 0
    %3527 = vmatpush.bf16.msra.mxu0 0
    %3528 = vmatpush.bf16.msra.mxu0 0
    %3529 = vmatpush.bf16.msra.mxu0 %v3439
    %3530 = vmatpush.bf16.msra.mxu0 %v3438
    %3531 = vmatmul.bf16.gmra.mxu0 %v3518
    %v3532 = vpop.f32.mrf.mxu0
    %v3533 = vadd.f32 0.0, %v3532
    %v3534 = vpop.f32.mrf.mxu0
    %v3535 = vadd.f32 0.0, %v3534
    %3536 = vmatmul.bf16.gmra.mxu0 %v3521
    %v3537 = vpop.f32.mrf.mxu0
    %v3538 = vadd.f32 0.0, %v3537
    %v3539 = vpop.f32.mrf.mxu0
    %v3540 = vadd.f32 0.0, %v3539
    %3541 = vdwg.mxu0
    %3544 = vrot.lane.b32.xlu0 %v3434, 112
    %v3545 = vpop.permute.xlu0 %3544
    %3546 = vrot.lane.b32.xlu0 %v3435, 112
    %v3547 = vpop.permute.xlu0 %3546
    %3550 = vrot.lane.b32.xlu0 %v3436, 112
    %v3551 = vpop.permute.xlu0 %3550
    %3552 = vrot.lane.b32.xlu0 %v3437, 112
    %v3553 = vpop.permute.xlu0 %3552
    %v3555 = vsel %vm900, %v3545, 0
    %v3558 = vsel %vm900, %v3547, 0
    %v3561 = vsel %vm900, %v3551, 0
    %v3564 = vsel %vm900, %v3553, 0
    %3566 = vmatpush.bf16.xpose.msra.mxu0 0
    %3567 = vmatpush.bf16.xpose.msra.mxu0 0
    %3568 = vmatpush.bf16.xpose.msra.mxu0 0
    %3569 = vmatpush.bf16.xpose.msra.mxu0 0
    %3570 = vmatpush.bf16.xpose.msra.mxu0 0
    %3571 = vmatpush.bf16.xpose.msra.mxu0 0
    %3572 = vmatpush.bf16.xpose.msra.mxu0 %v3564
    %3573 = vmatpush.bf16.xpose.msra.mxu0 %v3561
    %3574 = vmatmul.bf16.gmra.mxu0 %v3555
    %v3575 = vpop.f32.mrf.mxu0
    %v3576 = vadd.f32 %v1425, %v3575
    %v3577 = vpop.f32.mrf.mxu0
    %v3578 = vadd.f32 %v1425, %v3577
    %3579 = vmatmul.bf16.gmra.mxu0 %v3558
    %v3580 = vpop.f32.mrf.mxu0
    %v3581 = vadd.f32 %v1425, %v3580
    %v3582 = vpop.f32.mrf.mxu0
    %v3583 = vadd.f32 %v1425, %v3582
    %3584 = vdwg.mxu0
    %v3585 = vsel %vm932, %v3576, -inf
    %3586 = vmax.xlane.f32.xlu0 %v3585
    %v3587 = vpop.xlane.xlu0 %3586
    %v3588 = vsel %vm932, %v3578, -inf
    %3589 = vmax.xlane.f32.xlu0 %v3588
    %v3590 = vpop.xlane.xlu0 %3589
    %v3591 = vsel %vm932, %v3581, -inf
    %3592 = vmax.xlane.f32.xlu0 %v3591
    %v3593 = vpop.xlane.xlu0 %3592
    %v3594 = vsel %vm932, %v3583, -inf
    %3595 = vmax.xlane.f32.xlu0 %v3594
    %v3596 = vpop.xlane.xlu0 %3595
    %v3597 = vsub.f32 %v3576, %v3587
    %v3598 = vsub.f32 %v3578, %v3590
    %v3599 = vsub.f32 %v3581, %v3593
    %v3600 = vsub.f32 %v3583, %v3596
    %v3601 = vmul.f32 %v3597, 1.442695
    %v3602 = vpow.pop %v3601
    %v3603 = vmul.f32 %v3598, 1.442695
    %v3604 = vpow.pop %v3603
    %v3605 = vmul.f32 %v3599, 1.442695
    %v3606 = vpow.pop %v3605
    %v3607 = vmul.f32 %v3600, 1.442695
    %v3608 = vpow.pop %v3607
    %v3609 = vsel %vm932, %v3602, 0.0
    %3610 = vadd.xlane.f32.xlu0 %v3609
    %v3611 = vpop.xlane.xlu0 %3610
    %v3612 = vsel %vm932, %v3604, 0.0
    %3613 = vadd.xlane.f32.xlu0 %v3612
    %v3614 = vpop.xlane.xlu0 %3613
    %v3615 = vsel %vm932, %v3606, 0.0
    %3616 = vadd.xlane.f32.xlu0 %v3615
    %v3617 = vpop.xlane.xlu0 %3616
    %v3618 = vsel %vm932, %v3608, 0.0
    %3619 = vadd.xlane.f32.xlu0 %v3618
    %v3620 = vpop.xlane.xlu0 %3619
    %v3621 = vrcp.pop %v3611
    %v3622 = vrcp.pop %v3614
    %v3623 = vrcp.pop %v3617
    %v3624 = vrcp.pop %v3620
    %v3625 = vmul.f32 %v3602, %v3621
    %v3626 = vmul.f32 %v3604, %v3622
    %v3627 = vmul.f32 %v3606, %v3623
    %v3628 = vmul.f32 %v3608, %v3624
    %v3629 = vpack.c.bf16 %v3626, %v3625
    %v3630 = vpack.c.bf16 %v3628, %v3627
    %3633 = vrot.lane.b32.xlu0 %v3438, 112
    %v3634 = vpop.permute.xlu0 %3633
    %3635 = vrot.lane.b32.xlu0 %v3439, 112
    %v3636 = vpop.permute.xlu0 %3635
    %v3640 = vsel %vm932, %v3629, 0
    %v3643 = vsel %vm932, %v3630, 0
    %3645 = vmatpush.bf16.msra.mxu0 0
    %3646 = vmatpush.bf16.msra.mxu0 0
    %3647 = vmatpush.bf16.msra.mxu0 0
    %3648 = vmatpush.bf16.msra.mxu0 0
    %3649 = vmatpush.bf16.msra.mxu0 0
    %3650 = vmatpush.bf16.msra.mxu0 0
    %3651 = vmatpush.bf16.msra.mxu0 %v3636
    %3652 = vmatpush.bf16.msra.mxu0 %v3634
    %3653 = vmatmul.bf16.gmra.mxu0 %v3640
    %v3654 = vpop.f32.mrf.mxu0
    %v3655 = vadd.f32 0.0, %v3654
    %v3656 = vpop.f32.mrf.mxu0
    %v3657 = vadd.f32 0.0, %v3656
    %3658 = vmatmul.bf16.gmra.mxu0 %v3643
    %v3659 = vpop.f32.mrf.mxu0
    %v3660 = vadd.f32 0.0, %v3659
    %v3661 = vpop.f32.mrf.mxu0
    %v3662 = vadd.f32 0.0, %v3661
    %3663 = vdwg.mxu0
    %3664 = vrot.lane.b32.xlu0 %v3434, 96
    %v3665 = vpop.permute.xlu0 %3664
    %3666 = vrot.lane.b32.xlu0 %v3435, 96
    %v3667 = vpop.permute.xlu0 %3666
    %3668 = vrot.lane.b32.xlu0 %v3436, 96
    %v3669 = vpop.permute.xlu0 %3668
    %3670 = vrot.lane.b32.xlu0 %v3437, 96
    %v3671 = vpop.permute.xlu0 %3670
    %v3673 = vsel %vm900, %v3665, 0
    %v3676 = vsel %vm900, %v3667, 0
    %v3679 = vsel %vm900, %v3669, 0
    %v3682 = vsel %vm900, %v3671, 0
    %3684 = vmatpush.bf16.xpose.msra.mxu0 0
    %3685 = vmatpush.bf16.xpose.msra.mxu0 0
    %3686 = vmatpush.bf16.xpose.msra.mxu0 0
    %3687 = vmatpush.bf16.xpose.msra.mxu0 0
    %3688 = vmatpush.bf16.xpose.msra.mxu0 0
    %3689 = vmatpush.bf16.xpose.msra.mxu0 0
    %3690 = vmatpush.bf16.xpose.msra.mxu0 %v3682
    %3691 = vmatpush.bf16.xpose.msra.mxu0 %v3679
    %3692 = vmatmul.bf16.gmra.mxu0 %v3673
    %v3693 = vpop.f32.mrf.mxu0
    %v3694 = vadd.f32 %v1425, %v3693
    %v3695 = vpop.f32.mrf.mxu0
    %v3696 = vadd.f32 %v1425, %v3695
    %3697 = vmatmul.bf16.gmra.mxu0 %v3676
    %v3698 = vpop.f32.mrf.mxu0
    %v3699 = vadd.f32 %v1425, %v3698
    %v3700 = vpop.f32.mrf.mxu0
    %v3701 = vadd.f32 %v1425, %v3700
    %3702 = vdwg.mxu0
    %v3703 = vsel %vm932, %v3694, -inf
    %3704 = vmax.xlane.f32.xlu0 %v3703
    %v3705 = vpop.xlane.xlu0 %3704
    %v3706 = vsel %vm932, %v3696, -inf
    %3707 = vmax.xlane.f32.xlu0 %v3706
    %v3708 = vpop.xlane.xlu0 %3707
    %v3709 = vsel %vm932, %v3699, -inf
    %3710 = vmax.xlane.f32.xlu0 %v3709
    %v3711 = vpop.xlane.xlu0 %3710
    %v3712 = vsel %vm932, %v3701, -inf
    %3713 = vmax.xlane.f32.xlu0 %v3712
    %v3714 = vpop.xlane.xlu0 %3713
    %v3715 = vsub.f32 %v3694, %v3705
    %v3716 = vsub.f32 %v3696, %v3708
    %v3717 = vsub.f32 %v3699, %v3711
    %v3718 = vsub.f32 %v3701, %v3714
    %v3719 = vmul.f32 %v3715, 1.442695
    %v3720 = vpow.pop %v3719
    %v3721 = vmul.f32 %v3716, 1.442695
    %v3722 = vpow.pop %v3721
    %v3723 = vmul.f32 %v3717, 1.442695
    %v3724 = vpow.pop %v3723
    %v3725 = vmul.f32 %v3718, 1.442695
    %v3726 = vpow.pop %v3725
    %v3727 = vsel %vm932, %v3720, 0.0
    %3728 = vadd.xlane.f32.xlu0 %v3727
    %v3729 = vpop.xlane.xlu0 %3728
    %v3730 = vsel %vm932, %v3722, 0.0
    %3731 = vadd.xlane.f32.xlu0 %v3730
    %v3732 = vpop.xlane.xlu0 %3731
    %v3733 = vsel %vm932, %v3724, 0.0
    %3734 = vadd.xlane.f32.xlu0 %v3733
    %v3735 = vpop.xlane.xlu0 %3734
    %v3736 = vsel %vm932, %v3726, 0.0
    %3737 = vadd.xlane.f32.xlu0 %v3736
    %v3738 = vpop.xlane.xlu0 %3737
    %v3739 = vrcp.pop %v3729
    %v3740 = vrcp.pop %v3732
    %v3741 = vrcp.pop %v3735
    %v3742 = vrcp.pop %v3738
    %v3743 = vmul.f32 %v3720, %v3739
    %v3744 = vmul.f32 %v3722, %v3740
    %v3745 = vmul.f32 %v3724, %v3741
    %v3746 = vmul.f32 %v3726, %v3742
    %v3747 = vpack.c.bf16 %v3744, %v3743
    %v3748 = vpack.c.bf16 %v3746, %v3745
    %3749 = vrot.lane.b32.xlu0 %v3438, 96
    %v3750 = vpop.permute.xlu0 %3749
    %3751 = vrot.lane.b32.xlu0 %v3439, 96
    %v3752 = vpop.permute.xlu0 %3751
    %v3756 = vsel %vm932, %v3747, 0
    %v3759 = vsel %vm932, %v3748, 0
    %3761 = vmatpush.bf16.msra.mxu0 0
    %3762 = vmatpush.bf16.msra.mxu0 0
    %3763 = vmatpush.bf16.msra.mxu0 0
    %3764 = vmatpush.bf16.msra.mxu0 0
    %3765 = vmatpush.bf16.msra.mxu0 0
    %3766 = vmatpush.bf16.msra.mxu0 0
    %3767 = vmatpush.bf16.msra.mxu0 %v3752
    %3768 = vmatpush.bf16.msra.mxu0 %v3750
    %3769 = vmatmul.bf16.gmra.mxu0 %v3756
    %v3770 = vpop.f32.mrf.mxu0
    %v3771 = vadd.f32 0.0, %v3770
    %v3772 = vpop.f32.mrf.mxu0
    %v3773 = vadd.f32 0.0, %v3772
    %3774 = vmatmul.bf16.gmra.mxu0 %v3759
    %v3775 = vpop.f32.mrf.mxu0
    %v3776 = vadd.f32 0.0, %v3775
    %v3777 = vpop.f32.mrf.mxu0
    %v3778 = vadd.f32 0.0, %v3777
    %3779 = vdwg.mxu0
    %3780 = vrot.lane.b32.xlu0 %v3434, 80
    %v3781 = vpop.permute.xlu0 %3780
    %3782 = vrot.lane.b32.xlu0 %v3435, 80
    %v3783 = vpop.permute.xlu0 %3782
    %3784 = vrot.lane.b32.xlu0 %v3436, 80
    %v3785 = vpop.permute.xlu0 %3784
    %3786 = vrot.lane.b32.xlu0 %v3437, 80
    %v3787 = vpop.permute.xlu0 %3786
    %v3789 = vsel %vm900, %v3781, 0
    %v3792 = vsel %vm900, %v3783, 0
    %v3795 = vsel %vm900, %v3785, 0
    %v3798 = vsel %vm900, %v3787, 0
    %3800 = vmatpush.bf16.xpose.msra.mxu0 0
    %3801 = vmatpush.bf16.xpose.msra.mxu0 0
    %3802 = vmatpush.bf16.xpose.msra.mxu0 0
    %3803 = vmatpush.bf16.xpose.msra.mxu0 0
    %3804 = vmatpush.bf16.xpose.msra.mxu0 0
    %3805 = vmatpush.bf16.xpose.msra.mxu0 0
    %3806 = vmatpush.bf16.xpose.msra.mxu0 %v3798
    %3807 = vmatpush.bf16.xpose.msra.mxu0 %v3795
    %3808 = vmatmul.bf16.gmra.mxu0 %v3789
    %v3809 = vpop.f32.mrf.mxu0
    %v3810 = vadd.f32 %v1425, %v3809
    %v3811 = vpop.f32.mrf.mxu0
    %v3812 = vadd.f32 %v1425, %v3811
    %3813 = vmatmul.bf16.gmra.mxu0 %v3792
    %v3814 = vpop.f32.mrf.mxu0
    %v3815 = vadd.f32 %v1425, %v3814
    %v3816 = vpop.f32.mrf.mxu0
    %v3817 = vadd.f32 %v1425, %v3816
    %3818 = vdwg.mxu0
    %v3819 = vsel %vm932, %v3810, -inf
    %3820 = vmax.xlane.f32.xlu0 %v3819
    %v3821 = vpop.xlane.xlu0 %3820
    %v3822 = vsel %vm932, %v3812, -inf
    %3823 = vmax.xlane.f32.xlu0 %v3822
    %v3824 = vpop.xlane.xlu0 %3823
    %v3825 = vsel %vm932, %v3815, -inf
    %3826 = vmax.xlane.f32.xlu0 %v3825
    %v3827 = vpop.xlane.xlu0 %3826
    %v3828 = vsel %vm932, %v3817, -inf
    %3829 = vmax.xlane.f32.xlu0 %v3828
    %v3830 = vpop.xlane.xlu0 %3829
    %v3831 = vsub.f32 %v3810, %v3821
    %v3832 = vsub.f32 %v3812, %v3824
    %v3833 = vsub.f32 %v3815, %v3827
    %v3834 = vsub.f32 %v3817, %v3830
    %v3835 = vmul.f32 %v3831, 1.442695
    %v3836 = vpow.pop %v3835
    %v3837 = vmul.f32 %v3832, 1.442695
    %v3838 = vpow.pop %v3837
    %v3839 = vmul.f32 %v3833, 1.442695
    %v3840 = vpow.pop %v3839
    %v3841 = vmul.f32 %v3834, 1.442695
    %v3842 = vpow.pop %v3841
    %v3843 = vsel %vm932, %v3836, 0.0
    %3844 = vadd.xlane.f32.xlu0 %v3843
    %v3845 = vpop.xlane.xlu0 %3844
    %v3846 = vsel %vm932, %v3838, 0.0
    %3847 = vadd.xlane.f32.xlu0 %v3846
    %v3848 = vpop.xlane.xlu0 %3847
    %v3849 = vsel %vm932, %v3840, 0.0
    %3850 = vadd.xlane.f32.xlu0 %v3849
    %v3851 = vpop.xlane.xlu0 %3850
    %v3852 = vsel %vm932, %v3842, 0.0
    %3853 = vadd.xlane.f32.xlu0 %v3852
    %v3854 = vpop.xlane.xlu0 %3853
    %v3855 = vrcp.pop %v3845
    %v3856 = vrcp.pop %v3848
    %v3857 = vrcp.pop %v3851
    %v3858 = vrcp.pop %v3854
    %v3859 = vmul.f32 %v3836, %v3855
    %v3860 = vmul.f32 %v3838, %v3856
    %v3861 = vmul.f32 %v3840, %v3857
    %v3862 = vmul.f32 %v3842, %v3858
    %v3863 = vpack.c.bf16 %v3860, %v3859
    %v3864 = vpack.c.bf16 %v3862, %v3861
    %3865 = vrot.lane.b32.xlu0 %v3438, 80
    %v3866 = vpop.permute.xlu0 %3865
    %3867 = vrot.lane.b32.xlu0 %v3439, 80
    %v3868 = vpop.permute.xlu0 %3867
    %v3872 = vsel %vm932, %v3863, 0
    %v3875 = vsel %vm932, %v3864, 0
    %3877 = vmatpush.bf16.msra.mxu0 0
    %3878 = vmatpush.bf16.msra.mxu0 0
    %3879 = vmatpush.bf16.msra.mxu0 0
    %3880 = vmatpush.bf16.msra.mxu0 0
    %3881 = vmatpush.bf16.msra.mxu0 0
    %3882 = vmatpush.bf16.msra.mxu0 0
    %3883 = vmatpush.bf16.msra.mxu0 %v3868
    %3884 = vmatpush.bf16.msra.mxu0 %v3866
    %3885 = vmatmul.bf16.gmra.mxu0 %v3872
    %v3886 = vpop.f32.mrf.mxu0
    %v3887 = vadd.f32 0.0, %v3886
    %v3888 = vpop.f32.mrf.mxu0
    %v3889 = vadd.f32 0.0, %v3888
    %3890 = vmatmul.bf16.gmra.mxu0 %v3875
    %v3891 = vpop.f32.mrf.mxu0
    %v3892 = vadd.f32 0.0, %v3891
    %v3893 = vpop.f32.mrf.mxu0
    %v3894 = vadd.f32 0.0, %v3893
    %3895 = vdwg.mxu0
    %3900 = vrot.lane.b32.xlu0 %v3655, 16
    %v3901 = vpop.permute.xlu0 %3900
    %3902 = vrot.lane.b32.xlu0 %v3657, 16
    %v3903 = vpop.permute.xlu0 %3902
    %3904 = vrot.lane.b32.xlu0 %v3660, 16
    %v3905 = vpop.permute.xlu0 %3904
    %3906 = vrot.lane.b32.xlu0 %v3662, 16
    %v3907 = vpop.permute.xlu0 %3906
    %3916 = vrot.lane.b32.xlu0 %v3771, 32
    %v3917 = vpop.permute.xlu0 %3916
    %3918 = vrot.lane.b32.xlu0 %v3773, 32
    %v3919 = vpop.permute.xlu0 %3918
    %3920 = vrot.lane.b32.xlu0 %v3776, 32
    %v3921 = vpop.permute.xlu0 %3920
    %3922 = vrot.lane.b32.xlu0 %v3778, 32
    %v3923 = vpop.permute.xlu0 %3922
    %3932 = vrot.lane.b32.xlu0 %v3887, 48
    %v3933 = vpop.permute.xlu0 %3932
    %3934 = vrot.lane.b32.xlu0 %v3889, 48
    %v3935 = vpop.permute.xlu0 %3934
    %3936 = vrot.lane.b32.xlu0 %v3892, 48
    %v3937 = vpop.permute.xlu0 %3936
    %3938 = vrot.lane.b32.xlu0 %v3894, 48
    %v3939 = vpop.permute.xlu0 %3938
    %v3944 = vsel %vm900, %v3533, %v3901
    %v3945 = vsel %vm900, %v3535, %v3903
    %v3946 = vsel %vm900, %v3538, %v3905
    %v3947 = vsel %vm900, %v3540, %v3907
    %v3948 = vsel %vm932, %v3944, %v3917
    %v3949 = vsel %vm932, %v3945, %v3919
    %v3950 = vsel %vm932, %v3946, %v3921
    %v3951 = vsel %vm932, %v3947, %v3923
    %v3952 = vsel %vm1414, %v3948, %v3933
    %v3953 = vsel %vm1414, %v3949, %v3935
    %v3954 = vsel %vm1414, %v3950, %v3937
    %v3955 = vsel %vm1414, %v3951, %v3939
    %v3956 = vpack.c.bf16 %v3431, %v3430
    %v3957 = vpack.c.bf16 %v3433, %v3432
    %v3958 = vpack.c.bf16 %v3953, %v3952
    %v3959 = vpack.c.bf16 %v3955, %v3954
    %v3961 = vperm.slane %v2689, 0
    %v3971 = vunpack.c.l.b16 %v2681
    %v3972 = vunpack.c.l.b16 %v2682
    %v3973 = vunpack.c.l.b16 %v2683
    %v3974 = vunpack.c.l.b16 %v2684
    %v3975 = vunpack.c.l.b16 %v2685
    %v3976 = vunpack.c.l.b16 %v2686
    %v3977 = vunpack.c.l.b16 %v2687
    %v3978 = vunpack.c.l.b16 %v2688
    %v3979 = vpack.c.b16 %v3972, %v3971
    %v3980 = vpack.c.b16 %v3974, %v3973
    %v3981 = vpack.c.b16 %v3976, %v3975
    %v3982 = vpack.c.b16 %v3978, %v3977
    %v3988 = vsel %vm425, %v3956, 0
    %v3991 = vsel %vm425, %v3957, 0
    %v3994 = vsel %vm425, %v3958, 0
    %v3997 = vsel %vm425, %v3959, 0
    %3999 = vmatpush.bf16.msra.mxu0 0
    %4000 = vmatpush.bf16.msra.mxu0 0
    %4001 = vmatpush.bf16.msra.mxu0 0
    %4002 = vmatpush.bf16.msra.mxu0 0
    %4003 = vmatpush.bf16.msra.mxu0 %v3982
    %4004 = vmatpush.bf16.msra.mxu0 %v3981
    %4005 = vmatpush.bf16.msra.mxu0 %v3980
    %4006 = vmatpush.bf16.msra.mxu0 %v3979
    %4007 = vmatmul.bf16.gmra.mxu0 %v3988
    %v4008 = vpop.f32.mrf.mxu0
    %v4009 = vadd.f32 %v3961, %v4008
    %v4010 = vpop.f32.mrf.mxu0
    %v4011 = vadd.f32 %v3961, %v4010
    %4012 = vmatmul.bf16.gmra.mxu0 %v3991
    %v4013 = vpop.f32.mrf.mxu0
    %v4014 = vadd.f32 %v3961, %v4013
    %v4015 = vpop.f32.mrf.mxu0
    %v4016 = vadd.f32 %v3961, %v4015
    %4017 = vmatmul.bf16.gmra.mxu0 %v3994
    %v4018 = vpop.f32.mrf.mxu0
    %v4019 = vadd.f32 %v3961, %v4018
    %v4020 = vpop.f32.mrf.mxu0
    %v4021 = vadd.f32 %v3961, %v4020
    %4022 = vmatmul.bf16.gmra.mxu0 %v3997
    %v4023 = vpop.f32.mrf.mxu0
    %v4024 = vadd.f32 %v3961, %v4023
    %v4025 = vpop.f32.mrf.mxu0
    %v4026 = vadd.f32 %v3961, %v4025
    %4027 = vdwg.mxu0
    %v4028 = vadd.f32 %v2646, %v4009
    %v4029 = vadd.f32 %v2647, %v4011
    %v4030 = vadd.f32 %v2648, %v4014
    %v4031 = vadd.f32 %v2649, %v4016
    %v4032 = vadd.f32 %v2650, %v4019
    %v4033 = vadd.f32 %v2651, %v4021
    %v4034 = vadd.f32 %v2652, %v4024
    %v4035 = vadd.f32 %v2653, %v4026
    %v4036 = vsel %vm425, %v4028, 0.0
    %4037 = vadd.xlane.f32.xlu0 %v4036
    %v4038 = vpop.xlane.xlu0 %4037
    %v4039 = vsel %vm425, %v4029, 0.0
    %4040 = vadd.xlane.f32.xlu0 %v4039
    %v4041 = vpop.xlane.xlu0 %4040
    %v4042 = vsel %vm425, %v4030, 0.0
    %4043 = vadd.xlane.f32.xlu0 %v4042
    %v4044 = vpop.xlane.xlu0 %4043
    %v4045 = vsel %vm425, %v4031, 0.0
    %4046 = vadd.xlane.f32.xlu0 %v4045
    %v4047 = vpop.xlane.xlu0 %4046
    %v4048 = vsel %vm425, %v4032, 0.0
    %4049 = vadd.xlane.f32.xlu0 %v4048
    %v4050 = vpop.xlane.xlu0 %4049
    %v4051 = vsel %vm425, %v4033, 0.0
    %4052 = vadd.xlane.f32.xlu0 %v4051
    %v4053 = vpop.xlane.xlu0 %4052
    %v4054 = vsel %vm425, %v4034, 0.0
    %4055 = vadd.xlane.f32.xlu0 %v4054
    %v4056 = vpop.xlane.xlu0 %4055
    %v4057 = vsel %vm425, %v4035, 0.0
    %4058 = vadd.xlane.f32.xlu0 %v4057
    %v4059 = vpop.xlane.xlu0 %4058
    %v4060 = vmul.f32 %v4038, %v456
    %v4061 = vmul.f32 %v4041, %v456
    %v4062 = vmul.f32 %v4044, %v456
    %v4063 = vmul.f32 %v4047, %v456
    %v4064 = vmul.f32 %v4050, %v456
    %v4065 = vmul.f32 %v4053, %v456
    %v4066 = vmul.f32 %v4056, %v456
    %v4067 = vmul.f32 %v4059, %v456
    %v4068 = vsub.f32 %v4028, %v4060
    %v4069 = vsub.f32 %v4029, %v4061
    %v4070 = vsub.f32 %v4030, %v4062
    %v4071 = vsub.f32 %v4031, %v4063
    %v4072 = vsub.f32 %v4032, %v4064
    %v4073 = vsub.f32 %v4033, %v4065
    %v4074 = vsub.f32 %v4034, %v4066
    %v4075 = vsub.f32 %v4035, %v4067
    %v4076 = vmul.f32 %v4068, %v4068
    %v4077 = vmul.f32 %v4069, %v4069
    %v4078 = vmul.f32 %v4070, %v4070
    %v4079 = vmul.f32 %v4071, %v4071
    %v4080 = vmul.f32 %v4072, %v4072
    %v4081 = vmul.f32 %v4073, %v4073
    %v4082 = vmul.f32 %v4074, %v4074
    %v4083 = vmul.f32 %v4075, %v4075
    %v4084 = vsel %vm425, %v4076, 0.0
    %4085 = vadd.xlane.f32.xlu0 %v4084
    %v4086 = vpop.xlane.xlu0 %4085
    %v4087 = vsel %vm425, %v4077, 0.0
    %4088 = vadd.xlane.f32.xlu0 %v4087
    %v4089 = vpop.xlane.xlu0 %4088
    %v4090 = vsel %vm425, %v4078, 0.0
    %4091 = vadd.xlane.f32.xlu0 %v4090
    %v4092 = vpop.xlane.xlu0 %4091
    %v4093 = vsel %vm425, %v4079, 0.0
    %4094 = vadd.xlane.f32.xlu0 %v4093
    %v4095 = vpop.xlane.xlu0 %4094
    %v4096 = vsel %vm425, %v4080, 0.0
    %4097 = vadd.xlane.f32.xlu0 %v4096
    %v4098 = vpop.xlane.xlu0 %4097
    %v4099 = vsel %vm425, %v4081, 0.0
    %4100 = vadd.xlane.f32.xlu0 %v4099
    %v4101 = vpop.xlane.xlu0 %4100
    %v4102 = vsel %vm425, %v4082, 0.0
    %4103 = vadd.xlane.f32.xlu0 %v4102
    %v4104 = vpop.xlane.xlu0 %4103
    %v4105 = vsel %vm425, %v4083, 0.0
    %4106 = vadd.xlane.f32.xlu0 %v4105
    %v4107 = vpop.xlane.xlu0 %4106
    %v4108 = vmul.f32 %v4086, %v456
    %v4109 = vmul.f32 %v4089, %v456
    %v4110 = vmul.f32 %v4092, %v456
    %v4111 = vmul.f32 %v4095, %v456
    %v4112 = vmul.f32 %v4098, %v456
    %v4113 = vmul.f32 %v4101, %v456
    %v4114 = vmul.f32 %v4104, %v456
    %v4115 = vmul.f32 %v4107, %v456
    %v4116 = vadd.f32 %v4108, 1e-12
    %v4117 = vadd.f32 %v4109, 1e-12
    %v4118 = vadd.f32 %v4110, 1e-12
    %v4119 = vadd.f32 %v4111, 1e-12
    %v4120 = vadd.f32 %v4112, 1e-12
    %v4121 = vadd.f32 %v4113, 1e-12
    %v4122 = vadd.f32 %v4114, 1e-12
    %v4123 = vadd.f32 %v4115, 1e-12
    %v4124 = vrsqrt.pop %v4116
    %v4125 = vmul.f32 %v4124, %v4116
    %v4126 = vmul.f32 %v4125, %v4124
    %v4127 = vmul.f32 0.5, %v4126
    %v4128 = vsub.f32 1.5, %v4127
    %v4129 = vmul.f32 %v4124, %v4128
    %vm4130 = vweird.f32 %v4116
    %vm4131 = vweird.f32 %v4124
    %vm4132 = vmor %vm4130, %vm4131
    %v4133 = vsel %vm4132, %v4124, %v4129
    %v4134 = vrsqrt.pop %v4117
    %v4135 = vmul.f32 %v4134, %v4117
    %v4136 = vmul.f32 %v4135, %v4134
    %v4137 = vmul.f32 0.5, %v4136
    %v4138 = vsub.f32 1.5, %v4137
    %v4139 = vmul.f32 %v4134, %v4138
    %vm4140 = vweird.f32 %v4117
    %vm4141 = vweird.f32 %v4134
    %vm4142 = vmor %vm4140, %vm4141
    %v4143 = vsel %vm4142, %v4134, %v4139
    %v4144 = vrsqrt.pop %v4118
    %v4145 = vmul.f32 %v4144, %v4118
    %v4146 = vmul.f32 %v4145, %v4144
    %v4147 = vmul.f32 0.5, %v4146
    %v4148 = vsub.f32 1.5, %v4147
    %v4149 = vmul.f32 %v4144, %v4148
    %vm4150 = vweird.f32 %v4118
    %vm4151 = vweird.f32 %v4144
    %vm4152 = vmor %vm4150, %vm4151
    %v4153 = vsel %vm4152, %v4144, %v4149
    %v4154 = vrsqrt.pop %v4119
    %v4155 = vmul.f32 %v4154, %v4119
    %v4156 = vmul.f32 %v4155, %v4154
    %v4157 = vmul.f32 0.5, %v4156
    %v4158 = vsub.f32 1.5, %v4157
    %v4159 = vmul.f32 %v4154, %v4158
    %vm4160 = vweird.f32 %v4119
    %vm4161 = vweird.f32 %v4154
    %vm4162 = vmor %vm4160, %vm4161
    %v4163 = vsel %vm4162, %v4154, %v4159
    %v4164 = vrsqrt.pop %v4120
    %v4165 = vmul.f32 %v4164, %v4120
    %v4166 = vmul.f32 %v4165, %v4164
    %v4167 = vmul.f32 0.5, %v4166
    %v4168 = vsub.f32 1.5, %v4167
    %v4169 = vmul.f32 %v4164, %v4168
    %vm4170 = vweird.f32 %v4120
    %vm4171 = vweird.f32 %v4164
    %vm4172 = vmor %vm4170, %vm4171
    %v4173 = vsel %vm4172, %v4164, %v4169
    %v4174 = vrsqrt.pop %v4121
    %v4175 = vmul.f32 %v4174, %v4121
    %v4176 = vmul.f32 %v4175, %v4174
    %v4177 = vmul.f32 0.5, %v4176
    %v4178 = vsub.f32 1.5, %v4177
    %v4179 = vmul.f32 %v4174, %v4178
    %vm4180 = vweird.f32 %v4121
    %vm4181 = vweird.f32 %v4174
    %vm4182 = vmor %vm4180, %vm4181
    %v4183 = vsel %vm4182, %v4174, %v4179
    %v4184 = vrsqrt.pop %v4122
    %v4185 = vmul.f32 %v4184, %v4122
    %v4186 = vmul.f32 %v4185, %v4184
    %v4187 = vmul.f32 0.5, %v4186
    %v4188 = vsub.f32 1.5, %v4187
    %v4189 = vmul.f32 %v4184, %v4188
    %vm4190 = vweird.f32 %v4122
    %vm4191 = vweird.f32 %v4184
    %vm4192 = vmor %vm4190, %vm4191
    %v4193 = vsel %vm4192, %v4184, %v4189
    %v4194 = vrsqrt.pop %v4123
    %v4195 = vmul.f32 %v4194, %v4123
    %v4196 = vmul.f32 %v4195, %v4194
    %v4197 = vmul.f32 0.5, %v4196
    %v4198 = vsub.f32 1.5, %v4197
    %v4199 = vmul.f32 %v4194, %v4198
    %vm4200 = vweird.f32 %v4123
    %vm4201 = vweird.f32 %v4194
    %vm4202 = vmor %vm4200, %vm4201
    %v4203 = vsel %vm4202, %v4194, %v4199
    %v4204 = vmul.f32 %v4068, %v4133
    %v4205 = vmul.f32 %v4069, %v4143
    %v4206 = vmul.f32 %v4070, %v4153
    %v4207 = vmul.f32 %v4071, %v4163
    %v4208 = vmul.f32 %v4072, %v4173
    %v4209 = vmul.f32 %v4073, %v4183
    %v4210 = vmul.f32 %v4074, %v4193
    %v4211 = vmul.f32 %v4075, %v4203
    %v4213 = vperm.slane %v2690, 0
    %v4215 = vmul.f32 %v4204, %v4213
    %v4216 = vmul.f32 %v4205, %v4213
    %v4217 = vmul.f32 %v4206, %v4213
    %v4218 = vmul.f32 %v4207, %v4213
    %v4219 = vmul.f32 %v4208, %v4213
    %v4220 = vmul.f32 %v4209, %v4213
    %v4221 = vmul.f32 %v4210, %v4213
    %v4222 = vmul.f32 %v4211, %v4213
    %v4224 = vperm.slane %v2691, 0
    %v4226 = vadd.f32 %v4215, %v4224
    %v4227 = vadd.f32 %v4216, %v4224
    %v4228 = vadd.f32 %v4217, %v4224
    %v4229 = vadd.f32 %v4218, %v4224
    %v4230 = vadd.f32 %v4219, %v4224
    %v4231 = vadd.f32 %v4220, %v4224
    %v4232 = vadd.f32 %v4221, %v4224
    %v4233 = vadd.f32 %v4222, %v4224
    %v4234 = vpack.c.bf16 %v4227, %v4226
    %v4235 = vpack.c.bf16 %v4229, %v4228
    %v4236 = vpack.c.bf16 %v4231, %v4230
    %v4237 = vpack.c.bf16 %v4233, %v4232
    %v4239 = vperm.slane %v2700, 0
    %v4249 = vunpack.c.l.b16 %v2692
    %v4250 = vunpack.c.l.b16 %v2693
    %v4251 = vunpack.c.l.b16 %v2694
    %v4252 = vunpack.c.l.b16 %v2695
    %v4253 = vunpack.c.l.b16 %v2696
    %v4254 = vunpack.c.l.b16 %v2697
    %v4255 = vunpack.c.l.b16 %v2698
    %v4256 = vunpack.c.l.b16 %v2699
    %v4257 = vpack.c.b16 %v4250, %v4249
    %v4258 = vpack.c.b16 %v4252, %v4251
    %v4259 = vpack.c.b16 %v4254, %v4253
    %v4260 = vpack.c.b16 %v4256, %v4255
    %v4266 = vsel %vm425, %v4234, 0
    %v4269 = vsel %vm425, %v4235, 0
    %v4272 = vsel %vm425, %v4236, 0
    %v4275 = vsel %vm425, %v4237, 0
    %4277 = vmatpush.bf16.msra.mxu0 0
    %4278 = vmatpush.bf16.msra.mxu0 0
    %4279 = vmatpush.bf16.msra.mxu0 0
    %4280 = vmatpush.bf16.msra.mxu0 0
    %4281 = vmatpush.bf16.msra.mxu0 %v4260
    %4282 = vmatpush.bf16.msra.mxu0 %v4259
    %4283 = vmatpush.bf16.msra.mxu0 %v4258
    %4284 = vmatpush.bf16.msra.mxu0 %v4257
    %4285 = vmatmul.bf16.gmra.mxu0 %v4266
    %v4286 = vpop.f32.mrf.mxu0
    %v4287 = vadd.f32 %v4239, %v4286
    %v4288 = vpop.f32.mrf.mxu0
    %v4289 = vadd.f32 %v4239, %v4288
    %4290 = vmatmul.bf16.gmra.mxu0 %v4269
    %v4291 = vpop.f32.mrf.mxu0
    %v4292 = vadd.f32 %v4239, %v4291
    %v4293 = vpop.f32.mrf.mxu0
    %v4294 = vadd.f32 %v4239, %v4293
    %4295 = vmatmul.bf16.gmra.mxu0 %v4272
    %v4296 = vpop.f32.mrf.mxu0
    %v4297 = vadd.f32 %v4239, %v4296
    %v4298 = vpop.f32.mrf.mxu0
    %v4299 = vadd.f32 %v4239, %v4298
    %4300 = vmatmul.bf16.gmra.mxu0 %v4275
    %v4301 = vpop.f32.mrf.mxu0
    %v4302 = vadd.f32 %v4239, %v4301
    %v4303 = vpop.f32.mrf.mxu0
    %v4304 = vadd.f32 %v4239, %v4303
    %4305 = vdwg.mxu0
    %v4306 = vmul.f32 %v4287, %v4287
    %v4307 = vmul.f32 %v4289, %v4289
    %v4308 = vmul.f32 %v4292, %v4292
    %v4309 = vmul.f32 %v4294, %v4294
    %v4310 = vmul.f32 %v4297, %v4297
    %v4311 = vmul.f32 %v4299, %v4299
    %v4312 = vmul.f32 %v4302, %v4302
    %v4313 = vmul.f32 %v4304, %v4304
    %v4314 = vmul.f32 %v4287, %v4306
    %v4315 = vmul.f32 %v4289, %v4307
    %v4316 = vmul.f32 %v4292, %v4308
    %v4317 = vmul.f32 %v4294, %v4309
    %v4318 = vmul.f32 %v4297, %v4310
    %v4319 = vmul.f32 %v4299, %v4311
    %v4320 = vmul.f32 %v4302, %v4312
    %v4321 = vmul.f32 %v4304, %v4313
    %v4322 = vmul.f32 %v4314, 0.044715
    %v4323 = vmul.f32 %v4315, 0.044715
    %v4324 = vmul.f32 %v4316, 0.044715
    %v4325 = vmul.f32 %v4317, 0.044715
    %v4326 = vmul.f32 %v4318, 0.044715
    %v4327 = vmul.f32 %v4319, 0.044715
    %v4328 = vmul.f32 %v4320, 0.044715
    %v4329 = vmul.f32 %v4321, 0.044715
    %v4330 = vadd.f32 %v4287, %v4322
    %v4331 = vadd.f32 %v4289, %v4323
    %v4332 = vadd.f32 %v4292, %v4324
    %v4333 = vadd.f32 %v4294, %v4325
    %v4334 = vadd.f32 %v4297, %v4326
    %v4335 = vadd.f32 %v4299, %v4327
    %v4336 = vadd.f32 %v4302, %v4328
    %v4337 = vadd.f32 %v4304, %v4329
    %v4338 = vmul.f32 %v4330, 0.7978846
    %v4339 = vmul.f32 %v4331, 0.7978846
    %v4340 = vmul.f32 %v4332, 0.7978846
    %v4341 = vmul.f32 %v4333, 0.7978846
    %v4342 = vmul.f32 %v4334, 0.7978846
    %v4343 = vmul.f32 %v4335, 0.7978846
    %v4344 = vmul.f32 %v4336, 0.7978846
    %v4345 = vmul.f32 %v4337, 0.7978846
    %v4346 = vtanh.pop %v4338
    %v4347 = vtanh.pop %v4339
    %v4348 = vtanh.pop %v4340
    %v4349 = vtanh.pop %v4341
    %v4350 = vtanh.pop %v4342
    %v4351 = vtanh.pop %v4343
    %v4352 = vtanh.pop %v4344
    %v4353 = vtanh.pop %v4345
    %v4354 = vadd.f32 %v4346, 1.0
    %v4355 = vadd.f32 %v4347, 1.0
    %v4356 = vadd.f32 %v4348, 1.0
    %v4357 = vadd.f32 %v4349, 1.0
    %v4358 = vadd.f32 %v4350, 1.0
    %v4359 = vadd.f32 %v4351, 1.0
    %v4360 = vadd.f32 %v4352, 1.0
    %v4361 = vadd.f32 %v4353, 1.0
    %v4362 = vmul.f32 %v4354, 0.5
    %v4363 = vmul.f32 %v4355, 0.5
    %v4364 = vmul.f32 %v4356, 0.5
    %v4365 = vmul.f32 %v4357, 0.5
    %v4366 = vmul.f32 %v4358, 0.5
    %v4367 = vmul.f32 %v4359, 0.5
    %v4368 = vmul.f32 %v4360, 0.5
    %v4369 = vmul.f32 %v4361, 0.5
    %v4370 = vmul.f32 %v4287, %v4362
    %v4371 = vmul.f32 %v4289, %v4363
    %v4372 = vmul.f32 %v4292, %v4364
    %v4373 = vmul.f32 %v4294, %v4365
    %v4374 = vmul.f32 %v4297, %v4366
    %v4375 = vmul.f32 %v4299, %v4367
    %v4376 = vmul.f32 %v4302, %v4368
    %v4377 = vmul.f32 %v4304, %v4369
    %v4378 = vpack.c.bf16 %v4371, %v4370
    %v4379 = vpack.c.bf16 %v4373, %v4372
    %v4380 = vpack.c.bf16 %v4375, %v4374
    %v4381 = vpack.c.bf16 %v4377, %v4376
    %v4383 = vperm.slane %v2717, 0
    %v4401 = vunpack.c.l.b16 %v2701
    %v4402 = vunpack.c.l.b16 %v2702
    %v4403 = vunpack.c.l.b16 %v2703
    %v4404 = vunpack.c.l.b16 %v2704
    %v4405 = vunpack.c.l.b16 %v2705
    %v4406 = vunpack.c.l.b16 %v2706
    %v4407 = vunpack.c.l.b16 %v2707
    %v4408 = vunpack.c.l.b16 %v2708
    %v4409 = vunpack.c.l.b16 %v2709
    %v4410 = vunpack.c.l.b16 %v2710
    %v4411 = vunpack.c.l.b16 %v2711
    %v4412 = vunpack.c.l.b16 %v2712
    %v4413 = vunpack.c.l.b16 %v2713
    %v4414 = vunpack.c.l.b16 %v2714
    %v4415 = vunpack.c.l.b16 %v2715
    %v4416 = vunpack.c.l.b16 %v2716
    %v4417 = vpack.c.b16 %v4402, %v4401
    %v4418 = vpack.c.b16 %v4404, %v4403
    %v4419 = vpack.c.b16 %v4406, %v4405
    %v4420 = vpack.c.b16 %v4408, %v4407
    %v4421 = vpack.c.b16 %v4410, %v4409
    %v4422 = vpack.c.b16 %v4412, %v4411
    %v4423 = vpack.c.b16 %v4414, %v4413
    %v4424 = vpack.c.b16 %v4416, %v4415
    %4433 = vmatpush.bf16.msra.mxu0 %v4424
    %4434 = vmatpush.bf16.msra.mxu0 %v4423
    %4435 = vmatpush.bf16.msra.mxu0 %v4422
    %4436 = vmatpush.bf16.msra.mxu0 %v4421
    %4437 = vmatpush.bf16.msra.mxu0 %v4420
    %4438 = vmatpush.bf16.msra.mxu0 %v4419
    %4439 = vmatpush.bf16.msra.mxu0 %v4418
    %4440 = vmatpush.bf16.msra.mxu0 %v4417
    %4441 = vmatmul.bf16.gmra.mxu0 %v4378
    %v4442 = vpop.f32.mrf.mxu0
    %v4443 = vadd.f32 %v4383, %v4442
    %v4444 = vpop.f32.mrf.mxu0
    %4445 = vmatmul.bf16.gmra.mxu0 %v4379
    %v4446 = vpop.f32.mrf.mxu0
    %v4447 = vpop.f32.mrf.mxu0
    %4448 = vmatmul.bf16.gmra.mxu0 %v4380
    %v4449 = vpop.f32.mrf.mxu0
    %v4450 = vadd.f32 %v4383, %v4449
    %v4451 = vpop.f32.mrf.mxu0
    %4452 = vmatmul.bf16.gmra.mxu0 %v4381
    %v4453 = vpop.f32.mrf.mxu0
    %v4454 = vpop.f32.mrf.mxu0
    %4455 = vdwg.mxu0
    %v4456 = vadd.f32 %v4226, %v4443
    %v4457 = vadd.f32 %v4230, %v4450
    %v4458 = vsel %vm425, %v4456, 0.0
    %4459 = vadd.xlane.f32.xlu0 %v4458
    %v4460 = vpop.xlane.xlu0 %4459
    %v4461 = vsel %vm425, %v4457, 0.0
    %4462 = vadd.xlane.f32.xlu0 %v4461
    %v4463 = vpop.xlane.xlu0 %4462
    %v4464 = vmul.f32 %v4460, %v456
    %v4465 = vmul.f32 %v4463, %v456
    %v4466 = vsub.f32 %v4456, %v4464
    %v4467 = vsub.f32 %v4457, %v4465
    %v4468 = vmul.f32 %v4466, %v4466
    %v4469 = vmul.f32 %v4467, %v4467
    %v4470 = vsel %vm425, %v4468, 0.0
    %4471 = vadd.xlane.f32.xlu0 %v4470
    %v4472 = vpop.xlane.xlu0 %4471
    %v4473 = vsel %vm425, %v4469, 0.0
    %4474 = vadd.xlane.f32.xlu0 %v4473
    %v4475 = vpop.xlane.xlu0 %4474
    %v4476 = vmul.f32 %v4472, %v456
    %v4477 = vmul.f32 %v4475, %v456
    %v4478 = vadd.f32 %v4476, 1e-12
    %v4479 = vadd.f32 %v4477, 1e-12
    %v4480 = vrsqrt.pop %v4478
    %v4481 = vmul.f32 %v4480, %v4478
    %v4482 = vmul.f32 %v4481, %v4480
    %v4483 = vmul.f32 0.5, %v4482
    %v4484 = vsub.f32 1.5, %v4483
    %v4485 = vmul.f32 %v4480, %v4484
    %vm4486 = vweird.f32 %v4478
    %vm4487 = vweird.f32 %v4480
    %vm4488 = vmor %vm4486, %vm4487
    %v4489 = vsel %vm4488, %v4480, %v4485
    %v4490 = vrsqrt.pop %v4479
    %v4491 = vmul.f32 %v4490, %v4479
    %v4492 = vmul.f32 %v4491, %v4490
    %v4493 = vmul.f32 0.5, %v4492
    %v4494 = vsub.f32 1.5, %v4493
    %v4495 = vmul.f32 %v4490, %v4494
    %vm4496 = vweird.f32 %v4479
    %vm4497 = vweird.f32 %v4490
    %vm4498 = vmor %vm4496, %vm4497
    %v4499 = vsel %vm4498, %v4490, %v4495
    %v4500 = vmul.f32 %v4466, %v4489
    %v4501 = vmul.f32 %v4467, %v4499
    %v4503 = vperm.slane %v2718, 0
    %v4505 = vmul.f32 %v4500, %v4503
    %v4506 = vmul.f32 %v4501, %v4503
    %v4508 = vperm.slane %v2719, 0
    %v4510 = vadd.f32 %v4505, %v4508
    %v4511 = vadd.f32 %v4506, %v4508
    %v4513 = vrot.slane %v4511, 7
    %vm4515 = vcmask 1040384
    %v4516 = vsel %vm4515, %v4510, %v4513
    %v4517 = vpack.c.bf16 %v4516, %v4516
    %v4518 = vld [vmem:[%s81] sm:$0xf]
    %v4519 = vld [vmem:[%s81 + $0x4] sm:$0xf]
    %v4520 = vld [vmem:[%s81 + $0x8] sm:$0xf]
    %v4521 = vld [vmem:[%s81 + $0xc] sm:$0xf]
    %v4522 = vld [vmem:[%s81 + $0x10] sm:$0xf]
    %v4523 = vld [vmem:[%s81 + $0x14] sm:$0xf]
    %v4524 = vld [vmem:[%s81 + $0x18] sm:$0xf]
    %v4525 = vld [vmem:[%s81 + $0x1c] sm:$0xf]
    %v4526 = vld [vmem:[%s83] sm:$0x1]
    %v4528 = vperm.slane %v4526, 0
    %v4538 = vunpack.c.l.b16 %v4518
    %v4539 = vunpack.c.l.b16 %v4519
    %v4540 = vunpack.c.l.b16 %v4520
    %v4541 = vunpack.c.l.b16 %v4521
    %v4542 = vunpack.c.l.b16 %v4522
    %v4543 = vunpack.c.l.b16 %v4523
    %v4544 = vunpack.c.l.b16 %v4524
    %v4545 = vunpack.c.l.b16 %v4525
    %v4546 = vpack.c.b16 %v4539, %v4538
    %v4547 = vpack.c.b16 %v4541, %v4540
    %v4548 = vpack.c.b16 %v4543, %v4542
    %v4549 = vpack.c.b16 %v4545, %v4544
    %v4555 = vsel %vm425, %v4517, 0
    %4557 = vmatpush.bf16.msra.mxu0 0
    %4558 = vmatpush.bf16.msra.mxu0 0
    %4559 = vmatpush.bf16.msra.mxu0 0
    %4560 = vmatpush.bf16.msra.mxu0 0
    %4561 = vmatpush.bf16.msra.mxu0 %v4549
    %4562 = vmatpush.bf16.msra.mxu0 %v4548
    %4563 = vmatpush.bf16.msra.mxu0 %v4547
    %4564 = vmatpush.bf16.msra.mxu0 %v4546
    %4565 = vmatmul.bf16.gmra.mxu0 %v4555
    %v4566 = vpop.f32.mrf.mxu0
    %v4567 = vadd.f32 %v4528, %v4566
    %v4568 = vpop.f32.mrf.mxu0
    %4569 = vdwg.mxu0
    %v4570 = vtanh.pop %v4567
    %v4571 = vpack.c.bf16 %v4570, %v4570
    %v4572 = vld [vmem:[%s85] sm:$0xf]
    %v4573 = vld [vmem:[%s85 + $0x4] sm:$0xf]
    %v4574 = vld [vmem:[%s85 + $0x8] sm:$0xf]
    %v4575 = vld [vmem:[%s85 + $0xc] sm:$0xf]
    %v4576 = vld [vmem:[%s85 + $0x10] sm:$0xf]
    %v4577 = vld [vmem:[%s85 + $0x14] sm:$0xf]
    %v4578 = vld [vmem:[%s85 + $0x18] sm:$0xf]
    %v4579 = vld [vmem:[%s85 + $0x1c] sm:$0xf]
    %v4580 = vld [vmem:[%s87] sm:$0x1]
    %v4582 = vperm.slane %v4580, 0
    %v4592 = vunpack.c.l.b16 %v4572
    %v4593 = vunpack.c.l.b16 %v4573
    %v4594 = vunpack.c.l.b16 %v4574
    %v4595 = vunpack.c.l.b16 %v4575
    %v4596 = vunpack.c.l.b16 %v4576
    %v4597 = vunpack.c.l.b16 %v4577
    %v4598 = vunpack.c.l.b16 %v4578
    %v4599 = vunpack.c.l.b16 %v4579
    %v4600 = vpack.c.b16 %v4593, %v4592
    %v4601 = vpack.c.b16 %v4595, %v4594
    %v4602 = vpack.c.b16 %v4597, %v4596
    %v4603 = vpack.c.b16 %v4599, %v4598
    %v4609 = vsel %vm425, %v4571, 0
    %4611 = vmatpush.bf16.msra.mxu0 0
    %4612 = vmatpush.bf16.msra.mxu0 0
    %4613 = vmatpush.bf16.msra.mxu0 0
    %4614 = vmatpush.bf16.msra.mxu0 0
    %4615 = vmatpush.bf16.msra.mxu0 %v4603
    %4616 = vmatpush.bf16.msra.mxu0 %v4602
    %4617 = vmatpush.bf16.msra.mxu0 %v4601
    %4618 = vmatpush.bf16.msra.mxu0 %v4600
    %4619 = vmatmul.bf16.gmra.mxu0 %v4609
    %v4620 = vpop.f32.mrf.mxu0
    %v4621 = vadd.f32 %v4582, %v4620
    %v4622 = vpop.f32.mrf.mxu0
    %4623 = vdwg.mxu0
    %vm4624 = vcmask 9216
    %4625 = vst.msk [vmem:[#allocation2] sm:$0x3] %vm4624, %v4621
    // Predicated region
    $region178: #{fermion_forward.1} parent=1 // pred_check
      _
    $region179: #{fermion_forward.1} parent=1 // pred_check_branch
      %4627 = sbr.rel (0) target = $region181
    $region180: #{fermion_forward.1} parent=1 // pred_region
      %4629 = vsyncadd [#allocation3], 0
      %s4631 = sshll.u32 [#allocation2], 4
      %s4632 = int_to_ptr.vmem [resolvable:$true] %s4631
      %s4633 = sshll.u32 %s89, 4
      %s4634 = int_to_ptr.hbm [resolvable:$true] %s4633
      %4636 = dma.vmem_to_hbm [thread:$0]  %s4632, 32, %s4634, [#allocation3]
    $region181: #{fermion_forward.1} parent=1 // pred_fallthru
      _
    // Predicated region
    $region182: #{fermion_forward.1} parent=1 // pred_check
      _
    $region183: #{fermion_forward.1} parent=1 // pred_check_branch
      %4638 = sbr.rel (0) target = $region185
    $region184: #{fermion_forward.1} parent=1 // pred_region
      %4640 = dma.done [#allocation3], 32
    $region185: #{fermion_forward.1} parent=1 // pred_fallthru
      _
    %4641 = vsyncpa [#allocation3], 1

</llo_original>
